<compile_context>
chip_gen: v7x
topology: tpu7x:2x2x1
jax: 0.10.0
libtpu: 0.0.40
codegen_flags: <defaults>
</compile_context>

<pallas_src>
import numpy as np
import jax
import jax.numpy as jnp
from jax.experimental import pallas as pl
from jax.experimental.pallas import tpu as pltpu

BN_EPS = 1e-5   # PyTorch BatchNorm2d default


# ----------------------------------------------------------------------------
# Fused kernel: all conv layers + pools of BaseFeature for one batch element.
# ----------------------------------------------------------------------------
def _make_base_feature_kernel(layer_cfgs):
    n_layers = len(layer_cfgs)

    def kernel(*refs):
        x_ref = refs[0]                                  # (1, C0, H0*W0) f32
        lrefs = refs[1:1 + 4 * n_layers]                 # per layer: w, bias, alpha, extra
        out_ref = refs[1 + 4 * n_layers]                 # (1, Cf, Hf*Wf) f32
        scratch = refs[2 + 4 * n_layers:]
        pad_refs = scratch[:n_layers]                    # (Cin, (H+2)*(W+2)+2) f32 flat padded rows
        im_refs = scratch[n_layers:]                     # (9*Cin, H*(W+2)) im2col (bf16 or f32)

        # ---- stage the input image into the interior of the first padded buffer ----------
        cfg0 = layer_cfgs[0]
        H, W = cfg0["H"], cfg0["W"]
        Wp = W + 2
        pad_refs[0][...] = jnp.zeros_like(pad_refs[0])   # smallest buffer: zero halo + tail once
        x0 = x_ref[0]                                    # (C0, H*W), spatial on lanes
        for y in range(H):
            pad_refs[0][:, (y + 1) * Wp + 1:(y + 1) * Wp + 1 + W] = x0[:, y * W:(y + 1) * W]

        for l, cfg in enumerate(layer_cfgs):
            H, W, Cin, Cout, pool = cfg["H"], cfg["W"], cfg["Cin"], cfg["Cout"], cfg["pool"]
            Wp = W + 2
            L = H * Wp                                   # conv output length in padded-row space
            w_ref = lrefs[4 * l + 0]                     # (Cout, 9*Cin) bf16, BN scale folded in
            b_ref = lrefs[4 * l + 1]                     # (Cout, 1) f32 folded BN bias
            a_ref = lrefs[4 * l + 2]                     # (Cout, 1) f32 PReLU slope
            ex_ref = lrefs[4 * l + 3]                    # (1, L) valid mask | (Lq, Lnext) pool select
            im_ref = im_refs[l]

            xflat = pad_refs[l][...]                     # (Cin, (H+2)*Wp + 2) f32

            # im2col, transposed: row block k = dy*3+dx of (9*Cin, L) is a contiguous lane
            # window of the flat padded image (pure lane shift, cast at store time).
            for dy in range(3):
                for dx in range(3):
                    k = dy * 3 + dx
                    s = dy * Wp + dx
                    im_ref[k * Cin:(k + 1) * Cin, :] = (
                        xflat[:, s:s + L].astype(im_ref.dtype))

            # Transposed GEMM: spatial (L) on the MXU lane axis, f32 accumulation.
            im = im_ref[...]
            if im.dtype != jnp.bfloat16:                 # only Cin-unaligned (smallest) layers
                im = im.astype(jnp.bfloat16)
            acc = jnp.dot(w_ref[...], im, preferred_element_type=jnp.float32)   # (Cout, L)

            # Folded-BatchNorm bias + PReLU epilogue, f32 (v5e-safe).
            z = acc + b_ref[...]
            y = jnp.where(z >= 0, z, a_ref[...] * z)     # (Cout, L)

            if not pool:
                # Next conv has the same H, W.  Zero the wrap-around garbage columns (x >= W)
                # with the resident 0/1 mask, then one constant-offset (Wp+1) shift-copy puts
                # the valid interior at (y+1, x+1) of the next padded buffer, with the zeroed
                # garbage landing exactly on the halo columns.  Only the two untouched border
                # strips need explicit zeroing (O(W), not O(H*W)).
                y = y * ex_ref[...]
                nxt = pad_refs[l + 1]
                nxt[:, 0:Wp + 1] = jnp.zeros((Cout, Wp + 1), jnp.float32)
                tail = nxt.shape[1] - ((H + 1) * Wp + 1)
                nxt[:, (H + 1) * Wp + 1:] = jnp.zeros((Cout, tail), jnp.float32)
                nxt[:, Wp + 1:Wp + 1 + L] = y
            else:
                # Fused MaxPool2d(2,2): 4-way elementwise max of shifted views, then one 0/1
                # selection matmul that decimates (stride 2) and either re-pads for the next
                # stage (halo = all-zero sel rows) or flattens to the (Cf, Hf*Wf) output.
                Lq = L - (Wp + 1)
                pm = jnp.maximum(jnp.maximum(y[:, 0:Lq], y[:, 1:Lq + 1]),
                                 jnp.maximum(y[:, Wp:Wp + Lq], y[:, Wp + 1:Wp + 1 + Lq]))
                pooled = jnp.dot(pm, ex_ref[...], preferred_element_type=jnp.float32)
                if l + 1 < n_layers:
                    pad_refs[l + 1][...] = pooled        # full write incl. zero halo + tail
                else:
                    out_ref[0] = pooled.astype(out_ref.dtype)

    return kernel


# ----------------------------------------------------------------------------
# Wrapper helpers.
# ----------------------------------------------------------------------------
def _fold_conv_bn(w, gamma, beta, rmean, rvar, alpha, eps=BN_EPS):
    """Fold eval-mode BatchNorm into the conv weights; layout (Cout, 9*Cin) for the MXU."""
    cin, cout = int(w.shape[2]), int(w.shape[3])
    scale = gamma / jnp.sqrt(rvar + eps)                                   # (Cout,)
    w_t = jnp.transpose(w * scale[None, None, None, :], (3, 0, 1, 2))      # (Cout,3,3,Cin)
    w_folded = w_t.reshape(cout, 9 * cin).astype(jnp.bfloat16)             # row = k*Cin + c
    bias = (beta - rmean * scale).reshape(cout, 1).astype(jnp.float32)
    return w_folded, bias, alpha.reshape(cout, 1).astype(jnp.float32)


def _make_valid_mask(H, W):
    """1.0 for valid conv-output columns, 0.0 for the 2 wrap-around columns per row."""
    Wp = W + 2
    m = ((np.arange(H * Wp) % Wp) < W).astype(np.float32).reshape(1, H * Wp)
    return jnp.asarray(m)


def _make_pool_select(H, W, to_next_padded):
    """0/1 matrix: MaxPool2d(2,2) decimation (+ re-pad for the next stage) as one matmul."""
    Wp = W + 2
    Lq = H * Wp - (Wp + 1)
    Ho, Wo = H // 2, W // 2
    Lnext = (Ho + 2) * (Wo + 2) + 2 if to_next_padded else Ho * Wo
    sel = np.zeros((Lq, Lnext), np.float32)
    for yo in range(Ho):
        for xo in range(Wo):
            p = (2 * yo) * Wp + 2 * xo
            q = (yo + 1) * (Wo + 2) + (xo + 1) if to_next_padded else yo * Wo + xo
            sel[p, q] = 1.0
    return jnp.asarray(sel)


@jax.jit
def base_feature_forward(x_nchw, params):
    """x_nchw: (N, C, H, W) like the PyTorch module.  params: list of stages of per-conv tuples."""
    x = x_nchw.astype(jnp.float32)
    N, C, H, W = x.shape

    # Sublane-align the input channels (extra channels are zero with zero weights).
    Cpad = max(8, ((C + 7) // 8) * 8)
    if Cpad != C:
        x = jnp.pad(x, ((0, 0), (0, Cpad - C), (0, 0), (0, 0)))
    x_flat = x.reshape(N, Cpad, H * W)                    # (C, H*W): spatial on lanes

    inputs = [x_flat]
    in_specs = [pl.BlockSpec((1, Cpad, H * W), lambda b: (b, 0, 0))]
    pad_scratch, im_scratch, layer_cfgs = [], [], []

    Hc, Wc, Cc = H, W, Cpad
    first = True
    for si, stage in enumerate(params):
        last_stage = si == len(params) - 1
        for li, (w, gamma, beta, rmean, rvar, alpha) in enumerate(stage):
            Cin, Cout = int(w.shape[2]), int(w.shape[3])
            if first:
                w = jnp.pad(w, ((0, 0), (0, 0), (0, Cpad - Cin), (0, 0)))
                Cin = Cpad
                first = False
            assert Cin == Cc, (Cin, Cc)
            pool = li == len(stage) - 1

            wf, bf, af = _fold_conv_bn(w, gamma, beta, rmean, rvar, alpha)
            if pool:
                # TODO(synk): PyTorch MaxPool2d(2,2) floors odd spatial dims; only even handled.
                assert Hc % 2 == 0 and Wc % 2 == 0
                extra = _make_pool_select(Hc, Wc, to_next_padded=not last_stage)
            else:
                extra = _make_valid_mask(Hc, Wc)

            inputs += [wf, bf, af, extra]
            # Constant index_maps: params/masks stay resident in VMEM across grid steps.
            in_specs += [pl.BlockSpec((Cout, 9 * Cin), lambda b: (0, 0)),
                         pl.BlockSpec((Cout, 1), lambda b: (0, 0)),
                         pl.BlockSpec((Cout, 1), lambda b: (0, 0)),
                         pl.BlockSpec(extra.shape, lambda b: (0, 0))]

            layer_cfgs.append(dict(H=Hc, W=Wc, Cin=Cin, Cout=Cout, pool=pool))
            # Padded flat-row activation buffer (+2 tail keeps the (dy=2,dx=2) window in-bounds).
            pad_scratch.append(pltpu.VMEM((Cin, (Hc + 2) * (Wc + 2) + 2), jnp.float32))
            # bf16 im2col where Cin is 16-aligned (bf16 sublane packing); f32 otherwise.
            im_dt = jnp.bfloat16 if (Cin % 16 == 0) else jnp.float32
            im_scratch.append(pltpu.VMEM((9 * Cin, Hc * (Wc + 2)), im_dt))

            if pool:
                Hc, Wc = Hc // 2, Wc // 2
            Cc = Cout

    Cf, Hf, Wf = Cc, Hc, Wc
    flops = 2 * N * sum(c["H"] * c["W"] * 9 * c["Cin"] * c["Cout"] for c in layer_cfgs)
    bytes_accessed = (4 * int(x_flat.size) + 4 * N * Cf * Hf * Wf
                      + sum(int(a.size) * a.dtype.itemsize for a in inputs[1:]))

    out = pl.pallas_call(
        _make_base_feature_kernel(layer_cfgs),
        out_shape=jax.ShapeDtypeStruct((N, Cf, Hf * Wf), jnp.float32),
        grid=(N,),
        in_specs=in_specs,
        out_specs=pl.BlockSpec((1, Cf, Hf * Wf), lambda b: (b, 0, 0)),
        scratch_shapes=pad_scratch + im_scratch,
        compiler_params=pltpu.CompilerParams(
            dimension_semantics=("parallel",),            # batch -> both TCs on v7x
            vmem_limit_bytes=32 * 1024 * 1024),
        cost_estimate=pl.CostEstimate(flops=flops, transcendentals=0,
                                      bytes_accessed=bytes_accessed),
    )(*inputs)

    return out.reshape(N, Cf, Hf, Wf)                     # already NCHW


# ----------------------------------------------------------------------------
# Pure-JAX reference (eval-mode BatchNorm), for correctness checking.
# ----------------------------------------------------------------------------
@jax.jit
def _reference_forward(x_nchw, params):
    x = x_nchw.astype(jnp.float32)
    for stage in params:
        for (w, gamma, beta, rmean, rvar, alpha) in stage:
            y = jax.lax.conv_general_dilated(
                x, w, window_strides=(1, 1), padding=((1, 1), (1, 1)),
                dimension_numbers=("NCHW", "HWIO", "NCHW"))
            scale = (gamma / jnp.sqrt(rvar + BN_EPS))[None, :, None, None]
            y = y * scale + (beta[None, :, None, None] - rmean[None, :, None, None] * scale)
            y = jnp.where(y >= 0, y, alpha[None, :, None, None] * y)
            x = y
        x = jax.lax.reduce_window(x, -jnp.inf, jax.lax.max,
                                  (1, 1, 2, 2), (1, 1, 2, 2), "VALID")
    return x


# ----------------------------------------------------------------------------
# Deterministic parameter construction.
# ----------------------------------------------------------------------------
def init_base_feature_params(key, in_chns, nb_filters, nb_layers):
    """Returns list of stages; each stage is a list of per-SingleConv param tuples."""
    stages = []
    cur = in_chns
    for out_chns, n_layers in zip(nb_filters, nb_layers):
        convs = []
        chns_in = cur
        for _ in range(n_layers):
            key, kw, kg, kb, km, kv, ka = jax.random.split(key, 7)
            w = jax.random.normal(kw, (3, 3, chns_in, out_chns), jnp.float32) * 0.1
            gamma = 1.0 + 0.05 * jax.random.normal(kg, (out_chns,), jnp.float32)
            beta = 0.05 * jax.random.normal(kb, (out_chns,), jnp.float32)
            rmean = 0.05 * jax.random.normal(km, (out_chns,), jnp.float32)
            rvar = 1.0 + 0.05 * jax.random.uniform(kv, (out_chns,), jnp.float32)
            alpha = 0.1 * jax.random.uniform(ka, (out_chns,), jnp.float32)
            convs.append((w, gamma, beta, rmean, rvar, alpha))
            chns_in = out_chns
        stages.append(convs)
        cur = out_chns
    return stages


if __name__ == "__main__":
    key = jax.random.PRNGKey(0)
    key, kx = jax.random.split(key)

    # Small shapes: batch=2, in_chns=4, spatial=16x16, nb_filters=[8,16,32], nb_layers=[2,2,2]
    in_chns = 4
    nb_filters = [8, 16, 32]
    nb_layers = [2, 2, 2]
    x = jax.random.normal(kx, (2, in_chns, 16, 16), jnp.float32)
    params = init_base_feature_params(key, in_chns, nb_filters, nb_layers)

    out = jax.block_until_ready(base_feature_forward(x, params))

    # After 3 stages of 2x2 pooling: 16 -> 8 -> 4 -> 2, channels = 32
    assert out.shape == (2, nb_filters[-1], 2, 2), out.shape
    assert bool(jnp.all(jnp.isfinite(out)))

    # Reference check (bf16 MXU operands -> loose tolerance).
    ref = jax.block_until_ready(_reference_forward(x, params))
    assert jnp.allclose(out, ref, atol=1e-1, rtol=1e-1), float(jnp.max(jnp.abs(out - ref)))

    print("KERNEL_OK")
</pallas_src>

<mosaic_0001>
module attributes {stable_mosaic.version = 11 : i64} {
  func.func @kernel(%arg0: i32, %arg1: memref<1x8x256xf32, #tpu.memory_space<vmem>>, %arg2: memref<8x72xbf16, #tpu.memory_space<vmem>>, %arg3: memref<8x1xf32, #tpu.memory_space<vmem>>, %arg4: memref<8x1xf32, #tpu.memory_space<vmem>>, %arg5: memref<1x288xf32, #tpu.memory_space<vmem>>, %arg6: memref<8x72xbf16, #tpu.memory_space<vmem>>, %arg7: memref<8x1xf32, #tpu.memory_space<vmem>>, %arg8: memref<8x1xf32, #tpu.memory_space<vmem>>, %arg9: memref<269x102xf32, #tpu.memory_space<vmem>>, %arg10: memref<16x72xbf16, #tpu.memory_space<vmem>>, %arg11: memref<16x1xf32, #tpu.memory_space<vmem>>, %arg12: memref<16x1xf32, #tpu.memory_space<vmem>>, %arg13: memref<1x80xf32, #tpu.memory_space<vmem>>, %arg14: memref<16x144xbf16, #tpu.memory_space<vmem>>, %arg15: memref<16x1xf32, #tpu.memory_space<vmem>>, %arg16: memref<16x1xf32, #tpu.memory_space<vmem>>, %arg17: memref<69x38xf32, #tpu.memory_space<vmem>>, %arg18: memref<32x144xbf16, #tpu.memory_space<vmem>>, %arg19: memref<32x1xf32, #tpu.memory_space<vmem>>, %arg20: memref<32x1xf32, #tpu.memory_space<vmem>>, %arg21: memref<1x24xf32, #tpu.memory_space<vmem>>, %arg22: memref<32x288xbf16, #tpu.memory_space<vmem>>, %arg23: memref<32x1xf32, #tpu.memory_space<vmem>>, %arg24: memref<32x1xf32, #tpu.memory_space<vmem>>, %arg25: memref<17x4xf32, #tpu.memory_space<vmem>>, %arg26: memref<1x32x4xf32, #tpu.memory_space<vmem>>, %arg27: memref<8x326xf32, #tpu.memory_space<vmem>>, %arg28: memref<8x326xf32, #tpu.memory_space<vmem>>, %arg29: memref<8x102xf32, #tpu.memory_space<vmem>>, %arg30: memref<16x102xf32, #tpu.memory_space<vmem>>, %arg31: memref<16x38xf32, #tpu.memory_space<vmem>>, %arg32: memref<32x38xf32, #tpu.memory_space<vmem>>, %arg33: memref<72x288xf32, #tpu.memory_space<vmem>>, %arg34: memref<72x288xf32, #tpu.memory_space<vmem>>, %arg35: memref<72x80xf32, #tpu.memory_space<vmem>>, %arg36: memref<144x80xbf16, #tpu.memory_space<vmem>>, %arg37: memref<144x24xbf16, #tpu.memory_space<vmem>>, %arg38: memref<288x24xbf16, #tpu.memory_space<vmem>>) attributes {dimension_semantics = [#tpu.dimension_semantics<parallel>], iteration_bounds = array<i64: 2>, scalar_prefetch = 0 : i64, scratch_operands = 12 : i64, tpu.core_type = #tpu.core_type<tc>, window_params = [{transform_indices = @transform_0, window_bounds = array<i64: 1, 8, 256>}, {pipeline_mode = #tpu.pipeline_mode<synchronous>, transform_indices = @transform_1, window_bounds = array<i64: 8, 72>}, {pipeline_mode = #tpu.pipeline_mode<synchronous>, transform_indices = @transform_2, window_bounds = array<i64: 8, 1>}, {pipeline_mode = #tpu.pipeline_mode<synchronous>, transform_indices = @transform_3, window_bounds = array<i64: 8, 1>}, {pipeline_mode = #tpu.pipeline_mode<synchronous>, transform_indices = @transform_4, window_bounds = array<i64: 1, 288>}, {pipeline_mode = #tpu.pipeline_mode<synchronous>, transform_indices = @transform_5, window_bounds = array<i64: 8, 72>}, {pipeline_mode = #tpu.pipeline_mode<synchronous>, transform_indices = @transform_6, window_bounds = array<i64: 8, 1>}, {pipeline_mode = #tpu.pipeline_mode<synchronous>, transform_indices = @transform_7, window_bounds = array<i64: 8, 1>}, {pipeline_mode = #tpu.pipeline_mode<synchronous>, transform_indices = @transform_8, window_bounds = array<i64: 269, 102>}, {pipeline_mode = #tpu.pipeline_mode<synchronous>, transform_indices = @transform_9, window_bounds = array<i64: 16, 72>}, {pipeline_mode = #tpu.pipeline_mode<synchronous>, transform_indices = @transform_10, window_bounds = array<i64: 16, 1>}, {pipeline_mode = #tpu.pipeline_mode<synchronous>, transform_indices = @transform_11, window_bounds = array<i64: 16, 1>}, {pipeline_mode = #tpu.pipeline_mode<synchronous>, transform_indices = @transform_12, window_bounds = array<i64: 1, 80>}, {pipeline_mode = #tpu.pipeline_mode<synchronous>, transform_indices = @transform_13, window_bounds = array<i64: 16, 144>}, {pipeline_mode = #tpu.pipeline_mode<synchronous>, transform_indices = @transform_14, window_bounds = array<i64: 16, 1>}, {pipeline_mode = #tpu.pipeline_mode<synchronous>, transform_indices = @transform_15, window_bounds = array<i64: 16, 1>}, {pipeline_mode = #tpu.pipeline_mode<synchronous>, transform_indices = @transform_16, window_bounds = array<i64: 69, 38>}, {pipeline_mode = #tpu.pipeline_mode<synchronous>, transform_indices = @transform_17, window_bounds = array<i64: 32, 144>}, {pipeline_mode = #tpu.pipeline_mode<synchronous>, transform_indices = @transform_18, window_bounds = array<i64: 32, 1>}, {pipeline_mode = #tpu.pipeline_mode<synchronous>, transform_indices = @transform_19, window_bounds = array<i64: 32, 1>}, {pipeline_mode = #tpu.pipeline_mode<synchronous>, transform_indices = @transform_20, window_bounds = array<i64: 1, 24>}, {pipeline_mode = #tpu.pipeline_mode<synchronous>, transform_indices = @transform_21, window_bounds = array<i64: 32, 288>}, {pipeline_mode = #tpu.pipeline_mode<synchronous>, transform_indices = @transform_22, window_bounds = array<i64: 32, 1>}, {pipeline_mode = #tpu.pipeline_mode<synchronous>, transform_indices = @transform_23, window_bounds = array<i64: 32, 1>}, {pipeline_mode = #tpu.pipeline_mode<synchronous>, transform_indices = @transform_24, window_bounds = array<i64: 17, 4>}, {transform_indices = @transform_25, window_bounds = array<i64: 1, 32, 4>}]} {
    %cst = arith.constant 0.000000e+00 : f32
    %0 = vector.broadcast %cst : f32 to vector<8x326xf32>
    %c0 = arith.constant 0 : index
    %c0_0 = arith.constant 0 : index
    %1 = vector.load %arg27[%c0, %c0_0] : memref<8x326xf32, #tpu.memory_space<vmem>>, vector<8x326xf32>
    tpu.vector_store %arg27[%c0, %c0_0], %0 {strides = array<i32>} : memref<8x326xf32, #tpu.memory_space<vmem>>, vector<8x326xf32>,
    %c0_1 = arith.constant 0 : index
    %c0_2 = arith.constant 0 : index
    %c0_3 = arith.constant 0 : index
    %2 = vector.load %arg1[%c0_1, %c0_2, %c0_3] : memref<1x8x256xf32, #tpu.memory_space<vmem>>, vector<1x8x256xf32>
    %3 = vector.shape_cast %2 : vector<1x8x256xf32> to vector<8x256xf32>
    %4 = vector.extract_strided_slice %3 {offsets = [0, 0], sizes = [8, 16], strides = [1, 1]} : vector<8x256xf32> to vector<8x16xf32>
    %c0_4 = arith.constant 0 : index
    %c19 = arith.constant 19 : index
    %5 = vector.load %arg27[%c0_4, %c19] : memref<8x326xf32, #tpu.memory_space<vmem>>, vector<8x16xf32>
    tpu.vector_store %arg27[%c0_4, %c19], %4 {strides = array<i32>} : memref<8x326xf32, #tpu.memory_space<vmem>>, vector<8x16xf32>,
    %6 = vector.extract_strided_slice %3 {offsets = [0, 16], sizes = [8, 16], strides = [1, 1]} : vector<8x256xf32> to vector<8x16xf32>
    %c0_5 = arith.constant 0 : index
    %c37 = arith.constant 37 : index
    %7 = vector.load %arg27[%c0_5, %c37] : memref<8x326xf32, #tpu.memory_space<vmem>>, vector<8x16xf32>
    tpu.vector_store %arg27[%c0_5, %c37], %6 {strides = array<i32>} : memref<8x326xf32, #tpu.memory_space<vmem>>, vector<8x16xf32>,
    %8 = vector.extract_strided_slice %3 {offsets = [0, 32], sizes = [8, 16], strides = [1, 1]} : vector<8x256xf32> to vector<8x16xf32>
    %c0_6 = arith.constant 0 : index
    %c55 = arith.constant 55 : index
    %9 = vector.load %arg27[%c0_6, %c55] : memref<8x326xf32, #tpu.memory_space<vmem>>, vector<8x16xf32>
    tpu.vector_store %arg27[%c0_6, %c55], %8 {strides = array<i32>} : memref<8x326xf32, #tpu.memory_space<vmem>>, vector<8x16xf32>,
    %10 = vector.extract_strided_slice %3 {offsets = [0, 48], sizes = [8, 16], strides = [1, 1]} : vector<8x256xf32> to vector<8x16xf32>
    %c0_7 = arith.constant 0 : index
    %c73 = arith.constant 73 : index
    %11 = vector.load %arg27[%c0_7, %c73] : memref<8x326xf32, #tpu.memory_space<vmem>>, vector<8x16xf32>
    tpu.vector_store %arg27[%c0_7, %c73], %10 {strides = array<i32>} : memref<8x326xf32, #tpu.memory_space<vmem>>, vector<8x16xf32>,
    %12 = vector.extract_strided_slice %3 {offsets = [0, 64], sizes = [8, 16], strides = [1, 1]} : vector<8x256xf32> to vector<8x16xf32>
    %c0_8 = arith.constant 0 : index
    %c91 = arith.constant 91 : index
    %13 = vector.load %arg27[%c0_8, %c91] : memref<8x326xf32, #tpu.memory_space<vmem>>, vector<8x16xf32>
    tpu.vector_store %arg27[%c0_8, %c91], %12 {strides = array<i32>} : memref<8x326xf32, #tpu.memory_space<vmem>>, vector<8x16xf32>,
    %14 = vector.extract_strided_slice %3 {offsets = [0, 80], sizes = [8, 16], strides = [1, 1]} : vector<8x256xf32> to vector<8x16xf32>
    %c0_9 = arith.constant 0 : index
    %c109 = arith.constant 109 : index
    %15 = vector.load %arg27[%c0_9, %c109] : memref<8x326xf32, #tpu.memory_space<vmem>>, vector<8x16xf32>
    tpu.vector_store %arg27[%c0_9, %c109], %14 {strides = array<i32>} : memref<8x326xf32, #tpu.memory_space<vmem>>, vector<8x16xf32>,
    %16 = vector.extract_strided_slice %3 {offsets = [0, 96], sizes = [8, 16], strides = [1, 1]} : vector<8x256xf32> to vector<8x16xf32>
    %c0_10 = arith.constant 0 : index
    %c127 = arith.constant 127 : index
    %17 = vector.load %arg27[%c0_10, %c127] : memref<8x326xf32, #tpu.memory_space<vmem>>, vector<8x16xf32>
    tpu.vector_store %arg27[%c0_10, %c127], %16 {strides = array<i32>} : memref<8x326xf32, #tpu.memory_space<vmem>>, vector<8x16xf32>,
    %18 = vector.extract_strided_slice %3 {offsets = [0, 112], sizes = [8, 16], strides = [1, 1]} : vector<8x256xf32> to vector<8x16xf32>
    %c0_11 = arith.constant 0 : index
    %c145 = arith.constant 145 : index
    %19 = vector.load %arg27[%c0_11, %c145] : memref<8x326xf32, #tpu.memory_space<vmem>>, vector<8x16xf32>
    tpu.vector_store %arg27[%c0_11, %c145], %18 {strides = array<i32>} : memref<8x326xf32, #tpu.memory_space<vmem>>, vector<8x16xf32>,
    %20 = vector.extract_strided_slice %3 {offsets = [0, 128], sizes = [8, 16], strides = [1, 1]} : vector<8x256xf32> to vector<8x16xf32>
    %c0_12 = arith.constant 0 : index
    %c163 = arith.constant 163 : index
    %21 = vector.load %arg27[%c0_12, %c163] : memref<8x326xf32, #tpu.memory_space<vmem>>, vector<8x16xf32>
    tpu.vector_store %arg27[%c0_12, %c163], %20 {strides = array<i32>} : memref<8x326xf32, #tpu.memory_space<vmem>>, vector<8x16xf32>,
    %22 = vector.extract_strided_slice %3 {offsets = [0, 144], sizes = [8, 16], strides = [1, 1]} : vector<8x256xf32> to vector<8x16xf32>
    %c0_13 = arith.constant 0 : index
    %c181 = arith.constant 181 : index
    %23 = vector.load %arg27[%c0_13, %c181] : memref<8x326xf32, #tpu.memory_space<vmem>>, vector<8x16xf32>
    tpu.vector_store %arg27[%c0_13, %c181], %22 {strides = array<i32>} : memref<8x326xf32, #tpu.memory_space<vmem>>, vector<8x16xf32>,
    %24 = vector.extract_strided_slice %3 {offsets = [0, 160], sizes = [8, 16], strides = [1, 1]} : vector<8x256xf32> to vector<8x16xf32>
    %c0_14 = arith.constant 0 : index
    %c199 = arith.constant 199 : index
    %25 = vector.load %arg27[%c0_14, %c199] : memref<8x326xf32, #tpu.memory_space<vmem>>, vector<8x16xf32>
    tpu.vector_store %arg27[%c0_14, %c199], %24 {strides = array<i32>} : memref<8x326xf32, #tpu.memory_space<vmem>>, vector<8x16xf32>,
    %26 = vector.extract_strided_slice %3 {offsets = [0, 176], sizes = [8, 16], strides = [1, 1]} : vector<8x256xf32> to vector<8x16xf32>
    %c0_15 = arith.constant 0 : index
    %c217 = arith.constant 217 : index
    %27 = vector.load %arg27[%c0_15, %c217] : memref<8x326xf32, #tpu.memory_space<vmem>>, vector<8x16xf32>
    tpu.vector_store %arg27[%c0_15, %c217], %26 {strides = array<i32>} : memref<8x326xf32, #tpu.memory_space<vmem>>, vector<8x16xf32>,
    %28 = vector.extract_strided_slice %3 {offsets = [0, 192], sizes = [8, 16], strides = [1, 1]} : vector<8x256xf32> to vector<8x16xf32>
    %c0_16 = arith.constant 0 : index
    %c235 = arith.constant 235 : index
    %29 = vector.load %arg27[%c0_16, %c235] : memref<8x326xf32, #tpu.memory_space<vmem>>, vector<8x16xf32>
    tpu.vector_store %arg27[%c0_16, %c235], %28 {strides = array<i32>} : memref<8x326xf32, #tpu.memory_space<vmem>>, vector<8x16xf32>,
    %30 = vector.extract_strided_slice %3 {offsets = [0, 208], sizes = [8, 16], strides = [1, 1]} : vector<8x256xf32> to vector<8x16xf32>
    %c0_17 = arith.constant 0 : index
    %c253 = arith.constant 253 : index
    %31 = vector.load %arg27[%c0_17, %c253] : memref<8x326xf32, #tpu.memory_space<vmem>>, vector<8x16xf32>
    tpu.vector_store %arg27[%c0_17, %c253], %30 {strides = array<i32>} : memref<8x326xf32, #tpu.memory_space<vmem>>, vector<8x16xf32>,
    %32 = vector.extract_strided_slice %3 {offsets = [0, 224], sizes = [8, 16], strides = [1, 1]} : vector<8x256xf32> to vector<8x16xf32>
    %c0_18 = arith.constant 0 : index
    %c271 = arith.constant 271 : index
    %33 = vector.load %arg27[%c0_18, %c271] : memref<8x326xf32, #tpu.memory_space<vmem>>, vector<8x16xf32>
    tpu.vector_store %arg27[%c0_18, %c271], %32 {strides = array<i32>} : memref<8x326xf32, #tpu.memory_space<vmem>>, vector<8x16xf32>,
    %34 = vector.extract_strided_slice %3 {offsets = [0, 240], sizes = [8, 16], strides = [1, 1]} : vector<8x256xf32> to vector<8x16xf32>
    %c0_19 = arith.constant 0 : index
    %c289 = arith.constant 289 : index
    %35 = vector.load %arg27[%c0_19, %c289] : memref<8x326xf32, #tpu.memory_space<vmem>>, vector<8x16xf32>
    tpu.vector_store %arg27[%c0_19, %c289], %34 {strides = array<i32>} : memref<8x326xf32, #tpu.memory_space<vmem>>, vector<8x16xf32>,
    %c0_20 = arith.constant 0 : index
    %c0_21 = arith.constant 0 : index
    %36 = vector.load %arg27[%c0_20, %c0_21] : memref<8x326xf32, #tpu.memory_space<vmem>>, vector<8x326xf32>
    %37 = vector.extract_strided_slice %36 {offsets = [0, 0], sizes = [8, 288], strides = [1, 1]} : vector<8x326xf32> to vector<8x288xf32>
    %c0_22 = arith.constant 0 : index
    %c0_23 = arith.constant 0 : index
    %38 = vector.load %arg33[%c0_22, %c0_23] : memref<72x288xf32, #tpu.memory_space<vmem>>, vector<8x288xf32>
    tpu.vector_store %arg33[%c0_22, %c0_23], %37 {strides = array<i32>} : memref<72x288xf32, #tpu.memory_space<vmem>>, vector<8x288xf32>,
    %39 = vector.extract_strided_slice %36 {offsets = [0, 1], sizes = [8, 288], strides = [1, 1]} : vector<8x326xf32> to vector<8x288xf32>
    %c8 = arith.constant 8 : index
    %c0_24 = arith.constant 0 : index
    %40 = vector.load %arg33[%c8, %c0_24] : memref<72x288xf32, #tpu.memory_space<vmem>>, vector<8x288xf32>
    tpu.vector_store %arg33[%c8, %c0_24], %39 {strides = array<i32>} : memref<72x288xf32, #tpu.memory_space<vmem>>, vector<8x288xf32>,
    %41 = vector.extract_strided_slice %36 {offsets = [0, 2], sizes = [8, 288], strides = [1, 1]} : vector<8x326xf32> to vector<8x288xf32>
    %c16 = arith.constant 16 : index
    %c0_25 = arith.constant 0 : index
    %42 = vector.load %arg33[%c16, %c0_25] : memref<72x288xf32, #tpu.memory_space<vmem>>, vector<8x288xf32>
    tpu.vector_store %arg33[%c16, %c0_25], %41 {strides = array<i32>} : memref<72x288xf32, #tpu.memory_space<vmem>>, vector<8x288xf32>,
    %43 = vector.extract_strided_slice %36 {offsets = [0, 18], sizes = [8, 288], strides = [1, 1]} : vector<8x326xf32> to vector<8x288xf32>
    %c24 = arith.constant 24 : index
    %c0_26 = arith.constant 0 : index
    %44 = vector.load %arg33[%c24, %c0_26] : memref<72x288xf32, #tpu.memory_space<vmem>>, vector<8x288xf32>
    tpu.vector_store %arg33[%c24, %c0_26], %43 {strides = array<i32>} : memref<72x288xf32, #tpu.memory_space<vmem>>, vector<8x288xf32>,
    %45 = vector.extract_strided_slice %36 {offsets = [0, 19], sizes = [8, 288], strides = [1, 1]} : vector<8x326xf32> to vector<8x288xf32>
    %c32 = arith.constant 32 : index
    %c0_27 = arith.constant 0 : index
    %46 = vector.load %arg33[%c32, %c0_27] : memref<72x288xf32, #tpu.memory_space<vmem>>, vector<8x288xf32>
    tpu.vector_store %arg33[%c32, %c0_27], %45 {strides = array<i32>} : memref<72x288xf32, #tpu.memory_space<vmem>>, vector<8x288xf32>,
    %47 = vector.extract_strided_slice %36 {offsets = [0, 20], sizes = [8, 288], strides = [1, 1]} : vector<8x326xf32> to vector<8x288xf32>
    %c40 = arith.constant 40 : index
    %c0_28 = arith.constant 0 : index
    %48 = vector.load %arg33[%c40, %c0_28] : memref<72x288xf32, #tpu.memory_space<vmem>>, vector<8x288xf32>
    tpu.vector_store %arg33[%c40, %c0_28], %47 {strides = array<i32>} : memref<72x288xf32, #tpu.memory_space<vmem>>, vector<8x288xf32>,
    %49 = vector.extract_strided_slice %36 {offsets = [0, 36], sizes = [8, 288], strides = [1, 1]} : vector<8x326xf32> to vector<8x288xf32>
    %c48 = arith.constant 48 : index
    %c0_29 = arith.constant 0 : index
    %50 = vector.load %arg33[%c48, %c0_29] : memref<72x288xf32, #tpu.memory_space<vmem>>, vector<8x288xf32>
    tpu.vector_store %arg33[%c48, %c0_29], %49 {strides = array<i32>} : memref<72x288xf32, #tpu.memory_space<vmem>>, vector<8x288xf32>,
    %51 = vector.extract_strided_slice %36 {offsets = [0, 37], sizes = [8, 288], strides = [1, 1]} : vector<8x326xf32> to vector<8x288xf32>
    %c56 = arith.constant 56 : index
    %c0_30 = arith.constant 0 : index
    %52 = vector.load %arg33[%c56, %c0_30] : memref<72x288xf32, #tpu.memory_space<vmem>>, vector<8x288xf32>
    tpu.vector_store %arg33[%c56, %c0_30], %51 {strides = array<i32>} : memref<72x288xf32, #tpu.memory_space<vmem>>, vector<8x288xf32>,
    %53 = vector.extract_strided_slice %36 {offsets = [0, 38], sizes = [8, 288], strides = [1, 1]} : vector<8x326xf32> to vector<8x288xf32>
    %c64 = arith.constant 64 : index
    %c0_31 = arith.constant 0 : index
    %54 = vector.load %arg33[%c64, %c0_31] : memref<72x288xf32, #tpu.memory_space<vmem>>, vector<8x288xf32>
    tpu.vector_store %arg33[%c64, %c0_31], %53 {strides = array<i32>} : memref<72x288xf32, #tpu.memory_space<vmem>>, vector<8x288xf32>,
    %c0_32 = arith.constant 0 : index
    %c0_33 = arith.constant 0 : index
    %55 = vector.load %arg33[%c0_32, %c0_33] : memref<72x288xf32, #tpu.memory_space<vmem>>, vector<72x288xf32>
    %56 = arith.truncf %55 : vector<72x288xf32> to vector<72x288xbf16>
    %c0_34 = arith.constant 0 : index
    %c0_35 = arith.constant 0 : index
    %57 = vector.load %arg2[%c0_34, %c0_35] : memref<8x72xbf16, #tpu.memory_space<vmem>>, vector<8x72xbf16>
    %cst_36 = arith.constant dense<0.000000e+00> : vector<8x288xf32>
    %58 = tpu.matmul %57, %56, %cst_36 {dimension_numbers = #tpu.dot_dimension_numbers<[1], [0], [0], [1], [0, 0, 1, 1], [], []>} : vector<8x72xbf16>, vector<72x288xbf16>, vector<8x288xf32> -> vector<8x288xf32>
    %c0_37 = arith.constant 0 : index
    %c0_38 = arith.constant 0 : index
    %59 = vector.load %arg3[%c0_37, %c0_38] : memref<8x1xf32, #tpu.memory_space<vmem>>, vector<8x1xf32>
    %60 = vector.broadcast %59 : vector<8x1xf32> to vector<8x288xf32>
    %61 = arith.addf %58, %60 : vector<8x288xf32>
    %cst_39 = arith.constant 0.000000e+00 : f32
    %62 = vector.broadcast %cst_39 : f32 to vector<8x288xf32>
    %63 = arith.cmpf oge, %61, %62 : vector<8x288xf32>
    %c0_40 = arith.constant 0 : index
    %c0_41 = arith.constant 0 : index
    %64 = vector.load %arg4[%c0_40, %c0_41] : memref<8x1xf32, #tpu.memory_space<vmem>>, vector<8x1xf32>
    %65 = vector.broadcast %64 : vector<8x1xf32> to vector<8x288xf32>
    %66 = arith.mulf %65, %61 : vector<8x288xf32>
    %67 = arith.select %63, %61, %66 : vector<8x288xi1>, vector<8x288xf32>
    %c0_42 = arith.constant 0 : index
    %c0_43 = arith.constant 0 : index
    %68 = vector.load %arg5[%c0_42, %c0_43] : memref<1x288xf32, #tpu.memory_space<vmem>>, vector<1x288xf32>
    %69 = vector.broadcast %68 : vector<1x288xf32> to vector<8x288xf32>
    %70 = arith.mulf %67, %69 : vector<8x288xf32>
    %cst_44 = arith.constant 0.000000e+00 : f32
    %71 = vector.broadcast %cst_44 : f32 to vector<8x19xf32>
    %c0_45 = arith.constant 0 : index
    %c0_46 = arith.constant 0 : index
    %72 = vector.load %arg28[%c0_45, %c0_46] : memref<8x326xf32, #tpu.memory_space<vmem>>, vector<8x19xf32>
    tpu.vector_store %arg28[%c0_45, %c0_46], %71 {strides = array<i32>} : memref<8x326xf32, #tpu.memory_space<vmem>>, vector<8x19xf32>,
    %cst_47 = arith.constant 0.000000e+00 : f32
    %73 = vector.broadcast %cst_47 : f32 to vector<8x19xf32>
    %c0_48 = arith.constant 0 : index
    %c307 = arith.constant 307 : index
    %74 = vector.load %arg28[%c0_48, %c307] : memref<8x326xf32, #tpu.memory_space<vmem>>, vector<8x19xf32>
    tpu.vector_store %arg28[%c0_48, %c307], %73 {strides = array<i32>} : memref<8x326xf32, #tpu.memory_space<vmem>>, vector<8x19xf32>,
    %c0_49 = arith.constant 0 : index
    %c19_50 = arith.constant 19 : index
    %75 = vector.load %arg28[%c0_49, %c19_50] : memref<8x326xf32, #tpu.memory_space<vmem>>, vector<8x288xf32>
    tpu.vector_store %arg28[%c0_49, %c19_50], %70 {strides = array<i32>} : memref<8x326xf32, #tpu.memory_space<vmem>>, vector<8x288xf32>,
    %c0_51 = arith.constant 0 : index
    %c0_52 = arith.constant 0 : index
    %76 = vector.load %arg28[%c0_51, %c0_52] : memref<8x326xf32, #tpu.memory_space<vmem>>, vector<8x326xf32>
    %77 = vector.extract_strided_slice %76 {offsets = [0, 0], sizes = [8, 288], strides = [1, 1]} : vector<8x326xf32> to vector<8x288xf32>
    %c0_53 = arith.constant 0 : index
    %c0_54 = arith.constant 0 : index
    %78 = vector.load %arg34[%c0_53, %c0_54] : memref<72x288xf32, #tpu.memory_space<vmem>>, vector<8x288xf32>
    tpu.vector_store %arg34[%c0_53, %c0_54], %77 {strides = array<i32>} : memref<72x288xf32, #tpu.memory_space<vmem>>, vector<8x288xf32>,
    %79 = vector.extract_strided_slice %76 {offsets = [0, 1], sizes = [8, 288], strides = [1, 1]} : vector<8x326xf32> to vector<8x288xf32>
    %c8_55 = arith.constant 8 : index
    %c0_56 = arith.constant 0 : index
    %80 = vector.load %arg34[%c8_55, %c0_56] : memref<72x288xf32, #tpu.memory_space<vmem>>, vector<8x288xf32>
    tpu.vector_store %arg34[%c8_55, %c0_56], %79 {strides = array<i32>} : memref<72x288xf32, #tpu.memory_space<vmem>>, vector<8x288xf32>,
    %81 = vector.extract_strided_slice %76 {offsets = [0, 2], sizes = [8, 288], strides = [1, 1]} : vector<8x326xf32> to vector<8x288xf32>
    %c16_57 = arith.constant 16 : index
    %c0_58 = arith.constant 0 : index
    %82 = vector.load %arg34[%c16_57, %c0_58] : memref<72x288xf32, #tpu.memory_space<vmem>>, vector<8x288xf32>
    tpu.vector_store %arg34[%c16_57, %c0_58], %81 {strides = array<i32>} : memref<72x288xf32, #tpu.memory_space<vmem>>, vector<8x288xf32>,
    %83 = vector.extract_strided_slice %76 {offsets = [0, 18], sizes = [8, 288], strides = [1, 1]} : vector<8x326xf32> to vector<8x288xf32>
    %c24_59 = arith.constant 24 : index
    %c0_60 = arith.constant 0 : index
    %84 = vector.load %arg34[%c24_59, %c0_60] : memref<72x288xf32, #tpu.memory_space<vmem>>, vector<8x288xf32>
    tpu.vector_store %arg34[%c24_59, %c0_60], %83 {strides = array<i32>} : memref<72x288xf32, #tpu.memory_space<vmem>>, vector<8x288xf32>,
    %85 = vector.extract_strided_slice %76 {offsets = [0, 19], sizes = [8, 288], strides = [1, 1]} : vector<8x326xf32> to vector<8x288xf32>
    %c32_61 = arith.constant 32 : index
    %c0_62 = arith.constant 0 : index
    %86 = vector.load %arg34[%c32_61, %c0_62] : memref<72x288xf32, #tpu.memory_space<vmem>>, vector<8x288xf32>
    tpu.vector_store %arg34[%c32_61, %c0_62], %85 {strides = array<i32>} : memref<72x288xf32, #tpu.memory_space<vmem>>, vector<8x288xf32>,
    %87 = vector.extract_strided_slice %76 {offsets = [0, 20], sizes = [8, 288], strides = [1, 1]} : vector<8x326xf32> to vector<8x288xf32>
    %c40_63 = arith.constant 40 : index
    %c0_64 = arith.constant 0 : index
    %88 = vector.load %arg34[%c40_63, %c0_64] : memref<72x288xf32, #tpu.memory_space<vmem>>, vector<8x288xf32>
    tpu.vector_store %arg34[%c40_63, %c0_64], %87 {strides = array<i32>} : memref<72x288xf32, #tpu.memory_space<vmem>>, vector<8x288xf32>,
    %89 = vector.extract_strided_slice %76 {offsets = [0, 36], sizes = [8, 288], strides = [1, 1]} : vector<8x326xf32> to vector<8x288xf32>
    %c48_65 = arith.constant 48 : index
    %c0_66 = arith.constant 0 : index
    %90 = vector.load %arg34[%c48_65, %c0_66] : memref<72x288xf32, #tpu.memory_space<vmem>>, vector<8x288xf32>
    tpu.vector_store %arg34[%c48_65, %c0_66], %89 {strides = array<i32>} : memref<72x288xf32, #tpu.memory_space<vmem>>, vector<8x288xf32>,
    %91 = vector.extract_strided_slice %76 {offsets = [0, 37], sizes = [8, 288], strides = [1, 1]} : vector<8x326xf32> to vector<8x288xf32>
    %c56_67 = arith.constant 56 : index
    %c0_68 = arith.constant 0 : index
    %92 = vector.load %arg34[%c56_67, %c0_68] : memref<72x288xf32, #tpu.memory_space<vmem>>, vector<8x288xf32>
    tpu.vector_store %arg34[%c56_67, %c0_68], %91 {strides = array<i32>} : memref<72x288xf32, #tpu.memory_space<vmem>>, vector<8x288xf32>,
    %93 = vector.extract_strided_slice %76 {offsets = [0, 38], sizes = [8, 288], strides = [1, 1]} : vector<8x326xf32> to vector<8x288xf32>
    %c64_69 = arith.constant 64 : index
    %c0_70 = arith.constant 0 : index
    %94 = vector.load %arg34[%c64_69, %c0_70] : memref<72x288xf32, #tpu.memory_space<vmem>>, vector<8x288xf32>
    tpu.vector_store %arg34[%c64_69, %c0_70], %93 {strides = array<i32>} : memref<72x288xf32, #tpu.memory_space<vmem>>, vector<8x288xf32>,
    %c0_71 = arith.constant 0 : index
    %c0_72 = arith.constant 0 : index
    %95 = vector.load %arg34[%c0_71, %c0_72] : memref<72x288xf32, #tpu.memory_space<vmem>>, vector<72x288xf32>
    %96 = arith.truncf %95 : vector<72x288xf32> to vector<72x288xbf16>
    %c0_73 = arith.constant 0 : index
    %c0_74 = arith.constant 0 : index
    %97 = vector.load %arg6[%c0_73, %c0_74] : memref<8x72xbf16, #tpu.memory_space<vmem>>, vector<8x72xbf16>
    %cst_75 = arith.constant dense<0.000000e+00> : vector<8x288xf32>
    %98 = tpu.matmul %97, %96, %cst_75 {dimension_numbers = #tpu.dot_dimension_numbers<[1], [0], [0], [1], [0, 0, 1, 1], [], []>} : vector<8x72xbf16>, vector<72x288xbf16>, vector<8x288xf32> -> vector<8x288xf32>
    %c0_76 = arith.constant 0 : index
    %c0_77 = arith.constant 0 : index
    %99 = vector.load %arg7[%c0_76, %c0_77] : memref<8x1xf32, #tpu.memory_space<vmem>>, vector<8x1xf32>
    %100 = vector.broadcast %99 : vector<8x1xf32> to vector<8x288xf32>
    %101 = arith.addf %98, %100 : vector<8x288xf32>
    %cst_78 = arith.constant 0.000000e+00 : f32
    %102 = vector.broadcast %cst_78 : f32 to vector<8x288xf32>
    %103 = arith.cmpf oge, %101, %102 : vector<8x288xf32>
    %c0_79 = arith.constant 0 : index
    %c0_80 = arith.constant 0 : index
    %104 = vector.load %arg8[%c0_79, %c0_80] : memref<8x1xf32, #tpu.memory_space<vmem>>, vector<8x1xf32>
    %105 = vector.broadcast %104 : vector<8x1xf32> to vector<8x288xf32>
    %106 = arith.mulf %105, %101 : vector<8x288xf32>
    %107 = arith.select %103, %101, %106 : vector<8x288xi1>, vector<8x288xf32>
    %108 = vector.extract_strided_slice %107 {offsets = [0, 0], sizes = [8, 269], strides = [1, 1]} : vector<8x288xf32> to vector<8x269xf32>
    %109 = vector.extract_strided_slice %107 {offsets = [0, 1], sizes = [8, 269], strides = [1, 1]} : vector<8x288xf32> to vector<8x269xf32>
    %110 = arith.maximumf %108, %109 : vector<8x269xf32>
    %111 = vector.extract_strided_slice %107 {offsets = [0, 18], sizes = [8, 269], strides = [1, 1]} : vector<8x288xf32> to vector<8x269xf32>
    %112 = vector.extract_strided_slice %107 {offsets = [0, 19], sizes = [8, 269], strides = [1, 1]} : vector<8x288xf32> to vector<8x269xf32>
    %113 = arith.maximumf %111, %112 : vector<8x269xf32>
    %114 = arith.maximumf %110, %113 : vector<8x269xf32>
    %c0_81 = arith.constant 0 : index
    %c0_82 = arith.constant 0 : index
    %115 = vector.load %arg9[%c0_81, %c0_82] : memref<269x102xf32, #tpu.memory_space<vmem>>, vector<269x102xf32>
    %cst_83 = arith.constant dense<0.000000e+00> : vector<8x102xf32>
    %116 = tpu.matmul %114, %115, %cst_83 {dimension_numbers = #tpu.dot_dimension_numbers<[1], [0], [0], [1], [0, 0, 1, 1], [], []>} : vector<8x269xf32>, vector<269x102xf32>, vector<8x102xf32> -> vector<8x102xf32>
    %c0_84 = arith.constant 0 : index
    %c0_85 = arith.constant 0 : index
    %117 = vector.load %arg29[%c0_84, %c0_85] : memref<8x102xf32, #tpu.memory_space<vmem>>, vector<8x102xf32>
    tpu.vector_store %arg29[%c0_84, %c0_85], %116 {strides = array<i32>} : memref<8x102xf32, #tpu.memory_space<vmem>>, vector<8x102xf32>,
    %c0_86 = arith.constant 0 : index
    %c0_87 = arith.constant 0 : index
    %118 = vector.load %arg29[%c0_86, %c0_87] : memref<8x102xf32, #tpu.memory_space<vmem>>, vector<8x102xf32>
    %119 = vector.extract_strided_slice %118 {offsets = [0, 0], sizes = [8, 80], strides = [1, 1]} : vector<8x102xf32> to vector<8x80xf32>
    %c0_88 = arith.constant 0 : index
    %c0_89 = arith.constant 0 : index
    %120 = vector.load %arg35[%c0_88, %c0_89] : memref<72x80xf32, #tpu.memory_space<vmem>>, vector<8x80xf32>
    tpu.vector_store %arg35[%c0_88, %c0_89], %119 {strides = array<i32>} : memref<72x80xf32, #tpu.memory_space<vmem>>, vector<8x80xf32>,
    %121 = vector.extract_strided_slice %118 {offsets = [0, 1], sizes = [8, 80], strides = [1, 1]} : vector<8x102xf32> to vector<8x80xf32>
    %c8_90 = arith.constant 8 : index
    %c0_91 = arith.constant 0 : index
    %122 = vector.load %arg35[%c8_90, %c0_91] : memref<72x80xf32, #tpu.memory_space<vmem>>, vector<8x80xf32>
    tpu.vector_store %arg35[%c8_90, %c0_91], %121 {strides = array<i32>} : memref<72x80xf32, #tpu.memory_space<vmem>>, vector<8x80xf32>,
    %123 = vector.extract_strided_slice %118 {offsets = [0, 2], sizes = [8, 80], strides = [1, 1]} : vector<8x102xf32> to vector<8x80xf32>
    %c16_92 = arith.constant 16 : index
    %c0_93 = arith.constant 0 : index
    %124 = vector.load %arg35[%c16_92, %c0_93] : memref<72x80xf32, #tpu.memory_space<vmem>>, vector<8x80xf32>
    tpu.vector_store %arg35[%c16_92, %c0_93], %123 {strides = array<i32>} : memref<72x80xf32, #tpu.memory_space<vmem>>, vector<8x80xf32>,
    %125 = vector.extract_strided_slice %118 {offsets = [0, 10], sizes = [8, 80], strides = [1, 1]} : vector<8x102xf32> to vector<8x80xf32>
    %c24_94 = arith.constant 24 : index
    %c0_95 = arith.constant 0 : index
    %126 = vector.load %arg35[%c24_94, %c0_95] : memref<72x80xf32, #tpu.memory_space<vmem>>, vector<8x80xf32>
    tpu.vector_store %arg35[%c24_94, %c0_95], %125 {strides = array<i32>} : memref<72x80xf32, #tpu.memory_space<vmem>>, vector<8x80xf32>,
    %127 = vector.extract_strided_slice %118 {offsets = [0, 11], sizes = [8, 80], strides = [1, 1]} : vector<8x102xf32> to vector<8x80xf32>
    %c32_96 = arith.constant 32 : index
    %c0_97 = arith.constant 0 : index
    %128 = vector.load %arg35[%c32_96, %c0_97] : memref<72x80xf32, #tpu.memory_space<vmem>>, vector<8x80xf32>
    tpu.vector_store %arg35[%c32_96, %c0_97], %127 {strides = array<i32>} : memref<72x80xf32, #tpu.memory_space<vmem>>, vector<8x80xf32>,
    %129 = vector.extract_strided_slice %118 {offsets = [0, 12], sizes = [8, 80], strides = [1, 1]} : vector<8x102xf32> to vector<8x80xf32>
    %c40_98 = arith.constant 40 : index
    %c0_99 = arith.constant 0 : index
    %130 = vector.load %arg35[%c40_98, %c0_99] : memref<72x80xf32, #tpu.memory_space<vmem>>, vector<8x80xf32>
    tpu.vector_store %arg35[%c40_98, %c0_99], %129 {strides = array<i32>} : memref<72x80xf32, #tpu.memory_space<vmem>>, vector<8x80xf32>,
    %131 = vector.extract_strided_slice %118 {offsets = [0, 20], sizes = [8, 80], strides = [1, 1]} : vector<8x102xf32> to vector<8x80xf32>
    %c48_100 = arith.constant 48 : index
    %c0_101 = arith.constant 0 : index
    %132 = vector.load %arg35[%c48_100, %c0_101] : memref<72x80xf32, #tpu.memory_space<vmem>>, vector<8x80xf32>
    tpu.vector_store %arg35[%c48_100, %c0_101], %131 {strides = array<i32>} : memref<72x80xf32, #tpu.memory_space<vmem>>, vector<8x80xf32>,
    %133 = vector.extract_strided_slice %118 {offsets = [0, 21], sizes = [8, 80], strides = [1, 1]} : vector<8x102xf32> to vector<8x80xf32>
    %c56_102 = arith.constant 56 : index
    %c0_103 = arith.constant 0 : index
    %134 = vector.load %arg35[%c56_102, %c0_103] : memref<72x80xf32, #tpu.memory_space<vmem>>, vector<8x80xf32>
    tpu.vector_store %arg35[%c56_102, %c0_103], %133 {strides = array<i32>} : memref<72x80xf32, #tpu.memory_space<vmem>>, vector<8x80xf32>,
    %135 = vector.extract_strided_slice %118 {offsets = [0, 22], sizes = [8, 80], strides = [1, 1]} : vector<8x102xf32> to vector<8x80xf32>
    %c64_104 = arith.constant 64 : index
    %c0_105 = arith.constant 0 : index
    %136 = vector.load %arg35[%c64_104, %c0_105] : memref<72x80xf32, #tpu.memory_space<vmem>>, vector<8x80xf32>
    tpu.vector_store %arg35[%c64_104, %c0_105], %135 {strides = array<i32>} : memref<72x80xf32, #tpu.memory_space<vmem>>, vector<8x80xf32>,
    %c0_106 = arith.constant 0 : index
    %c0_107 = arith.constant 0 : index
    %137 = vector.load %arg35[%c0_106, %c0_107] : memref<72x80xf32, #tpu.memory_space<vmem>>, vector<72x80xf32>
    %138 = arith.truncf %137 : vector<72x80xf32> to vector<72x80xbf16>
    %c0_108 = arith.constant 0 : index
    %c0_109 = arith.constant 0 : index
    %139 = vector.load %arg10[%c0_108, %c0_109] : memref<16x72xbf16, #tpu.memory_space<vmem>>, vector<16x72xbf16>
    %cst_110 = arith.constant dense<0.000000e+00> : vector<16x80xf32>
    %140 = tpu.matmul %139, %138, %cst_110 {dimension_numbers = #tpu.dot_dimension_numbers<[1], [0], [0], [1], [0, 0, 1, 1], [], []>} : vector<16x72xbf16>, vector<72x80xbf16>, vector<16x80xf32> -> vector<16x80xf32>
    %c0_111 = arith.constant 0 : index
    %c0_112 = arith.constant 0 : index
    %141 = vector.load %arg11[%c0_111, %c0_112] : memref<16x1xf32, #tpu.memory_space<vmem>>, vector<16x1xf32>
    %142 = vector.broadcast %141 : vector<16x1xf32> to vector<16x80xf32>
    %143 = arith.addf %140, %142 : vector<16x80xf32>
    %cst_113 = arith.constant 0.000000e+00 : f32
    %144 = vector.broadcast %cst_113 : f32 to vector<16x80xf32>
    %145 = arith.cmpf oge, %143, %144 : vector<16x80xf32>
    %c0_114 = arith.constant 0 : index
    %c0_115 = arith.constant 0 : index
    %146 = vector.load %arg12[%c0_114, %c0_115] : memref<16x1xf32, #tpu.memory_space<vmem>>, vector<16x1xf32>
    %147 = vector.broadcast %146 : vector<16x1xf32> to vector<16x80xf32>
    %148 = arith.mulf %147, %143 : vector<16x80xf32>
    %149 = arith.select %145, %143, %148 : vector<16x80xi1>, vector<16x80xf32>
    %c0_116 = arith.constant 0 : index
    %c0_117 = arith.constant 0 : index
    %150 = vector.load %arg13[%c0_116, %c0_117] : memref<1x80xf32, #tpu.memory_space<vmem>>, vector<1x80xf32>
    %151 = vector.broadcast %150 : vector<1x80xf32> to vector<16x80xf32>
    %152 = arith.mulf %149, %151 : vector<16x80xf32>
    %cst_118 = arith.constant 0.000000e+00 : f32
    %153 = vector.broadcast %cst_118 : f32 to vector<16x11xf32>
    %c0_119 = arith.constant 0 : index
    %c0_120 = arith.constant 0 : index
    %154 = vector.load %arg30[%c0_119, %c0_120] : memref<16x102xf32, #tpu.memory_space<vmem>>, vector<16x11xf32>
    tpu.vector_store %arg30[%c0_119, %c0_120], %153 {strides = array<i32>} : memref<16x102xf32, #tpu.memory_space<vmem>>, vector<16x11xf32>,
    %cst_121 = arith.constant 0.000000e+00 : f32
    %155 = vector.broadcast %cst_121 : f32 to vector<16x11xf32>
    %c0_122 = arith.constant 0 : index
    %c91_123 = arith.constant 91 : index
    %156 = vector.load %arg30[%c0_122, %c91_123] : memref<16x102xf32, #tpu.memory_space<vmem>>, vector<16x11xf32>
    tpu.vector_store %arg30[%c0_122, %c91_123], %155 {strides = array<i32>} : memref<16x102xf32, #tpu.memory_space<vmem>>, vector<16x11xf32>,
    %c0_124 = arith.constant 0 : index
    %c11 = arith.constant 11 : index
    %157 = vector.load %arg30[%c0_124, %c11] : memref<16x102xf32, #tpu.memory_space<vmem>>, vector<16x80xf32>
    tpu.vector_store %arg30[%c0_124, %c11], %152 {strides = array<i32>} : memref<16x102xf32, #tpu.memory_space<vmem>>, vector<16x80xf32>,
    %c0_125 = arith.constant 0 : index
    %c0_126 = arith.constant 0 : index
    %158 = vector.load %arg30[%c0_125, %c0_126] : memref<16x102xf32, #tpu.memory_space<vmem>>, vector<16x102xf32>
    %159 = vector.extract_strided_slice %158 {offsets = [0, 0], sizes = [16, 80], strides = [1, 1]} : vector<16x102xf32> to vector<16x80xf32>
    %160 = arith.truncf %159 : vector<16x80xf32> to vector<16x80xbf16>
    %c0_127 = arith.constant 0 : index
    %c0_128 = arith.constant 0 : index
    %161 = vector.load %arg36[%c0_127, %c0_128] : memref<144x80xbf16, #tpu.memory_space<vmem>>, vector<16x80xbf16>
    tpu.vector_store %arg36[%c0_127, %c0_128], %160 {strides = array<i32>} : memref<144x80xbf16, #tpu.memory_space<vmem>>, vector<16x80xbf16>,
    %162 = vector.extract_strided_slice %158 {offsets = [0, 1], sizes = [16, 80], strides = [1, 1]} : vector<16x102xf32> to vector<16x80xf32>
    %163 = arith.truncf %162 : vector<16x80xf32> to vector<16x80xbf16>
    %c16_129 = arith.constant 16 : index
    %c0_130 = arith.constant 0 : index
    %164 = vector.load %arg36[%c16_129, %c0_130] : memref<144x80xbf16, #tpu.memory_space<vmem>>, vector<16x80xbf16>
    tpu.vector_store %arg36[%c16_129, %c0_130], %163 {strides = array<i32>} : memref<144x80xbf16, #tpu.memory_space<vmem>>, vector<16x80xbf16>,
    %165 = vector.extract_strided_slice %158 {offsets = [0, 2], sizes = [16, 80], strides = [1, 1]} : vector<16x102xf32> to vector<16x80xf32>
    %166 = arith.truncf %165 : vector<16x80xf32> to vector<16x80xbf16>
    %c32_131 = arith.constant 32 : index
    %c0_132 = arith.constant 0 : index
    %167 = vector.load %arg36[%c32_131, %c0_132] : memref<144x80xbf16, #tpu.memory_space<vmem>>, vector<16x80xbf16>
    tpu.vector_store %arg36[%c32_131, %c0_132], %166 {strides = array<i32>} : memref<144x80xbf16, #tpu.memory_space<vmem>>, vector<16x80xbf16>,
    %168 = vector.extract_strided_slice %158 {offsets = [0, 10], sizes = [16, 80], strides = [1, 1]} : vector<16x102xf32> to vector<16x80xf32>
    %169 = arith.truncf %168 : vector<16x80xf32> to vector<16x80xbf16>
    %c48_133 = arith.constant 48 : index
    %c0_134 = arith.constant 0 : index
    %170 = vector.load %arg36[%c48_133, %c0_134] : memref<144x80xbf16, #tpu.memory_space<vmem>>, vector<16x80xbf16>
    tpu.vector_store %arg36[%c48_133, %c0_134], %169 {strides = array<i32>} : memref<144x80xbf16, #tpu.memory_space<vmem>>, vector<16x80xbf16>,
    %171 = vector.extract_strided_slice %158 {offsets = [0, 11], sizes = [16, 80], strides = [1, 1]} : vector<16x102xf32> to vector<16x80xf32>
    %172 = arith.truncf %171 : vector<16x80xf32> to vector<16x80xbf16>
    %c64_135 = arith.constant 64 : index
    %c0_136 = arith.constant 0 : index
    %173 = vector.load %arg36[%c64_135, %c0_136] : memref<144x80xbf16, #tpu.memory_space<vmem>>, vector<16x80xbf16>
    tpu.vector_store %arg36[%c64_135, %c0_136], %172 {strides = array<i32>} : memref<144x80xbf16, #tpu.memory_space<vmem>>, vector<16x80xbf16>,
    %174 = vector.extract_strided_slice %158 {offsets = [0, 12], sizes = [16, 80], strides = [1, 1]} : vector<16x102xf32> to vector<16x80xf32>
    %175 = arith.truncf %174 : vector<16x80xf32> to vector<16x80xbf16>
    %c80 = arith.constant 80 : index
    %c0_137 = arith.constant 0 : index
    %176 = vector.load %arg36[%c80, %c0_137] : memref<144x80xbf16, #tpu.memory_space<vmem>>, vector<16x80xbf16>
    tpu.vector_store %arg36[%c80, %c0_137], %175 {strides = array<i32>} : memref<144x80xbf16, #tpu.memory_space<vmem>>, vector<16x80xbf16>,
    %177 = vector.extract_strided_slice %158 {offsets = [0, 20], sizes = [16, 80], strides = [1, 1]} : vector<16x102xf32> to vector<16x80xf32>
    %178 = arith.truncf %177 : vector<16x80xf32> to vector<16x80xbf16>
    %c96 = arith.constant 96 : index
    %c0_138 = arith.constant 0 : index
    %179 = vector.load %arg36[%c96, %c0_138] : memref<144x80xbf16, #tpu.memory_space<vmem>>, vector<16x80xbf16>
    tpu.vector_store %arg36[%c96, %c0_138], %178 {strides = array<i32>} : memref<144x80xbf16, #tpu.memory_space<vmem>>, vector<16x80xbf16>,
    %180 = vector.extract_strided_slice %158 {offsets = [0, 21], sizes = [16, 80], strides = [1, 1]} : vector<16x102xf32> to vector<16x80xf32>
    %181 = arith.truncf %180 : vector<16x80xf32> to vector<16x80xbf16>
    %c112 = arith.constant 112 : index
    %c0_139 = arith.constant 0 : index
    %182 = vector.load %arg36[%c112, %c0_139] : memref<144x80xbf16, #tpu.memory_space<vmem>>, vector<16x80xbf16>
    tpu.vector_store %arg36[%c112, %c0_139], %181 {strides = array<i32>} : memref<144x80xbf16, #tpu.memory_space<vmem>>, vector<16x80xbf16>,
    %183 = vector.extract_strided_slice %158 {offsets = [0, 22], sizes = [16, 80], strides = [1, 1]} : vector<16x102xf32> to vector<16x80xf32>
    %184 = arith.truncf %183 : vector<16x80xf32> to vector<16x80xbf16>
    %c128 = arith.constant 128 : index
    %c0_140 = arith.constant 0 : index
    %185 = vector.load %arg36[%c128, %c0_140] : memref<144x80xbf16, #tpu.memory_space<vmem>>, vector<16x80xbf16>
    tpu.vector_store %arg36[%c128, %c0_140], %184 {strides = array<i32>} : memref<144x80xbf16, #tpu.memory_space<vmem>>, vector<16x80xbf16>,
    %c0_141 = arith.constant 0 : index
    %c0_142 = arith.constant 0 : index
    %186 = vector.load %arg36[%c0_141, %c0_142] : memref<144x80xbf16, #tpu.memory_space<vmem>>, vector<144x80xbf16>
    %c0_143 = arith.constant 0 : index
    %c0_144 = arith.constant 0 : index
    %187 = vector.load %arg14[%c0_143, %c0_144] : memref<16x144xbf16, #tpu.memory_space<vmem>>, vector<16x144xbf16>
    %cst_145 = arith.constant dense<0.000000e+00> : vector<16x80xf32>
    %188 = tpu.matmul %187, %186, %cst_145 {dimension_numbers = #tpu.dot_dimension_numbers<[1], [0], [0], [1], [0, 0, 1, 1], [], []>} : vector<16x144xbf16>, vector<144x80xbf16>, vector<16x80xf32> -> vector<16x80xf32>
    %c0_146 = arith.constant 0 : index
    %c0_147 = arith.constant 0 : index
    %189 = vector.load %arg15[%c0_146, %c0_147] : memref<16x1xf32, #tpu.memory_space<vmem>>, vector<16x1xf32>
    %190 = vector.broadcast %189 : vector<16x1xf32> to vector<16x80xf32>
    %191 = arith.addf %188, %190 : vector<16x80xf32>
    %cst_148 = arith.constant 0.000000e+00 : f32
    %192 = vector.broadcast %cst_148 : f32 to vector<16x80xf32>
    %193 = arith.cmpf oge, %191, %192 : vector<16x80xf32>
    %c0_149 = arith.constant 0 : index
    %c0_150 = arith.constant 0 : index
    %194 = vector.load %arg16[%c0_149, %c0_150] : memref<16x1xf32, #tpu.memory_space<vmem>>, vector<16x1xf32>
    %195 = vector.broadcast %194 : vector<16x1xf32> to vector<16x80xf32>
    %196 = arith.mulf %195, %191 : vector<16x80xf32>
    %197 = arith.select %193, %191, %196 : vector<16x80xi1>, vector<16x80xf32>
    %198 = vector.extract_strided_slice %197 {offsets = [0, 0], sizes = [16, 69], strides = [1, 1]} : vector<16x80xf32> to vector<16x69xf32>
    %199 = vector.extract_strided_slice %197 {offsets = [0, 1], sizes = [16, 69], strides = [1, 1]} : vector<16x80xf32> to vector<16x69xf32>
    %200 = arith.maximumf %198, %199 : vector<16x69xf32>
    %201 = vector.extract_strided_slice %197 {offsets = [0, 10], sizes = [16, 69], strides = [1, 1]} : vector<16x80xf32> to vector<16x69xf32>
    %202 = vector.extract_strided_slice %197 {offsets = [0, 11], sizes = [16, 69], strides = [1, 1]} : vector<16x80xf32> to vector<16x69xf32>
    %203 = arith.maximumf %201, %202 : vector<16x69xf32>
    %204 = arith.maximumf %200, %203 : vector<16x69xf32>
    %c0_151 = arith.constant 0 : index
    %c0_152 = arith.constant 0 : index
    %205 = vector.load %arg17[%c0_151, %c0_152] : memref<69x38xf32, #tpu.memory_space<vmem>>, vector<69x38xf32>
    %cst_153 = arith.constant dense<0.000000e+00> : vector<16x38xf32>
    %206 = tpu.matmul %204, %205, %cst_153 {dimension_numbers = #tpu.dot_dimension_numbers<[1], [0], [0], [1], [0, 0, 1, 1], [], []>} : vector<16x69xf32>, vector<69x38xf32>, vector<16x38xf32> -> vector<16x38xf32>
    %c0_154 = arith.constant 0 : index
    %c0_155 = arith.constant 0 : index
    %207 = vector.load %arg31[%c0_154, %c0_155] : memref<16x38xf32, #tpu.memory_space<vmem>>, vector<16x38xf32>
    tpu.vector_store %arg31[%c0_154, %c0_155], %206 {strides = array<i32>} : memref<16x38xf32, #tpu.memory_space<vmem>>, vector<16x38xf32>,
    %c0_156 = arith.constant 0 : index
    %c0_157 = arith.constant 0 : index
    %208 = vector.load %arg31[%c0_156, %c0_157] : memref<16x38xf32, #tpu.memory_space<vmem>>, vector<16x38xf32>
    %209 = vector.extract_strided_slice %208 {offsets = [0, 0], sizes = [16, 24], strides = [1, 1]} : vector<16x38xf32> to vector<16x24xf32>
    %210 = arith.truncf %209 : vector<16x24xf32> to vector<16x24xbf16>
    %c0_158 = arith.constant 0 : index
    %c0_159 = arith.constant 0 : index
    %211 = vector.load %arg37[%c0_158, %c0_159] : memref<144x24xbf16, #tpu.memory_space<vmem>>, vector<16x24xbf16>
    tpu.vector_store %arg37[%c0_158, %c0_159], %210 {strides = array<i32>} : memref<144x24xbf16, #tpu.memory_space<vmem>>, vector<16x24xbf16>,
    %212 = vector.extract_strided_slice %208 {offsets = [0, 1], sizes = [16, 24], strides = [1, 1]} : vector<16x38xf32> to vector<16x24xf32>
    %213 = arith.truncf %212 : vector<16x24xf32> to vector<16x24xbf16>
    %c16_160 = arith.constant 16 : index
    %c0_161 = arith.constant 0 : index
    %214 = vector.load %arg37[%c16_160, %c0_161] : memref<144x24xbf16, #tpu.memory_space<vmem>>, vector<16x24xbf16>
    tpu.vector_store %arg37[%c16_160, %c0_161], %213 {strides = array<i32>} : memref<144x24xbf16, #tpu.memory_space<vmem>>, vector<16x24xbf16>,
    %215 = vector.extract_strided_slice %208 {offsets = [0, 2], sizes = [16, 24], strides = [1, 1]} : vector<16x38xf32> to vector<16x24xf32>
    %216 = arith.truncf %215 : vector<16x24xf32> to vector<16x24xbf16>
    %c32_162 = arith.constant 32 : index
    %c0_163 = arith.constant 0 : index
    %217 = vector.load %arg37[%c32_162, %c0_163] : memref<144x24xbf16, #tpu.memory_space<vmem>>, vector<16x24xbf16>
    tpu.vector_store %arg37[%c32_162, %c0_163], %216 {strides = array<i32>} : memref<144x24xbf16, #tpu.memory_space<vmem>>, vector<16x24xbf16>,
    %218 = vector.extract_strided_slice %208 {offsets = [0, 6], sizes = [16, 24], strides = [1, 1]} : vector<16x38xf32> to vector<16x24xf32>
    %219 = arith.truncf %218 : vector<16x24xf32> to vector<16x24xbf16>
    %c48_164 = arith.constant 48 : index
    %c0_165 = arith.constant 0 : index
    %220 = vector.load %arg37[%c48_164, %c0_165] : memref<144x24xbf16, #tpu.memory_space<vmem>>, vector<16x24xbf16>
    tpu.vector_store %arg37[%c48_164, %c0_165], %219 {strides = array<i32>} : memref<144x24xbf16, #tpu.memory_space<vmem>>, vector<16x24xbf16>,
    %221 = vector.extract_strided_slice %208 {offsets = [0, 7], sizes = [16, 24], strides = [1, 1]} : vector<16x38xf32> to vector<16x24xf32>
    %222 = arith.truncf %221 : vector<16x24xf32> to vector<16x24xbf16>
    %c64_166 = arith.constant 64 : index
    %c0_167 = arith.constant 0 : index
    %223 = vector.load %arg37[%c64_166, %c0_167] : memref<144x24xbf16, #tpu.memory_space<vmem>>, vector<16x24xbf16>
    tpu.vector_store %arg37[%c64_166, %c0_167], %222 {strides = array<i32>} : memref<144x24xbf16, #tpu.memory_space<vmem>>, vector<16x24xbf16>,
    %224 = vector.extract_strided_slice %208 {offsets = [0, 8], sizes = [16, 24], strides = [1, 1]} : vector<16x38xf32> to vector<16x24xf32>
    %225 = arith.truncf %224 : vector<16x24xf32> to vector<16x24xbf16>
    %c80_168 = arith.constant 80 : index
    %c0_169 = arith.constant 0 : index
    %226 = vector.load %arg37[%c80_168, %c0_169] : memref<144x24xbf16, #tpu.memory_space<vmem>>, vector<16x24xbf16>
    tpu.vector_store %arg37[%c80_168, %c0_169], %225 {strides = array<i32>} : memref<144x24xbf16, #tpu.memory_space<vmem>>, vector<16x24xbf16>,
    %227 = vector.extract_strided_slice %208 {offsets = [0, 12], sizes = [16, 24], strides = [1, 1]} : vector<16x38xf32> to vector<16x24xf32>
    %228 = arith.truncf %227 : vector<16x24xf32> to vector<16x24xbf16>
    %c96_170 = arith.constant 96 : index
    %c0_171 = arith.constant 0 : index
    %229 = vector.load %arg37[%c96_170, %c0_171] : memref<144x24xbf16, #tpu.memory_space<vmem>>, vector<16x24xbf16>
    tpu.vector_store %arg37[%c96_170, %c0_171], %228 {strides = array<i32>} : memref<144x24xbf16, #tpu.memory_space<vmem>>, vector<16x24xbf16>,
    %230 = vector.extract_strided_slice %208 {offsets = [0, 13], sizes = [16, 24], strides = [1, 1]} : vector<16x38xf32> to vector<16x24xf32>
    %231 = arith.truncf %230 : vector<16x24xf32> to vector<16x24xbf16>
    %c112_172 = arith.constant 112 : index
    %c0_173 = arith.constant 0 : index
    %232 = vector.load %arg37[%c112_172, %c0_173] : memref<144x24xbf16, #tpu.memory_space<vmem>>, vector<16x24xbf16>
    tpu.vector_store %arg37[%c112_172, %c0_173], %231 {strides = array<i32>} : memref<144x24xbf16, #tpu.memory_space<vmem>>, vector<16x24xbf16>,
    %233 = vector.extract_strided_slice %208 {offsets = [0, 14], sizes = [16, 24], strides = [1, 1]} : vector<16x38xf32> to vector<16x24xf32>
    %234 = arith.truncf %233 : vector<16x24xf32> to vector<16x24xbf16>
    %c128_174 = arith.constant 128 : index
    %c0_175 = arith.constant 0 : index
    %235 = vector.load %arg37[%c128_174, %c0_175] : memref<144x24xbf16, #tpu.memory_space<vmem>>, vector<16x24xbf16>
    tpu.vector_store %arg37[%c128_174, %c0_175], %234 {strides = array<i32>} : memref<144x24xbf16, #tpu.memory_space<vmem>>, vector<16x24xbf16>,
    %c0_176 = arith.constant 0 : index
    %c0_177 = arith.constant 0 : index
    %236 = vector.load %arg37[%c0_176, %c0_177] : memref<144x24xbf16, #tpu.memory_space<vmem>>, vector<144x24xbf16>
    %c0_178 = arith.constant 0 : index
    %c0_179 = arith.constant 0 : index
    %237 = vector.load %arg18[%c0_178, %c0_179] : memref<32x144xbf16, #tpu.memory_space<vmem>>, vector<32x144xbf16>
    %cst_180 = arith.constant dense<0.000000e+00> : vector<32x24xf32>
    %238 = tpu.matmul %237, %236, %cst_180 {dimension_numbers = #tpu.dot_dimension_numbers<[1], [0], [0], [1], [0, 0, 1, 1], [], []>} : vector<32x144xbf16>, vector<144x24xbf16>, vector<32x24xf32> -> vector<32x24xf32>
    %c0_181 = arith.constant 0 : index
    %c0_182 = arith.constant 0 : index
    %239 = vector.load %arg19[%c0_181, %c0_182] : memref<32x1xf32, #tpu.memory_space<vmem>>, vector<32x1xf32>
    %240 = vector.broadcast %239 : vector<32x1xf32> to vector<32x24xf32>
    %241 = arith.addf %238, %240 : vector<32x24xf32>
    %cst_183 = arith.constant 0.000000e+00 : f32
    %242 = vector.broadcast %cst_183 : f32 to vector<32x24xf32>
    %243 = arith.cmpf oge, %241, %242 : vector<32x24xf32>
    %c0_184 = arith.constant 0 : index
    %c0_185 = arith.constant 0 : index
    %244 = vector.load %arg20[%c0_184, %c0_185] : memref<32x1xf32, #tpu.memory_space<vmem>>, vector<32x1xf32>
    %245 = vector.broadcast %244 : vector<32x1xf32> to vector<32x24xf32>
    %246 = arith.mulf %245, %241 : vector<32x24xf32>
    %247 = arith.select %243, %241, %246 : vector<32x24xi1>, vector<32x24xf32>
    %c0_186 = arith.constant 0 : index
    %c0_187 = arith.constant 0 : index
    %248 = vector.load %arg21[%c0_186, %c0_187] : memref<1x24xf32, #tpu.memory_space<vmem>>, vector<1x24xf32>
    %249 = vector.broadcast %248 : vector<1x24xf32> to vector<32x24xf32>
    %250 = arith.mulf %247, %249 : vector<32x24xf32>
    %cst_188 = arith.constant 0.000000e+00 : f32
    %251 = vector.broadcast %cst_188 : f32 to vector<32x7xf32>
    %c0_189 = arith.constant 0 : index
    %c0_190 = arith.constant 0 : index
    %252 = vector.load %arg32[%c0_189, %c0_190] : memref<32x38xf32, #tpu.memory_space<vmem>>, vector<32x7xf32>
    tpu.vector_store %arg32[%c0_189, %c0_190], %251 {strides = array<i32>} : memref<32x38xf32, #tpu.memory_space<vmem>>, vector<32x7xf32>,
    %cst_191 = arith.constant 0.000000e+00 : f32
    %253 = vector.broadcast %cst_191 : f32 to vector<32x7xf32>
    %c0_192 = arith.constant 0 : index
    %c31 = arith.constant 31 : index
    %254 = vector.load %arg32[%c0_192, %c31] : memref<32x38xf32, #tpu.memory_space<vmem>>, vector<32x7xf32>
    tpu.vector_store %arg32[%c0_192, %c31], %253 {strides = array<i32>} : memref<32x38xf32, #tpu.memory_space<vmem>>, vector<32x7xf32>,
    %c0_193 = arith.constant 0 : index
    %c7 = arith.constant 7 : index
    %255 = vector.load %arg32[%c0_193, %c7] : memref<32x38xf32, #tpu.memory_space<vmem>>, vector<32x24xf32>
    tpu.vector_store %arg32[%c0_193, %c7], %250 {strides = array<i32>} : memref<32x38xf32, #tpu.memory_space<vmem>>, vector<32x24xf32>,
    %c0_194 = arith.constant 0 : index
    %c0_195 = arith.constant 0 : index
    %256 = vector.load %arg32[%c0_194, %c0_195] : memref<32x38xf32, #tpu.memory_space<vmem>>, vector<32x38xf32>
    %257 = vector.extract_strided_slice %256 {offsets = [0, 0], sizes = [32, 24], strides = [1, 1]} : vector<32x38xf32> to vector<32x24xf32>
    %258 = arith.truncf %257 : vector<32x24xf32> to vector<32x24xbf16>
    %c0_196 = arith.constant 0 : index
    %c0_197 = arith.constant 0 : index
    %259 = vector.load %arg38[%c0_196, %c0_197] : memref<288x24xbf16, #tpu.memory_space<vmem>>, vector<32x24xbf16>
    tpu.vector_store %arg38[%c0_196, %c0_197], %258 {strides = array<i32>} : memref<288x24xbf16, #tpu.memory_space<vmem>>, vector<32x24xbf16>,
    %260 = vector.extract_strided_slice %256 {offsets = [0, 1], sizes = [32, 24], strides = [1, 1]} : vector<32x38xf32> to vector<32x24xf32>
    %261 = arith.truncf %260 : vector<32x24xf32> to vector<32x24xbf16>
    %c32_198 = arith.constant 32 : index
    %c0_199 = arith.constant 0 : index
    %262 = vector.load %arg38[%c32_198, %c0_199] : memref<288x24xbf16, #tpu.memory_space<vmem>>, vector<32x24xbf16>
    tpu.vector_store %arg38[%c32_198, %c0_199], %261 {strides = array<i32>} : memref<288x24xbf16, #tpu.memory_space<vmem>>, vector<32x24xbf16>,
    %263 = vector.extract_strided_slice %256 {offsets = [0, 2], sizes = [32, 24], strides = [1, 1]} : vector<32x38xf32> to vector<32x24xf32>
    %264 = arith.truncf %263 : vector<32x24xf32> to vector<32x24xbf16>
    %c64_200 = arith.constant 64 : index
    %c0_201 = arith.constant 0 : index
    %265 = vector.load %arg38[%c64_200, %c0_201] : memref<288x24xbf16, #tpu.memory_space<vmem>>, vector<32x24xbf16>
    tpu.vector_store %arg38[%c64_200, %c0_201], %264 {strides = array<i32>} : memref<288x24xbf16, #tpu.memory_space<vmem>>, vector<32x24xbf16>,
    %266 = vector.extract_strided_slice %256 {offsets = [0, 6], sizes = [32, 24], strides = [1, 1]} : vector<32x38xf32> to vector<32x24xf32>
    %267 = arith.truncf %266 : vector<32x24xf32> to vector<32x24xbf16>
    %c96_202 = arith.constant 96 : index
    %c0_203 = arith.constant 0 : index
    %268 = vector.load %arg38[%c96_202, %c0_203] : memref<288x24xbf16, #tpu.memory_space<vmem>>, vector<32x24xbf16>
    tpu.vector_store %arg38[%c96_202, %c0_203], %267 {strides = array<i32>} : memref<288x24xbf16, #tpu.memory_space<vmem>>, vector<32x24xbf16>,
    %269 = vector.extract_strided_slice %256 {offsets = [0, 7], sizes = [32, 24], strides = [1, 1]} : vector<32x38xf32> to vector<32x24xf32>
    %270 = arith.truncf %269 : vector<32x24xf32> to vector<32x24xbf16>
    %c128_204 = arith.constant 128 : index
    %c0_205 = arith.constant 0 : index
    %271 = vector.load %arg38[%c128_204, %c0_205] : memref<288x24xbf16, #tpu.memory_space<vmem>>, vector<32x24xbf16>
    tpu.vector_store %arg38[%c128_204, %c0_205], %270 {strides = array<i32>} : memref<288x24xbf16, #tpu.memory_space<vmem>>, vector<32x24xbf16>,
    %272 = vector.extract_strided_slice %256 {offsets = [0, 8], sizes = [32, 24], strides = [1, 1]} : vector<32x38xf32> to vector<32x24xf32>
    %273 = arith.truncf %272 : vector<32x24xf32> to vector<32x24xbf16>
    %c160 = arith.constant 160 : index
    %c0_206 = arith.constant 0 : index
    %274 = vector.load %arg38[%c160, %c0_206] : memref<288x24xbf16, #tpu.memory_space<vmem>>, vector<32x24xbf16>
    tpu.vector_store %arg38[%c160, %c0_206], %273 {strides = array<i32>} : memref<288x24xbf16, #tpu.memory_space<vmem>>, vector<32x24xbf16>,
    %275 = vector.extract_strided_slice %256 {offsets = [0, 12], sizes = [32, 24], strides = [1, 1]} : vector<32x38xf32> to vector<32x24xf32>
    %276 = arith.truncf %275 : vector<32x24xf32> to vector<32x24xbf16>
    %c192 = arith.constant 192 : index
    %c0_207 = arith.constant 0 : index
    %277 = vector.load %arg38[%c192, %c0_207] : memref<288x24xbf16, #tpu.memory_space<vmem>>, vector<32x24xbf16>
    tpu.vector_store %arg38[%c192, %c0_207], %276 {strides = array<i32>} : memref<288x24xbf16, #tpu.memory_space<vmem>>, vector<32x24xbf16>,
    %278 = vector.extract_strided_slice %256 {offsets = [0, 13], sizes = [32, 24], strides = [1, 1]} : vector<32x38xf32> to vector<32x24xf32>
    %279 = arith.truncf %278 : vector<32x24xf32> to vector<32x24xbf16>
    %c224 = arith.constant 224 : index
    %c0_208 = arith.constant 0 : index
    %280 = vector.load %arg38[%c224, %c0_208] : memref<288x24xbf16, #tpu.memory_space<vmem>>, vector<32x24xbf16>
    tpu.vector_store %arg38[%c224, %c0_208], %279 {strides = array<i32>} : memref<288x24xbf16, #tpu.memory_space<vmem>>, vector<32x24xbf16>,
    %281 = vector.extract_strided_slice %256 {offsets = [0, 14], sizes = [32, 24], strides = [1, 1]} : vector<32x38xf32> to vector<32x24xf32>
    %282 = arith.truncf %281 : vector<32x24xf32> to vector<32x24xbf16>
    %c256 = arith.constant 256 : index
    %c0_209 = arith.constant 0 : index
    %283 = vector.load %arg38[%c256, %c0_209] : memref<288x24xbf16, #tpu.memory_space<vmem>>, vector<32x24xbf16>
    tpu.vector_store %arg38[%c256, %c0_209], %282 {strides = array<i32>} : memref<288x24xbf16, #tpu.memory_space<vmem>>, vector<32x24xbf16>,
    %c0_210 = arith.constant 0 : index
    %c0_211 = arith.constant 0 : index
    %284 = vector.load %arg38[%c0_210, %c0_211] : memref<288x24xbf16, #tpu.memory_space<vmem>>, vector<288x24xbf16>
    %c0_212 = arith.constant 0 : index
    %c0_213 = arith.constant 0 : index
    %285 = vector.load %arg22[%c0_212, %c0_213] : memref<32x288xbf16, #tpu.memory_space<vmem>>, vector<32x288xbf16>
    %cst_214 = arith.constant dense<0.000000e+00> : vector<32x24xf32>
    %286 = tpu.matmul %285, %284, %cst_214 {dimension_numbers = #tpu.dot_dimension_numbers<[1], [0], [0], [1], [0, 0, 1, 1], [], []>} : vector<32x288xbf16>, vector<288x24xbf16>, vector<32x24xf32> -> vector<32x24xf32>
    %c0_215 = arith.constant 0 : index
    %c0_216 = arith.constant 0 : index
    %287 = vector.load %arg23[%c0_215, %c0_216] : memref<32x1xf32, #tpu.memory_space<vmem>>, vector<32x1xf32>
    %288 = vector.broadcast %287 : vector<32x1xf32> to vector<32x24xf32>
    %289 = arith.addf %286, %288 : vector<32x24xf32>
    %cst_217 = arith.constant 0.000000e+00 : f32
    %290 = vector.broadcast %cst_217 : f32 to vector<32x24xf32>
    %291 = arith.cmpf oge, %289, %290 : vector<32x24xf32>
    %c0_218 = arith.constant 0 : index
    %c0_219 = arith.constant 0 : index
    %292 = vector.load %arg24[%c0_218, %c0_219] : memref<32x1xf32, #tpu.memory_space<vmem>>, vector<32x1xf32>
    %293 = vector.broadcast %292 : vector<32x1xf32> to vector<32x24xf32>
    %294 = arith.mulf %293, %289 : vector<32x24xf32>
    %295 = arith.select %291, %289, %294 : vector<32x24xi1>, vector<32x24xf32>
    %296 = vector.extract_strided_slice %295 {offsets = [0, 0], sizes = [32, 17], strides = [1, 1]} : vector<32x24xf32> to vector<32x17xf32>
    %297 = vector.extract_strided_slice %295 {offsets = [0, 1], sizes = [32, 17], strides = [1, 1]} : vector<32x24xf32> to vector<32x17xf32>
    %298 = arith.maximumf %296, %297 : vector<32x17xf32>
    %299 = vector.extract_strided_slice %295 {offsets = [0, 6], sizes = [32, 17], strides = [1, 1]} : vector<32x24xf32> to vector<32x17xf32>
    %300 = vector.extract_strided_slice %295 {offsets = [0, 7], sizes = [32, 17], strides = [1, 1]} : vector<32x24xf32> to vector<32x17xf32>
    %301 = arith.maximumf %299, %300 : vector<32x17xf32>
    %302 = arith.maximumf %298, %301 : vector<32x17xf32>
    %c0_220 = arith.constant 0 : index
    %c0_221 = arith.constant 0 : index
    %303 = vector.load %arg25[%c0_220, %c0_221] : memref<17x4xf32, #tpu.memory_space<vmem>>, vector<17x4xf32>
    %cst_222 = arith.constant dense<0.000000e+00> : vector<32x4xf32>
    %304 = tpu.matmul %302, %303, %cst_222 {dimension_numbers = #tpu.dot_dimension_numbers<[1], [0], [0], [1], [0, 0, 1, 1], [], []>} : vector<32x17xf32>, vector<17x4xf32>, vector<32x4xf32> -> vector<32x4xf32>
    %c0_223 = arith.constant 0 : index
    %c0_224 = arith.constant 0 : index
    %c0_225 = arith.constant 0 : index
    %305 = vector.load %arg26[%c0_223, %c0_224, %c0_225] : memref<1x32x4xf32, #tpu.memory_space<vmem>>, vector<1x32x4xf32>
    %306 = vector.shape_cast %305 : vector<1x32x4xf32> to vector<32x4xf32>
    %307 = vector.shape_cast %304 : vector<32x4xf32> to vector<1x32x4xf32>
    tpu.vector_store %arg26[%c0_223, %c0_224, %c0_225], %307 {strides = array<i32>} : memref<1x32x4xf32, #tpu.memory_space<vmem>>, vector<1x32x4xf32>,
    return
  }
  func.func @transform_0(%arg0: i32) -> (i32, i32, i32) {
    %c0_i32 = arith.constant 0 : i32
    %c0_i32_0 = arith.constant 0 : i32
    %c0_i32_1 = arith.constant 0 : i32
    return %arg0, %c0_i32, %c0_i32_0 : i32, i32, i32
  }
  func.func @transform_1(%arg0: i32) -> (i32, i32) {
    %c0_i32 = arith.constant 0 : i32
    %c0_i32_0 = arith.constant 0 : i32
    %c0_i32_1 = arith.constant 0 : i32
    return %c0_i32, %c0_i32_0 : i32, i32
  }
  func.func @transform_2(%arg0: i32) -> (i32, i32) {
    %c0_i32 = arith.constant 0 : i32
    %c0_i32_0 = arith.constant 0 : i32
    %c0_i32_1 = arith.constant 0 : i32
    return %c0_i32, %c0_i32_0 : i32, i32
  }
  func.func @transform_3(%arg0: i32) -> (i32, i32) {
    %c0_i32 = arith.constant 0 : i32
    %c0_i32_0 = arith.constant 0 : i32
    %c0_i32_1 = arith.constant 0 : i32
    return %c0_i32, %c0_i32_0 : i32, i32
  }
  func.func @transform_4(%arg0: i32) -> (i32, i32) {
    %c0_i32 = arith.constant 0 : i32
    %c0_i32_0 = arith.constant 0 : i32
    %c0_i32_1 = arith.constant 0 : i32
    return %c0_i32, %c0_i32_0 : i32, i32
  }
  func.func @transform_5(%arg0: i32) -> (i32, i32) {
    %c0_i32 = arith.constant 0 : i32
    %c0_i32_0 = arith.constant 0 : i32
    %c0_i32_1 = arith.constant 0 : i32
    return %c0_i32, %c0_i32_0 : i32, i32
  }
  func.func @transform_6(%arg0: i32) -> (i32, i32) {
    %c0_i32 = arith.constant 0 : i32
    %c0_i32_0 = arith.constant 0 : i32
    %c0_i32_1 = arith.constant 0 : i32
    return %c0_i32, %c0_i32_0 : i32, i32
  }
  func.func @transform_7(%arg0: i32) -> (i32, i32) {
    %c0_i32 = arith.constant 0 : i32
    %c0_i32_0 = arith.constant 0 : i32
    %c0_i32_1 = arith.constant 0 : i32
    return %c0_i32, %c0_i32_0 : i32, i32
  }
  func.func @transform_8(%arg0: i32) -> (i32, i32) {
    %c0_i32 = arith.constant 0 : i32
    %c0_i32_0 = arith.constant 0 : i32
    %c0_i32_1 = arith.constant 0 : i32
    return %c0_i32, %c0_i32_0 : i32, i32
  }
  func.func @transform_9(%arg0: i32) -> (i32, i32) {
    %c0_i32 = arith.constant 0 : i32
    %c0_i32_0 = arith.constant 0 : i32
    %c0_i32_1 = arith.constant 0 : i32
    return %c0_i32, %c0_i32_0 : i32, i32
  }
  func.func @transform_10(%arg0: i32) -> (i32, i32) {
    %c0_i32 = arith.constant 0 : i32
    %c0_i32_0 = arith.constant 0 : i32
    %c0_i32_1 = arith.constant 0 : i32
    return %c0_i32, %c0_i32_0 : i32, i32
  }
  func.func @transform_11(%arg0: i32) -> (i32, i32) {
    %c0_i32 = arith.constant 0 : i32
    %c0_i32_0 = arith.constant 0 : i32
    %c0_i32_1 = arith.constant 0 : i32
    return %c0_i32, %c0_i32_0 : i32, i32
  }
  func.func @transform_12(%arg0: i32) -> (i32, i32) {
    %c0_i32 = arith.constant 0 : i32
    %c0_i32_0 = arith.constant 0 : i32
    %c0_i32_1 = arith.constant 0 : i32
    return %c0_i32, %c0_i32_0 : i32, i32
  }
  func.func @transform_13(%arg0: i32) -> (i32, i32) {
    %c0_i32 = arith.constant 0 : i32
    %c0_i32_0 = arith.constant 0 : i32
    %c0_i32_1 = arith.constant 0 : i32
    return %c0_i32, %c0_i32_0 : i32, i32
  }
  func.func @transform_14(%arg0: i32) -> (i32, i32) {
    %c0_i32 = arith.constant 0 : i32
    %c0_i32_0 = arith.constant 0 : i32
    %c0_i32_1 = arith.constant 0 : i32
    return %c0_i32, %c0_i32_0 : i32, i32
  }
  func.func @transform_15(%arg0: i32) -> (i32, i32) {
    %c0_i32 = arith.constant 0 : i32
    %c0_i32_0 = arith.constant 0 : i32
    %c0_i32_1 = arith.constant 0 : i32
    return %c0_i32, %c0_i32_0 : i32, i32
  }
  func.func @transform_16(%arg0: i32) -> (i32, i32) {
    %c0_i32 = arith.constant 0 : i32
    %c0_i32_0 = arith.constant 0 : i32
    %c0_i32_1 = arith.constant 0 : i32
    return %c0_i32, %c0_i32_0 : i32, i32
  }
  func.func @transform_17(%arg0: i32) -> (i32, i32) {
    %c0_i32 = arith.constant 0 : i32
    %c0_i32_0 = arith.constant 0 : i32
    %c0_i32_1 = arith.constant 0 : i32
    return %c0_i32, %c0_i32_0 : i32, i32
  }
  func.func @transform_18(%arg0: i32) -> (i32, i32) {
    %c0_i32 = arith.constant 0 : i32
    %c0_i32_0 = arith.constant 0 : i32
    %c0_i32_1 = arith.constant 0 : i32
    return %c0_i32, %c0_i32_0 : i32, i32
  }
  func.func @transform_19(%arg0: i32) -> (i32, i32) {
    %c0_i32 = arith.constant 0 : i32
    %c0_i32_0 = arith.constant 0 : i32
    %c0_i32_1 = arith.constant 0 : i32
    return %c0_i32, %c0_i32_0 : i32, i32
  }
  func.func @transform_20(%arg0: i32) -> (i32, i32) {
    %c0_i32 = arith.constant 0 : i32
    %c0_i32_0 = arith.constant 0 : i32
    %c0_i32_1 = arith.constant 0 : i32
    return %c0_i32, %c0_i32_0 : i32, i32
  }
  func.func @transform_21(%arg0: i32) -> (i32, i32) {
    %c0_i32 = arith.constant 0 : i32
    %c0_i32_0 = arith.constant 0 : i32
    %c0_i32_1 = arith.constant 0 : i32
    return %c0_i32, %c0_i32_0 : i32, i32
  }
  func.func @transform_22(%arg0: i32) -> (i32, i32) {
    %c0_i32 = arith.constant 0 : i32
    %c0_i32_0 = arith.constant 0 : i32
    %c0_i32_1 = arith.constant 0 : i32
    return %c0_i32, %c0_i32_0 : i32, i32
  }
  func.func @transform_23(%arg0: i32) -> (i32, i32) {
    %c0_i32 = arith.constant 0 : i32
    %c0_i32_0 = arith.constant 0 : i32
    %c0_i32_1 = arith.constant 0 : i32
    return %c0_i32, %c0_i32_0 : i32, i32
  }
  func.func @transform_24(%arg0: i32) -> (i32, i32) {
    %c0_i32 = arith.constant 0 : i32
    %c0_i32_0 = arith.constant 0 : i32
    %c0_i32_1 = arith.constant 0 : i32
    return %c0_i32, %c0_i32_0 : i32, i32
  }
  func.func @transform_25(%arg0: i32) -> (i32, i32, i32) {
    %c0_i32 = arith.constant 0 : i32
    %c0_i32_0 = arith.constant 0 : i32
    %c0_i32_1 = arith.constant 0 : i32
    return %arg0, %c0_i32, %c0_i32_0 : i32, i32, i32
  }
}

</mosaic_0001>

<llo_original>
// kernel: base_feature_forward.1
$region0: #{base_feature_forward.1}
  #allocation0 [shape = 'u32[]', space=smem, size = 0x4, offset = 0x4, fixed_abs, tag = 'smem constant byte address 0x4 - core index']
  #allocation1 [shape = 'u32[144,128]{1,0:T(1,128)}', space=vmem, size = 0x12000, scoped, tag = 'internal scratch']
  #allocation2 [shape = 'f32[8,326]{1,0:T(8,128)}', space=vmem, size = 0x3000, scoped, tag = 'scratch operand']
  #allocation3 [shape = 'f32[8,326]{1,0:T(8,128)}', space=vmem, size = 0x3000, scoped, tag = 'scratch operand']
  #allocation4 [shape = 'f32[8,102]{1,0:T(8,128)}', space=vmem, size = 0x1000, scoped, tag = 'scratch operand']
  #allocation5 [shape = 'f32[16,102]{1,0:T(8,128)}', space=vmem, size = 0x2000, scoped, tag = 'scratch operand']
  #allocation6 [shape = 'f32[16,38]{1,0:T(8,128)}', space=vmem, size = 0x2000, scoped, tag = 'scratch operand']
  #allocation7 [shape = 'f32[32,38]{1,0:T(8,128)}', space=vmem, size = 0x4000, scoped, tag = 'scratch operand']
  #allocation8 [shape = 'f32[72,288]{1,0:T(8,128)}', space=vmem, size = 0x1b000, scoped, tag = 'scratch operand']
  #allocation9 [shape = 'f32[72,288]{1,0:T(8,128)}', space=vmem, size = 0x1b000, scoped, tag = 'scratch operand']
  #allocation10 [shape = 'f32[72,80]{1,0:T(8,128)}', space=vmem, size = 0x9000, scoped, tag = 'scratch operand']
  #allocation11 [shape = 'bf16[144,80]{1,0:T(16,128)(2,1)}', space=vmem, size = 0x9000, scoped, tag = 'scratch operand']
  #allocation12 [shape = 'bf16[144,24]{1,0:T(16,128)(2,1)}', space=vmem, size = 0x9000, scoped, tag = 'scratch operand']
  #allocation13 [shape = 'bf16[288,24]{1,0:T(16,128)(2,1)}', space=vmem, size = 0x12000, scoped, tag = 'scratch operand']
  %s0 = inlined_call_operand.vmem [shape: f32[2,8,256], index: 0, kind: input, shape index: {}]
  %s1 = inlined_call_operand.vmem [shape: bf16[8,72], index: 1, kind: input, shape index: {}]
  %s2 = inlined_call_operand.vmem [shape: f32[8,1], index: 2, kind: input, shape index: {}]
  %s3 = inlined_call_operand.vmem [shape: f32[8,1], index: 3, kind: input, shape index: {}]
  %s4 = inlined_call_operand.vmem [shape: f32[1,288], index: 4, kind: input, shape index: {}]
  %s5 = inlined_call_operand.vmem [shape: bf16[8,72], index: 5, kind: input, shape index: {}]
  %s6 = inlined_call_operand.vmem [shape: f32[8,1], index: 6, kind: input, shape index: {}]
  %s7 = inlined_call_operand.vmem [shape: f32[8,1], index: 7, kind: input, shape index: {}]
  %s8 = inlined_call_operand.vmem [shape: f32[269,102], index: 8, kind: input, shape index: {}]
  %s9 = inlined_call_operand.vmem [shape: bf16[16,72], index: 9, kind: input, shape index: {}]
  %s10 = inlined_call_operand.vmem [shape: f32[16,1], index: 10, kind: input, shape index: {}]
  %s11 = inlined_call_operand.vmem [shape: f32[16,1], index: 11, kind: input, shape index: {}]
  %s12 = inlined_call_operand.vmem [shape: f32[1,80], index: 12, kind: input, shape index: {}]
  %s13 = inlined_call_operand.vmem [shape: bf16[16,144], index: 13, kind: input, shape index: {}]
  %s14 = inlined_call_operand.vmem [shape: f32[16,1], index: 14, kind: input, shape index: {}]
  %s15 = inlined_call_operand.vmem [shape: f32[16,1], index: 15, kind: input, shape index: {}]
  %s16 = inlined_call_operand.vmem [shape: f32[69,38], index: 16, kind: input, shape index: {}]
  %s17 = inlined_call_operand.vmem [shape: bf16[32,144], index: 17, kind: input, shape index: {}]
  %s18 = inlined_call_operand.vmem [shape: f32[32,1], index: 18, kind: input, shape index: {}]
  %s19 = inlined_call_operand.vmem [shape: f32[32,1], index: 19, kind: input, shape index: {}]
  %s20 = inlined_call_operand.vmem [shape: f32[1,24], index: 20, kind: input, shape index: {}]
  %s21 = inlined_call_operand.vmem [shape: bf16[32,288], index: 21, kind: input, shape index: {}]
  %s22 = inlined_call_operand.vmem [shape: f32[32,1], index: 22, kind: input, shape index: {}]
  %s23 = inlined_call_operand.vmem [shape: f32[32,1], index: 23, kind: input, shape index: {}]
  %s24 = inlined_call_operand.vmem [shape: f32[17,4], index: 24, kind: input, shape index: {}]
  %s25 = inlined_call_operand.vmem [shape: f32[2,32,4], index: 25, kind: output, shape index: {}]
  %s26 = sld [smem:[#allocation0]]
  $region133: #{base_feature_forward.1} parent=0
    _
  %s28 = ssub.s32 1, %s26
  %s29 = scalar_select 0, %s28, %s26
  loop: start=0, step=1, limit=4
  $region2: #{base_feature_forward.1} parent=0 // loop_pre_header
    _
  $region3: #{base_feature_forward.1} parent=0 // loop_header
    %s31 = sphi 0, %s35
    %p32 = scmp.ge.s32.totalorder %s31, 4
    %s41 = sphi 0, %s43
    %s44 = sphi 0, %s41
    %s45 = sphi 0, %s44
    %s61 = sphi 0, %s45
    %s65 = sphi 0, %s65
    %s67 = sphi 0, %s65
    %s68 = sphi 0, %s67
    %s82 = sphi 0, %s68
    %s86 = sphi 0, %s86
    %s88 = sphi 0, %s86
    %s89 = sphi 0, %s88
    %s103 = sphi 0, %s89
    %s107 = sphi 0, %s107
    %s109 = sphi 0, %s107
    %s110 = sphi 0, %s109
    %s124 = sphi 0, %s110
    %s128 = sphi 0, %s128
    %s130 = sphi 0, %s128
    %s131 = sphi 0, %s130
    %s145 = sphi 0, %s131
    %s149 = sphi 0, %s149
    %s151 = sphi 0, %s149
    %s152 = sphi 0, %s151
    %s166 = sphi 0, %s152
    %s170 = sphi 0, %s170
    %s172 = sphi 0, %s170
    %s173 = sphi 0, %s172
    %s187 = sphi 0, %s173
    %s191 = sphi 0, %s191
    %s193 = sphi 0, %s191
    %s194 = sphi 0, %s193
    %s208 = sphi 0, %s194
    %s212 = sphi 0, %s212
    %s214 = sphi 0, %s212
    %s215 = sphi 0, %s214
    %s229 = sphi 0, %s215
    %s233 = sphi 0, %s233
    %s235 = sphi 0, %s233
    %s236 = sphi 0, %s235
    %s250 = sphi 0, %s236
    %s254 = sphi 0, %s254
    %s256 = sphi 0, %s254
    %s257 = sphi 0, %s256
    %s271 = sphi 0, %s257
    %s275 = sphi 0, %s275
    %s277 = sphi 0, %s275
    %s278 = sphi 0, %s277
    %s292 = sphi 0, %s278
    %s296 = sphi 0, %s296
    %s298 = sphi 0, %s296
    %s299 = sphi 0, %s298
    %s313 = sphi 0, %s299
    %s317 = sphi 0, %s317
    %s319 = sphi 0, %s317
    %s320 = sphi 0, %s319
    %s334 = sphi 0, %s320
    %s338 = sphi 0, %s338
    %s340 = sphi 0, %s338
    %s341 = sphi 0, %s340
    %s355 = sphi 0, %s341
    %s359 = sphi 0, %s359
    %s361 = sphi 0, %s359
    %s362 = sphi 0, %s361
    %s376 = sphi 0, %s362
    %s380 = sphi 0, %s380
    %s382 = sphi 0, %s380
    %s383 = sphi 0, %s382
    %s397 = sphi 0, %s383
    %s401 = sphi 0, %s401
    %s403 = sphi 0, %s401
    %s404 = sphi 0, %s403
    %s418 = sphi 0, %s404
    %s422 = sphi 0, %s422
    %s424 = sphi 0, %s422
    %s425 = sphi 0, %s424
    %s439 = sphi 0, %s425
    %s443 = sphi 0, %s443
    %s445 = sphi 0, %s443
    %s446 = sphi 0, %s445
    %s460 = sphi 0, %s446
    %s464 = sphi 0, %s464
    %s466 = sphi 0, %s464
    %s467 = sphi 0, %s466
    %s481 = sphi 0, %s467
    %s485 = sphi 0, %s485
    %s487 = sphi 0, %s485
    %s488 = sphi 0, %s487
    %s502 = sphi 0, %s488
    %s506 = sphi 0, %s506
    %s508 = sphi 0, %s506
    %s509 = sphi 0, %s508
    %s523 = sphi 0, %s509
    %s527 = sphi 0, %s527
    %s529 = sphi 0, %s527
    %s530 = sphi 0, %s529
    %s544 = sphi 0, %s530
    %s548 = sphi 0, %s548
    %s550 = sphi 0, %s548
    %s551 = sphi 0, %s550
    %s565 = sphi 0, %s551
    %s571 = sphi 0, %s573
    %s574 = sphi 0, %s571
    %s575 = sphi 0, %s574
    %s591 = sphi 0, %s575
  $region4: #{base_feature_forward.1} parent=0 // loop_header_branch
    %34 = sbr.rel (%p32) target = $region8
  $region5: #{base_feature_forward.1} parent=0 // loop_body
    %s36 = ssub.s32 %s31, 1
    %s37 = ssub.s32 %s31, 2
    %s38 = sadd.s32 %s31, 1
    %s39 = ssub.s32 %s31, %s38
    %p40 = scmp.eq.s32.totalorder %s39, 0
    %s42 = sadd.s32 %s41, 1
    %s43 = scalar_select %p40, %s41, %s42
    %p46 = pneg %p40
    %p47 = scmp.eq.s32.totalorder %s31, 1
    %p48 = por %p46, %p47
    %p49 = scmp.ne.s32.totalorder %s41, %s44
    %p50 = scmp.eq.s32.totalorder %s31, 0
    %p51 = por %p49, %p50
    %p52 = scmp.ne.s32.totalorder %s41, %s44
    %p53 = scmp.eq.s32.totalorder %s36, 1
    %p54 = por %p52, %p53
    %p55 = scmp.ne.s32.totalorder %s44, %s45
    %p56 = scmp.eq.s32.totalorder %s36, 0
    %p57 = por %p55, %p56
    %p58 = scmp.ne.s32.totalorder %s44, %s45
    %p59 = scmp.eq.s32.totalorder %s37, 1
    %p60 = por %p58, %p59
    %p62 = scmp.ne.s32.totalorder %s45, %s61
    %p63 = scmp.eq.s32.totalorder %s37, 0
    %p64 = por %p62, %p63
    %s66 = sadd.s32 %s65, 1
    %p69 = scmp.eq.s32.totalorder %s31, 1
    %p70 = scmp.ne.s32.totalorder %s65, %s67
    %p71 = scmp.eq.s32.totalorder %s31, 0
    %p72 = por %p70, %p71
    %p73 = scmp.ne.s32.totalorder %s65, %s67
    %p74 = scmp.eq.s32.totalorder %s36, 1
    %p75 = por %p73, %p74
    %p76 = scmp.ne.s32.totalorder %s67, %s68
    %p77 = scmp.eq.s32.totalorder %s36, 0
    %p78 = por %p76, %p77
    %p79 = scmp.ne.s32.totalorder %s67, %s68
    %p80 = scmp.eq.s32.totalorder %s37, 1
    %p81 = por %p79, %p80
    %p83 = scmp.ne.s32.totalorder %s68, %s82
    %p84 = scmp.eq.s32.totalorder %s37, 0
    %p85 = por %p83, %p84
    %s87 = sadd.s32 %s86, 1
    %p90 = scmp.eq.s32.totalorder %s31, 1
    %p91 = scmp.ne.s32.totalorder %s86, %s88
    %p92 = scmp.eq.s32.totalorder %s31, 0
    %p93 = por %p91, %p92
    %p94 = scmp.ne.s32.totalorder %s86, %s88
    %p95 = scmp.eq.s32.totalorder %s36, 1
    %p96 = por %p94, %p95
    %p97 = scmp.ne.s32.totalorder %s88, %s89
    %p98 = scmp.eq.s32.totalorder %s36, 0
    %p99 = por %p97, %p98
    %p100 = scmp.ne.s32.totalorder %s88, %s89
    %p101 = scmp.eq.s32.totalorder %s37, 1
    %p102 = por %p100, %p101
    %p104 = scmp.ne.s32.totalorder %s89, %s103
    %p105 = scmp.eq.s32.totalorder %s37, 0
    %p106 = por %p104, %p105
    %s108 = sadd.s32 %s107, 1
    %p111 = scmp.eq.s32.totalorder %s31, 1
    %p112 = scmp.ne.s32.totalorder %s107, %s109
    %p113 = scmp.eq.s32.totalorder %s31, 0
    %p114 = por %p112, %p113
    %p115 = scmp.ne.s32.totalorder %s107, %s109
    %p116 = scmp.eq.s32.totalorder %s36, 1
    %p117 = por %p115, %p116
    %p118 = scmp.ne.s32.totalorder %s109, %s110
    %p119 = scmp.eq.s32.totalorder %s36, 0
    %p120 = por %p118, %p119
    %p121 = scmp.ne.s32.totalorder %s109, %s110
    %p122 = scmp.eq.s32.totalorder %s37, 1
    %p123 = por %p121, %p122
    %p125 = scmp.ne.s32.totalorder %s110, %s124
    %p126 = scmp.eq.s32.totalorder %s37, 0
    %p127 = por %p125, %p126
    %s129 = sadd.s32 %s128, 1
    %p132 = scmp.eq.s32.totalorder %s31, 1
    %p133 = scmp.ne.s32.totalorder %s128, %s130
    %p134 = scmp.eq.s32.totalorder %s31, 0
    %p135 = por %p133, %p134
    %p136 = scmp.ne.s32.totalorder %s128, %s130
    %p137 = scmp.eq.s32.totalorder %s36, 1
    %p138 = por %p136, %p137
    %p139 = scmp.ne.s32.totalorder %s130, %s131
    %p140 = scmp.eq.s32.totalorder %s36, 0
    %p141 = por %p139, %p140
    %p142 = scmp.ne.s32.totalorder %s130, %s131
    %p143 = scmp.eq.s32.totalorder %s37, 1
    %p144 = por %p142, %p143
    %p146 = scmp.ne.s32.totalorder %s131, %s145
    %p147 = scmp.eq.s32.totalorder %s37, 0
    %p148 = por %p146, %p147
    %s150 = sadd.s32 %s149, 1
    %p153 = scmp.eq.s32.totalorder %s31, 1
    %p154 = scmp.ne.s32.totalorder %s149, %s151
    %p155 = scmp.eq.s32.totalorder %s31, 0
    %p156 = por %p154, %p155
    %p157 = scmp.ne.s32.totalorder %s149, %s151
    %p158 = scmp.eq.s32.totalorder %s36, 1
    %p159 = por %p157, %p158
    %p160 = scmp.ne.s32.totalorder %s151, %s152
    %p161 = scmp.eq.s32.totalorder %s36, 0
    %p162 = por %p160, %p161
    %p163 = scmp.ne.s32.totalorder %s151, %s152
    %p164 = scmp.eq.s32.totalorder %s37, 1
    %p165 = por %p163, %p164
    %p167 = scmp.ne.s32.totalorder %s152, %s166
    %p168 = scmp.eq.s32.totalorder %s37, 0
    %p169 = por %p167, %p168
    %s171 = sadd.s32 %s170, 1
    %p174 = scmp.eq.s32.totalorder %s31, 1
    %p175 = scmp.ne.s32.totalorder %s170, %s172
    %p176 = scmp.eq.s32.totalorder %s31, 0
    %p177 = por %p175, %p176
    %p178 = scmp.ne.s32.totalorder %s170, %s172
    %p179 = scmp.eq.s32.totalorder %s36, 1
    %p180 = por %p178, %p179
    %p181 = scmp.ne.s32.totalorder %s172, %s173
    %p182 = scmp.eq.s32.totalorder %s36, 0
    %p183 = por %p181, %p182
    %p184 = scmp.ne.s32.totalorder %s172, %s173
    %p185 = scmp.eq.s32.totalorder %s37, 1
    %p186 = por %p184, %p185
    %p188 = scmp.ne.s32.totalorder %s173, %s187
    %p189 = scmp.eq.s32.totalorder %s37, 0
    %p190 = por %p188, %p189
    %s192 = sadd.s32 %s191, 1
    %p195 = scmp.eq.s32.totalorder %s31, 1
    %p196 = scmp.ne.s32.totalorder %s191, %s193
    %p197 = scmp.eq.s32.totalorder %s31, 0
    %p198 = por %p196, %p197
    %p199 = scmp.ne.s32.totalorder %s191, %s193
    %p200 = scmp.eq.s32.totalorder %s36, 1
    %p201 = por %p199, %p200
    %p202 = scmp.ne.s32.totalorder %s193, %s194
    %p203 = scmp.eq.s32.totalorder %s36, 0
    %p204 = por %p202, %p203
    %p205 = scmp.ne.s32.totalorder %s193, %s194
    %p206 = scmp.eq.s32.totalorder %s37, 1
    %p207 = por %p205, %p206
    %p209 = scmp.ne.s32.totalorder %s194, %s208
    %p210 = scmp.eq.s32.totalorder %s37, 0
    %p211 = por %p209, %p210
    %s213 = sadd.s32 %s212, 1
    %p216 = scmp.eq.s32.totalorder %s31, 1
    %p217 = scmp.ne.s32.totalorder %s212, %s214
    %p218 = scmp.eq.s32.totalorder %s31, 0
    %p219 = por %p217, %p218
    %p220 = scmp.ne.s32.totalorder %s212, %s214
    %p221 = scmp.eq.s32.totalorder %s36, 1
    %p222 = por %p220, %p221
    %p223 = scmp.ne.s32.totalorder %s214, %s215
    %p224 = scmp.eq.s32.totalorder %s36, 0
    %p225 = por %p223, %p224
    %p226 = scmp.ne.s32.totalorder %s214, %s215
    %p227 = scmp.eq.s32.totalorder %s37, 1
    %p228 = por %p226, %p227
    %p230 = scmp.ne.s32.totalorder %s215, %s229
    %p231 = scmp.eq.s32.totalorder %s37, 0
    %p232 = por %p230, %p231
    %s234 = sadd.s32 %s233, 1
    %p237 = scmp.eq.s32.totalorder %s31, 1
    %p238 = scmp.ne.s32.totalorder %s233, %s235
    %p239 = scmp.eq.s32.totalorder %s31, 0
    %p240 = por %p238, %p239
    %p241 = scmp.ne.s32.totalorder %s233, %s235
    %p242 = scmp.eq.s32.totalorder %s36, 1
    %p243 = por %p241, %p242
    %p244 = scmp.ne.s32.totalorder %s235, %s236
    %p245 = scmp.eq.s32.totalorder %s36, 0
    %p246 = por %p244, %p245
    %p247 = scmp.ne.s32.totalorder %s235, %s236
    %p248 = scmp.eq.s32.totalorder %s37, 1
    %p249 = por %p247, %p248
    %p251 = scmp.ne.s32.totalorder %s236, %s250
    %p252 = scmp.eq.s32.totalorder %s37, 0
    %p253 = por %p251, %p252
    %s255 = sadd.s32 %s254, 1
    %p258 = scmp.eq.s32.totalorder %s31, 1
    %p259 = scmp.ne.s32.totalorder %s254, %s256
    %p260 = scmp.eq.s32.totalorder %s31, 0
    %p261 = por %p259, %p260
    %p262 = scmp.ne.s32.totalorder %s254, %s256
    %p263 = scmp.eq.s32.totalorder %s36, 1
    %p264 = por %p262, %p263
    %p265 = scmp.ne.s32.totalorder %s256, %s257
    %p266 = scmp.eq.s32.totalorder %s36, 0
    %p267 = por %p265, %p266
    %p268 = scmp.ne.s32.totalorder %s256, %s257
    %p269 = scmp.eq.s32.totalorder %s37, 1
    %p270 = por %p268, %p269
    %p272 = scmp.ne.s32.totalorder %s257, %s271
    %p273 = scmp.eq.s32.totalorder %s37, 0
    %p274 = por %p272, %p273
    %s276 = sadd.s32 %s275, 1
    %p279 = scmp.eq.s32.totalorder %s31, 1
    %p280 = scmp.ne.s32.totalorder %s275, %s277
    %p281 = scmp.eq.s32.totalorder %s31, 0
    %p282 = por %p280, %p281
    %p283 = scmp.ne.s32.totalorder %s275, %s277
    %p284 = scmp.eq.s32.totalorder %s36, 1
    %p285 = por %p283, %p284
    %p286 = scmp.ne.s32.totalorder %s277, %s278
    %p287 = scmp.eq.s32.totalorder %s36, 0
    %p288 = por %p286, %p287
    %p289 = scmp.ne.s32.totalorder %s277, %s278
    %p290 = scmp.eq.s32.totalorder %s37, 1
    %p291 = por %p289, %p290
    %p293 = scmp.ne.s32.totalorder %s278, %s292
    %p294 = scmp.eq.s32.totalorder %s37, 0
    %p295 = por %p293, %p294
    %s297 = sadd.s32 %s296, 1
    %p300 = scmp.eq.s32.totalorder %s31, 1
    %p301 = scmp.ne.s32.totalorder %s296, %s298
    %p302 = scmp.eq.s32.totalorder %s31, 0
    %p303 = por %p301, %p302
    %p304 = scmp.ne.s32.totalorder %s296, %s298
    %p305 = scmp.eq.s32.totalorder %s36, 1
    %p306 = por %p304, %p305
    %p307 = scmp.ne.s32.totalorder %s298, %s299
    %p308 = scmp.eq.s32.totalorder %s36, 0
    %p309 = por %p307, %p308
    %p310 = scmp.ne.s32.totalorder %s298, %s299
    %p311 = scmp.eq.s32.totalorder %s37, 1
    %p312 = por %p310, %p311
    %p314 = scmp.ne.s32.totalorder %s299, %s313
    %p315 = scmp.eq.s32.totalorder %s37, 0
    %p316 = por %p314, %p315
    %s318 = sadd.s32 %s317, 1
    %p321 = scmp.eq.s32.totalorder %s31, 1
    %p322 = scmp.ne.s32.totalorder %s317, %s319
    %p323 = scmp.eq.s32.totalorder %s31, 0
    %p324 = por %p322, %p323
    %p325 = scmp.ne.s32.totalorder %s317, %s319
    %p326 = scmp.eq.s32.totalorder %s36, 1
    %p327 = por %p325, %p326
    %p328 = scmp.ne.s32.totalorder %s319, %s320
    %p329 = scmp.eq.s32.totalorder %s36, 0
    %p330 = por %p328, %p329
    %p331 = scmp.ne.s32.totalorder %s319, %s320
    %p332 = scmp.eq.s32.totalorder %s37, 1
    %p333 = por %p331, %p332
    %p335 = scmp.ne.s32.totalorder %s320, %s334
    %p336 = scmp.eq.s32.totalorder %s37, 0
    %p337 = por %p335, %p336
    %s339 = sadd.s32 %s338, 1
    %p342 = scmp.eq.s32.totalorder %s31, 1
    %p343 = scmp.ne.s32.totalorder %s338, %s340
    %p344 = scmp.eq.s32.totalorder %s31, 0
    %p345 = por %p343, %p344
    %p346 = scmp.ne.s32.totalorder %s338, %s340
    %p347 = scmp.eq.s32.totalorder %s36, 1
    %p348 = por %p346, %p347
    %p349 = scmp.ne.s32.totalorder %s340, %s341
    %p350 = scmp.eq.s32.totalorder %s36, 0
    %p351 = por %p349, %p350
    %p352 = scmp.ne.s32.totalorder %s340, %s341
    %p353 = scmp.eq.s32.totalorder %s37, 1
    %p354 = por %p352, %p353
    %p356 = scmp.ne.s32.totalorder %s341, %s355
    %p357 = scmp.eq.s32.totalorder %s37, 0
    %p358 = por %p356, %p357
    %s360 = sadd.s32 %s359, 1
    %p363 = scmp.eq.s32.totalorder %s31, 1
    %p364 = scmp.ne.s32.totalorder %s359, %s361
    %p365 = scmp.eq.s32.totalorder %s31, 0
    %p366 = por %p364, %p365
    %p367 = scmp.ne.s32.totalorder %s359, %s361
    %p368 = scmp.eq.s32.totalorder %s36, 1
    %p369 = por %p367, %p368
    %p370 = scmp.ne.s32.totalorder %s361, %s362
    %p371 = scmp.eq.s32.totalorder %s36, 0
    %p372 = por %p370, %p371
    %p373 = scmp.ne.s32.totalorder %s361, %s362
    %p374 = scmp.eq.s32.totalorder %s37, 1
    %p375 = por %p373, %p374
    %p377 = scmp.ne.s32.totalorder %s362, %s376
    %p378 = scmp.eq.s32.totalorder %s37, 0
    %p379 = por %p377, %p378
    %s381 = sadd.s32 %s380, 1
    %p384 = scmp.eq.s32.totalorder %s31, 1
    %p385 = scmp.ne.s32.totalorder %s380, %s382
    %p386 = scmp.eq.s32.totalorder %s31, 0
    %p387 = por %p385, %p386
    %p388 = scmp.ne.s32.totalorder %s380, %s382
    %p389 = scmp.eq.s32.totalorder %s36, 1
    %p390 = por %p388, %p389
    %p391 = scmp.ne.s32.totalorder %s382, %s383
    %p392 = scmp.eq.s32.totalorder %s36, 0
    %p393 = por %p391, %p392
    %p394 = scmp.ne.s32.totalorder %s382, %s383
    %p395 = scmp.eq.s32.totalorder %s37, 1
    %p396 = por %p394, %p395
    %p398 = scmp.ne.s32.totalorder %s383, %s397
    %p399 = scmp.eq.s32.totalorder %s37, 0
    %p400 = por %p398, %p399
    %s402 = sadd.s32 %s401, 1
    %p405 = scmp.eq.s32.totalorder %s31, 1
    %p406 = scmp.ne.s32.totalorder %s401, %s403
    %p407 = scmp.eq.s32.totalorder %s31, 0
    %p408 = por %p406, %p407
    %p409 = scmp.ne.s32.totalorder %s401, %s403
    %p410 = scmp.eq.s32.totalorder %s36, 1
    %p411 = por %p409, %p410
    %p412 = scmp.ne.s32.totalorder %s403, %s404
    %p413 = scmp.eq.s32.totalorder %s36, 0
    %p414 = por %p412, %p413
    %p415 = scmp.ne.s32.totalorder %s403, %s404
    %p416 = scmp.eq.s32.totalorder %s37, 1
    %p417 = por %p415, %p416
    %p419 = scmp.ne.s32.totalorder %s404, %s418
    %p420 = scmp.eq.s32.totalorder %s37, 0
    %p421 = por %p419, %p420
    %s423 = sadd.s32 %s422, 1
    %p426 = scmp.eq.s32.totalorder %s31, 1
    %p427 = scmp.ne.s32.totalorder %s422, %s424
    %p428 = scmp.eq.s32.totalorder %s31, 0
    %p429 = por %p427, %p428
    %p430 = scmp.ne.s32.totalorder %s422, %s424
    %p431 = scmp.eq.s32.totalorder %s36, 1
    %p432 = por %p430, %p431
    %p433 = scmp.ne.s32.totalorder %s424, %s425
    %p434 = scmp.eq.s32.totalorder %s36, 0
    %p435 = por %p433, %p434
    %p436 = scmp.ne.s32.totalorder %s424, %s425
    %p437 = scmp.eq.s32.totalorder %s37, 1
    %p438 = por %p436, %p437
    %p440 = scmp.ne.s32.totalorder %s425, %s439
    %p441 = scmp.eq.s32.totalorder %s37, 0
    %p442 = por %p440, %p441
    %s444 = sadd.s32 %s443, 1
    %p447 = scmp.eq.s32.totalorder %s31, 1
    %p448 = scmp.ne.s32.totalorder %s443, %s445
    %p449 = scmp.eq.s32.totalorder %s31, 0
    %p450 = por %p448, %p449
    %p451 = scmp.ne.s32.totalorder %s443, %s445
    %p452 = scmp.eq.s32.totalorder %s36, 1
    %p453 = por %p451, %p452
    %p454 = scmp.ne.s32.totalorder %s445, %s446
    %p455 = scmp.eq.s32.totalorder %s36, 0
    %p456 = por %p454, %p455
    %p457 = scmp.ne.s32.totalorder %s445, %s446
    %p458 = scmp.eq.s32.totalorder %s37, 1
    %p459 = por %p457, %p458
    %p461 = scmp.ne.s32.totalorder %s446, %s460
    %p462 = scmp.eq.s32.totalorder %s37, 0
    %p463 = por %p461, %p462
    %s465 = sadd.s32 %s464, 1
    %p468 = scmp.eq.s32.totalorder %s31, 1
    %p469 = scmp.ne.s32.totalorder %s464, %s466
    %p470 = scmp.eq.s32.totalorder %s31, 0
    %p471 = por %p469, %p470
    %p472 = scmp.ne.s32.totalorder %s464, %s466
    %p473 = scmp.eq.s32.totalorder %s36, 1
    %p474 = por %p472, %p473
    %p475 = scmp.ne.s32.totalorder %s466, %s467
    %p476 = scmp.eq.s32.totalorder %s36, 0
    %p477 = por %p475, %p476
    %p478 = scmp.ne.s32.totalorder %s466, %s467
    %p479 = scmp.eq.s32.totalorder %s37, 1
    %p480 = por %p478, %p479
    %p482 = scmp.ne.s32.totalorder %s467, %s481
    %p483 = scmp.eq.s32.totalorder %s37, 0
    %p484 = por %p482, %p483
    %s486 = sadd.s32 %s485, 1
    %p489 = scmp.eq.s32.totalorder %s31, 1
    %p490 = scmp.ne.s32.totalorder %s485, %s487
    %p491 = scmp.eq.s32.totalorder %s31, 0
    %p492 = por %p490, %p491
    %p493 = scmp.ne.s32.totalorder %s485, %s487
    %p494 = scmp.eq.s32.totalorder %s36, 1
    %p495 = por %p493, %p494
    %p496 = scmp.ne.s32.totalorder %s487, %s488
    %p497 = scmp.eq.s32.totalorder %s36, 0
    %p498 = por %p496, %p497
    %p499 = scmp.ne.s32.totalorder %s487, %s488
    %p500 = scmp.eq.s32.totalorder %s37, 1
    %p501 = por %p499, %p500
    %p503 = scmp.ne.s32.totalorder %s488, %s502
    %p504 = scmp.eq.s32.totalorder %s37, 0
    %p505 = por %p503, %p504
    %s507 = sadd.s32 %s506, 1
    %p510 = scmp.eq.s32.totalorder %s31, 1
    %p511 = scmp.ne.s32.totalorder %s506, %s508
    %p512 = scmp.eq.s32.totalorder %s31, 0
    %p513 = por %p511, %p512
    %p514 = scmp.ne.s32.totalorder %s506, %s508
    %p515 = scmp.eq.s32.totalorder %s36, 1
    %p516 = por %p514, %p515
    %p517 = scmp.ne.s32.totalorder %s508, %s509
    %p518 = scmp.eq.s32.totalorder %s36, 0
    %p519 = por %p517, %p518
    %p520 = scmp.ne.s32.totalorder %s508, %s509
    %p521 = scmp.eq.s32.totalorder %s37, 1
    %p522 = por %p520, %p521
    %p524 = scmp.ne.s32.totalorder %s509, %s523
    %p525 = scmp.eq.s32.totalorder %s37, 0
    %p526 = por %p524, %p525
    %s528 = sadd.s32 %s527, 1
    %p531 = scmp.eq.s32.totalorder %s31, 1
    %p532 = scmp.ne.s32.totalorder %s527, %s529
    %p533 = scmp.eq.s32.totalorder %s31, 0
    %p534 = por %p532, %p533
    %p535 = scmp.ne.s32.totalorder %s527, %s529
    %p536 = scmp.eq.s32.totalorder %s36, 1
    %p537 = por %p535, %p536
    %p538 = scmp.ne.s32.totalorder %s529, %s530
    %p539 = scmp.eq.s32.totalorder %s36, 0
    %p540 = por %p538, %p539
    %p541 = scmp.ne.s32.totalorder %s529, %s530
    %p542 = scmp.eq.s32.totalorder %s37, 1
    %p543 = por %p541, %p542
    %p545 = scmp.ne.s32.totalorder %s530, %s544
    %p546 = scmp.eq.s32.totalorder %s37, 0
    %p547 = por %p545, %p546
    %s549 = sadd.s32 %s548, 1
    %p552 = scmp.eq.s32.totalorder %s31, 1
    %p553 = scmp.ne.s32.totalorder %s548, %s550
    %p554 = scmp.eq.s32.totalorder %s31, 0
    %p555 = por %p553, %p554
    %p556 = scmp.ne.s32.totalorder %s548, %s550
    %p557 = scmp.eq.s32.totalorder %s36, 1
    %p558 = por %p556, %p557
    %p559 = scmp.ne.s32.totalorder %s550, %s551
    %p560 = scmp.eq.s32.totalorder %s36, 0
    %p561 = por %p559, %p560
    %p562 = scmp.ne.s32.totalorder %s550, %s551
    %p563 = scmp.eq.s32.totalorder %s37, 1
    %p564 = por %p562, %p563
    %p566 = scmp.ne.s32.totalorder %s551, %s565
    %p567 = scmp.eq.s32.totalorder %s37, 0
    %p568 = por %p566, %p567
    %s569 = ssub.s32 %s31, %s38
    %p570 = scmp.eq.s32.totalorder %s569, 0
    %s572 = sadd.s32 %s571, 1
    %s573 = scalar_select %p570, %s571, %s572
    %p576 = pneg %p570
    %p577 = scmp.eq.s32.totalorder %s31, 1
    %p578 = por %p576, %p577
    %p579 = scmp.ne.s32.totalorder %s571, %s574
    %p580 = scmp.eq.s32.totalorder %s31, 0
    %p581 = por %p579, %p580
    %p582 = scmp.ne.s32.totalorder %s571, %s574
    %p583 = scmp.eq.s32.totalorder %s36, 1
    %p584 = por %p582, %p583
    %p585 = scmp.ne.s32.totalorder %s574, %s575
    %p586 = scmp.eq.s32.totalorder %s36, 0
    %p587 = por %p585, %p586
    %p588 = scmp.ne.s32.totalorder %s574, %s575
    %p589 = scmp.eq.s32.totalorder %s37, 1
    %p590 = por %p588, %p589
    %p592 = scmp.ne.s32.totalorder %s575, %s591
    %p593 = scmp.eq.s32.totalorder %s37, 0
    %p594 = por %p592, %p593
    %p595 = scmp.le.s32.totalorder 1, %s31
    %p596 = scmp.lt.s32.totalorder %s31, 3
    %p597 = pnand %p595, %p596
    %p598 = pneg %p597
    // Predicated region
    $region9: #{base_feature_forward.1} parent=5 // pred_check
      _
    $region10: #{base_feature_forward.1} parent=5 // pred_check_branch
      %600 = sbr.rel (%p597) target = $region12
    $region11: #{base_feature_forward.1} parent=5 // pred_region
      %s601 = ssub.s32 %s31, 1
      // Predicated region
      $region13: #{base_feature_forward.1} parent=11 // pred_check
        %p602 = pneg %p78
      $region14: #{base_feature_forward.1} parent=11 // pred_check_branch
        %604 = sbr.rel (%p602) target = $region16
      $region15: #{base_feature_forward.1} parent=11 // pred_region
        _
      $region16: #{base_feature_forward.1} parent=11 // pred_fallthru
        _
      // Predicated region
      $region17: #{base_feature_forward.1} parent=11 // pred_check
        %p605 = pneg %p99
      $region18: #{base_feature_forward.1} parent=11 // pred_check_branch
        %607 = sbr.rel (%p605) target = $region20
      $region19: #{base_feature_forward.1} parent=11 // pred_region
        _
      $region20: #{base_feature_forward.1} parent=11 // pred_fallthru
        _
      // Predicated region
      $region21: #{base_feature_forward.1} parent=11 // pred_check
        %p608 = pneg %p120
      $region22: #{base_feature_forward.1} parent=11 // pred_check_branch
        %610 = sbr.rel (%p608) target = $region24
      $region23: #{base_feature_forward.1} parent=11 // pred_region
        _
      $region24: #{base_feature_forward.1} parent=11 // pred_fallthru
        _
      // Predicated region
      $region25: #{base_feature_forward.1} parent=11 // pred_check
        %p611 = pneg %p141
      $region26: #{base_feature_forward.1} parent=11 // pred_check_branch
        %613 = sbr.rel (%p611) target = $region28
      $region27: #{base_feature_forward.1} parent=11 // pred_region
        _
      $region28: #{base_feature_forward.1} parent=11 // pred_fallthru
        _
      // Predicated region
      $region29: #{base_feature_forward.1} parent=11 // pred_check
        %p614 = pneg %p162
      $region30: #{base_feature_forward.1} parent=11 // pred_check_branch
        %616 = sbr.rel (%p614) target = $region32
      $region31: #{base_feature_forward.1} parent=11 // pred_region
        _
      $region32: #{base_feature_forward.1} parent=11 // pred_fallthru
        _
      // Predicated region
      $region33: #{base_feature_forward.1} parent=11 // pred_check
        %p617 = pneg %p183
      $region34: #{base_feature_forward.1} parent=11 // pred_check_branch
        %619 = sbr.rel (%p617) target = $region36
      $region35: #{base_feature_forward.1} parent=11 // pred_region
        _
      $region36: #{base_feature_forward.1} parent=11 // pred_fallthru
        _
      // Predicated region
      $region37: #{base_feature_forward.1} parent=11 // pred_check
        %p620 = pneg %p204
      $region38: #{base_feature_forward.1} parent=11 // pred_check_branch
        %622 = sbr.rel (%p620) target = $region40
      $region39: #{base_feature_forward.1} parent=11 // pred_region
        _
      $region40: #{base_feature_forward.1} parent=11 // pred_fallthru
        _
      // Predicated region
      $region41: #{base_feature_forward.1} parent=11 // pred_check
        %p623 = pneg %p225
      $region42: #{base_feature_forward.1} parent=11 // pred_check_branch
        %625 = sbr.rel (%p623) target = $region44
      $region43: #{base_feature_forward.1} parent=11 // pred_region
        _
      $region44: #{base_feature_forward.1} parent=11 // pred_fallthru
        _
      // Predicated region
      $region45: #{base_feature_forward.1} parent=11 // pred_check
        %p626 = pneg %p246
      $region46: #{base_feature_forward.1} parent=11 // pred_check_branch
        %628 = sbr.rel (%p626) target = $region48
      $region47: #{base_feature_forward.1} parent=11 // pred_region
        _
      $region48: #{base_feature_forward.1} parent=11 // pred_fallthru
        _
      // Predicated region
      $region49: #{base_feature_forward.1} parent=11 // pred_check
        %p629 = pneg %p267
      $region50: #{base_feature_forward.1} parent=11 // pred_check_branch
        %631 = sbr.rel (%p629) target = $region52
      $region51: #{base_feature_forward.1} parent=11 // pred_region
        _
      $region52: #{base_feature_forward.1} parent=11 // pred_fallthru
        _
      // Predicated region
      $region53: #{base_feature_forward.1} parent=11 // pred_check
        %p632 = pneg %p288
      $region54: #{base_feature_forward.1} parent=11 // pred_check_branch
        %634 = sbr.rel (%p632) target = $region56
      $region55: #{base_feature_forward.1} parent=11 // pred_region
        _
      $region56: #{base_feature_forward.1} parent=11 // pred_fallthru
        _
      // Predicated region
      $region57: #{base_feature_forward.1} parent=11 // pred_check
        %p635 = pneg %p309
      $region58: #{base_feature_forward.1} parent=11 // pred_check_branch
        %637 = sbr.rel (%p635) target = $region60
      $region59: #{base_feature_forward.1} parent=11 // pred_region
        _
      $region60: #{base_feature_forward.1} parent=11 // pred_fallthru
        _
      // Predicated region
      $region61: #{base_feature_forward.1} parent=11 // pred_check
        %p638 = pneg %p330
      $region62: #{base_feature_forward.1} parent=11 // pred_check_branch
        %640 = sbr.rel (%p638) target = $region64
      $region63: #{base_feature_forward.1} parent=11 // pred_region
        _
      $region64: #{base_feature_forward.1} parent=11 // pred_fallthru
        _
      // Predicated region
      $region65: #{base_feature_forward.1} parent=11 // pred_check
        %p641 = pneg %p351
      $region66: #{base_feature_forward.1} parent=11 // pred_check_branch
        %643 = sbr.rel (%p641) target = $region68
      $region67: #{base_feature_forward.1} parent=11 // pred_region
        _
      $region68: #{base_feature_forward.1} parent=11 // pred_fallthru
        _
      // Predicated region
      $region69: #{base_feature_forward.1} parent=11 // pred_check
        %p644 = pneg %p372
      $region70: #{base_feature_forward.1} parent=11 // pred_check_branch
        %646 = sbr.rel (%p644) target = $region72
      $region71: #{base_feature_forward.1} parent=11 // pred_region
        _
      $region72: #{base_feature_forward.1} parent=11 // pred_fallthru
        _
      // Predicated region
      $region73: #{base_feature_forward.1} parent=11 // pred_check
        %p647 = pneg %p393
      $region74: #{base_feature_forward.1} parent=11 // pred_check_branch
        %649 = sbr.rel (%p647) target = $region76
      $region75: #{base_feature_forward.1} parent=11 // pred_region
        _
      $region76: #{base_feature_forward.1} parent=11 // pred_fallthru
        _
      // Predicated region
      $region77: #{base_feature_forward.1} parent=11 // pred_check
        %p650 = pneg %p414
      $region78: #{base_feature_forward.1} parent=11 // pred_check_branch
        %652 = sbr.rel (%p650) target = $region80
      $region79: #{base_feature_forward.1} parent=11 // pred_region
        _
      $region80: #{base_feature_forward.1} parent=11 // pred_fallthru
        _
      // Predicated region
      $region81: #{base_feature_forward.1} parent=11 // pred_check
        %p653 = pneg %p435
      $region82: #{base_feature_forward.1} parent=11 // pred_check_branch
        %655 = sbr.rel (%p653) target = $region84
      $region83: #{base_feature_forward.1} parent=11 // pred_region
        _
      $region84: #{base_feature_forward.1} parent=11 // pred_fallthru
        _
      // Predicated region
      $region85: #{base_feature_forward.1} parent=11 // pred_check
        %p656 = pneg %p456
      $region86: #{base_feature_forward.1} parent=11 // pred_check_branch
        %658 = sbr.rel (%p656) target = $region88
      $region87: #{base_feature_forward.1} parent=11 // pred_region
        _
      $region88: #{base_feature_forward.1} parent=11 // pred_fallthru
        _
      // Predicated region
      $region89: #{base_feature_forward.1} parent=11 // pred_check
        %p659 = pneg %p477
      $region90: #{base_feature_forward.1} parent=11 // pred_check_branch
        %661 = sbr.rel (%p659) target = $region92
      $region91: #{base_feature_forward.1} parent=11 // pred_region
        _
      $region92: #{base_feature_forward.1} parent=11 // pred_fallthru
        _
      // Predicated region
      $region93: #{base_feature_forward.1} parent=11 // pred_check
        %p662 = pneg %p498
      $region94: #{base_feature_forward.1} parent=11 // pred_check_branch
        %664 = sbr.rel (%p662) target = $region96
      $region95: #{base_feature_forward.1} parent=11 // pred_region
        _
      $region96: #{base_feature_forward.1} parent=11 // pred_fallthru
        _
      // Predicated region
      $region97: #{base_feature_forward.1} parent=11 // pred_check
        %p665 = pneg %p519
      $region98: #{base_feature_forward.1} parent=11 // pred_check_branch
        %667 = sbr.rel (%p665) target = $region100
      $region99: #{base_feature_forward.1} parent=11 // pred_region
        _
      $region100: #{base_feature_forward.1} parent=11 // pred_fallthru
        _
      // Predicated region
      $region101: #{base_feature_forward.1} parent=11 // pred_check
        %p668 = pneg %p540
      $region102: #{base_feature_forward.1} parent=11 // pred_check_branch
        %670 = sbr.rel (%p668) target = $region104
      $region103: #{base_feature_forward.1} parent=11 // pred_region
        _
      $region104: #{base_feature_forward.1} parent=11 // pred_fallthru
        _
      // Predicated region
      $region105: #{base_feature_forward.1} parent=11 // pred_check
        %p671 = pneg %p561
      $region106: #{base_feature_forward.1} parent=11 // pred_check_branch
        %673 = sbr.rel (%p671) target = $region108
      $region107: #{base_feature_forward.1} parent=11 // pred_region
        _
      $region108: #{base_feature_forward.1} parent=11 // pred_fallthru
        _
    $region12: #{base_feature_forward.1} parent=5 // pred_fallthru
      _
    %p674 = scmp.lt.s32.totalorder %s31, 2
    // Predicated region
    $region109: #{base_feature_forward.1} parent=5 // pred_check
      %p675 = pneg %p674
    $region110: #{base_feature_forward.1} parent=5 // pred_check_branch
      %677 = sbr.rel (%p675) target = $region112
    $region111: #{base_feature_forward.1} parent=5 // pred_region
      // Predicated region
      $region113: #{base_feature_forward.1} parent=111 // pred_check
        %p678 = pneg %p51
      $region114: #{base_feature_forward.1} parent=111 // pred_check_branch
        %680 = sbr.rel (%p678) target = $region116
      $region115: #{base_feature_forward.1} parent=111 // pred_region
        %p681 = scmp.lt.s32.totalorder %s31, 1
        %s682 = scalar_select %p681, %s31, 1
        %s683 = smul.addr %s682, 2
        %s684 = smul.addr %s683, 8
        %s685 = scalar_lea.vmem %s0, %s684
      $region116: #{base_feature_forward.1} parent=111 // pred_fallthru
        _
    $region112: #{base_feature_forward.1} parent=5 // pred_fallthru
      _
    %p686 = scmp.le.s32.totalorder 1, %s31
    %p687 = scmp.lt.s32.totalorder %s31, 3
    %p688 = pnand %p686, %p687
    %p689 = pneg %p688
    // Predicated region
    $region117: #{base_feature_forward.1} parent=5 // pred_check
      _
    $region118: #{base_feature_forward.1} parent=5 // pred_check_branch
      %691 = sbr.rel (%p688) target = $region120
    $region119: #{base_feature_forward.1} parent=5 // pred_region
      %s692 = ssub.s32 %s31, 1
      %p693 = scmp.lt.s32.totalorder %s36, 1
      %s694 = scalar_select %p693, %s36, 1
      %s695 = smul.addr %s694, 2
      %s696 = smul.addr %s695, 8
      %s697 = scalar_lea.vmem %s0, %s696
      %p698 = pneg %p57
      %p699 = pneg %p54
      %p700 = pneg %p78
      %p701 = pneg %p75
      %p702 = pneg %p99
      %p703 = pneg %p96
      %p704 = pneg %p120
      %p705 = pneg %p117
      %p706 = pneg %p141
      %p707 = pneg %p138
      %p708 = pneg %p162
      %p709 = pneg %p159
      %p710 = pneg %p183
      %p711 = pneg %p180
      %p712 = pneg %p204
      %p713 = pneg %p201
      %p714 = pneg %p225
      %p715 = pneg %p222
      %p716 = pneg %p246
      %p717 = pneg %p243
      %p718 = pneg %p267
      %p719 = pneg %p264
      %p720 = pneg %p288
      %p721 = pneg %p285
      %p722 = pneg %p309
      %p723 = pneg %p306
      %p724 = pneg %p330
      %p725 = pneg %p327
      %p726 = pneg %p351
      %p727 = pneg %p348
      %p728 = pneg %p372
      %p729 = pneg %p369
      %p730 = pneg %p393
      %p731 = pneg %p390
      %p732 = pneg %p414
      %p733 = pneg %p411
      %p734 = pneg %p435
      %p735 = pneg %p432
      %p736 = pneg %p456
      %p737 = pneg %p453
      %p738 = pneg %p477
      %p739 = pneg %p474
      %p740 = pneg %p498
      %p741 = pneg %p495
      %p742 = pneg %p519
      %p743 = pneg %p516
      %p744 = pneg %p540
      %p745 = pneg %p537
      %p746 = pneg %p561
      %p747 = pneg %p558
      %p748 = pneg %p587
      %p749 = pneg %p584
      %p750 = scmp.lt.s32.totalorder %s36, 1
      %s751 = scalar_select %p750, %s36, 1
      %s752 = smul.addr %s751, 4
      %s753 = smul.addr %s752, 8
      %s754 = scalar_lea.vmem %s25, %s753
      %p755 = scmp.lt.s32.totalorder %s36, 1
      %s756 = scalar_select %p755, %s36, 1
      %s757 = smul.addr %s756, 2
      %s758 = smul.addr %s757, 8
      %s759 = scalar_lea.vmem %s0, %s758
      %p760 = scmp.lt.s32.totalorder %s36, 1
      %s761 = scalar_select %p760, %s36, 1
      %s762 = smul.addr %s761, 4
      %s763 = smul.addr %s762, 8
      %s764 = scalar_lea.vmem %s25, %s763
      %766 = vst [vmem:[#allocation2] sm:$0xff] 0.0
      %767 = vst [vmem:[#allocation2 + $0x8] sm:$0xff] 0.0
      %vm768 = vcmask 572416
      %769 = vst.msk [vmem:[#allocation2 + $0x10] sm:$0xff] %vm768, 0.0
      %v770 = vld [vmem:[%s759] sm:$0xff]
      %v771 = vld [vmem:[%s759 + $0x8] sm:$0xff]
      %773 = vrot.lane.b32.xlu0 %v770, 19
      %v774 = vpop.permute.xlu0 %773
      %vm776 = vcmask 285848
      %777 = vst.msk [vmem:[#allocation2] sm:$0xff] %vm776, %v774
      %778 = vrot.lane.b32.xlu0 %v770, 21
      %v779 = vpop.permute.xlu0 %778
      %vm781 = vcmask 433448
      %782 = vst.msk [vmem:[#allocation2] sm:$0xff] %vm781, %v779
      %783 = vrot.lane.b32.xlu0 %v770, 23
      %v784 = vpop.permute.xlu0 %783
      %vm786 = vcmask 581048
      %787 = vst.msk [vmem:[#allocation2] sm:$0xff] %vm786, %v784
      %788 = vrot.lane.b32.xlu0 %v770, 25
      %v789 = vpop.permute.xlu0 %788
      %vm791 = vcmask 728648
      %792 = vst.msk [vmem:[#allocation2] sm:$0xff] %vm791, %v789
      %793 = vrot.lane.b32.xlu0 %v770, 27
      %v794 = vpop.permute.xlu0 %793
      %vm796 = vcmask 876248
      %797 = vst.msk [vmem:[#allocation2] sm:$0xff] %vm796, %v794
      %798 = vrot.lane.b32.xlu0 %v770, 29
      %v799 = vpop.permute.xlu0 %798
      %vm801 = vcmask 1023848
      %802 = vst.msk [vmem:[#allocation2] sm:$0xff] %vm801, %v799
      %803 = vrot.lane.b32.xlu0 %v770, 31
      %v804 = vpop.permute.xlu0 %803
      %vm806 = vcmask 1048568
      %807 = vst.msk [vmem:[#allocation2] sm:$0xff] %vm806, %v804
      %vm808 = vcmask 121856
      %809 = vst.msk [vmem:[#allocation2 + $0x8] sm:$0xff] %vm808, %v804
      %810 = vrot.lane.b32.xlu0 %v770, 33
      %v811 = vpop.permute.xlu0 %810
      %vm813 = vcmask 269448
      %814 = vst.msk [vmem:[#allocation2 + $0x8] sm:$0xff] %vm813, %v811
      %816 = vrot.lane.b32.xlu0 %v771, 35
      %v817 = vpop.permute.xlu0 %816
      %vm819 = vcmask 417048
      %820 = vst.msk [vmem:[#allocation2 + $0x8] sm:$0xff] %vm819, %v817
      %821 = vrot.lane.b32.xlu0 %v771, 37
      %v822 = vpop.permute.xlu0 %821
      %vm824 = vcmask 564648
      %825 = vst.msk [vmem:[#allocation2 + $0x8] sm:$0xff] %vm824, %v822
      %826 = vrot.lane.b32.xlu0 %v771, 39
      %v827 = vpop.permute.xlu0 %826
      %vm829 = vcmask 712248
      %830 = vst.msk [vmem:[#allocation2 + $0x8] sm:$0xff] %vm829, %v827
      %831 = vrot.lane.b32.xlu0 %v771, 41
      %v832 = vpop.permute.xlu0 %831
      %vm834 = vcmask 859848
      %835 = vst.msk [vmem:[#allocation2 + $0x8] sm:$0xff] %vm834, %v832
      %836 = vrot.lane.b32.xlu0 %v771, 43
      %v837 = vpop.permute.xlu0 %836
      %vm839 = vcmask 1007448
      %840 = vst.msk [vmem:[#allocation2 + $0x8] sm:$0xff] %vm839, %v837
      %841 = vrot.lane.b32.xlu0 %v771, 45
      %v842 = vpop.permute.xlu0 %841
      %vm844 = vcmask 1048552
      %845 = vst.msk [vmem:[#allocation2 + $0x8] sm:$0xff] %vm844, %v842
      %vm846 = vcmask 105472
      %847 = vst.msk [vmem:[#allocation2 + $0x10] sm:$0xff] %vm846, %v842
      %848 = vrot.lane.b32.xlu0 %v771, 47
      %v849 = vpop.permute.xlu0 %848
      %vm851 = vcmask 253048
      %852 = vst.msk [vmem:[#allocation2 + $0x10] sm:$0xff] %vm851, %v849
      %853 = vrot.lane.b32.xlu0 %v771, 49
      %v854 = vpop.permute.xlu0 %853
      %vm856 = vcmask 400648
      %857 = vst.msk [vmem:[#allocation2 + $0x10] sm:$0xff] %vm856, %v854
      %v858 = vld [vmem:[#allocation2] sm:$0xff]
      %v859 = vld [vmem:[#allocation2 + $0x8] sm:$0xff]
      %v860 = vld [vmem:[#allocation2 + $0x10] sm:$0xff]
      %861 = vst [vmem:[#allocation8] sm:$0xff] %v858
      %862 = vst [vmem:[#allocation8 + $0x8] sm:$0xff] %v859
      %vm863 = vcmask 261120
      %864 = vst.msk [vmem:[#allocation8 + $0x10] sm:$0xff] %vm863, %v860
      %868 = vrot.lane.b32.xlu0 %v858, 127
      %v869 = vpop.permute.xlu0 %868
      %870 = vrot.lane.b32.xlu0 %v859, 127
      %v871 = vpop.permute.xlu0 %870
      %872 = vrot.lane.b32.xlu0 %v860, 127
      %v873 = vpop.permute.xlu0 %872
      %vm874 = vcmask 1039360
      %v875 = vsel %vm874, %v869, %v871
      %v876 = vsel %vm874, %v871, %v873
      %880 = vst [vmem:[#allocation8 + $0x18] sm:$0xff] %v875
      %881 = vst [vmem:[#allocation8 + $0x20] sm:$0xff] %v876
      %882 = vst.msk [vmem:[#allocation8 + $0x28] sm:$0xff] %vm863, %v873
      %883 = vrot.lane.b32.xlu0 %v858, 126
      %v884 = vpop.permute.xlu0 %883
      %885 = vrot.lane.b32.xlu0 %v859, 126
      %v886 = vpop.permute.xlu0 %885
      %887 = vrot.lane.b32.xlu0 %v860, 126
      %v888 = vpop.permute.xlu0 %887
      %vm889 = vcmask 1031168
      %v890 = vsel %vm889, %v884, %v886
      %v891 = vsel %vm889, %v886, %v888
      %895 = vst [vmem:[#allocation8 + $0x30] sm:$0xff] %v890
      %896 = vst [vmem:[#allocation8 + $0x38] sm:$0xff] %v891
      %897 = vst.msk [vmem:[#allocation8 + $0x40] sm:$0xff] %vm863, %v888
      %898 = vrot.lane.b32.xlu0 %v858, 110
      %v899 = vpop.permute.xlu0 %898
      %900 = vrot.lane.b32.xlu0 %v859, 110
      %v901 = vpop.permute.xlu0 %900
      %902 = vrot.lane.b32.xlu0 %v860, 110
      %v903 = vpop.permute.xlu0 %902
      %vm904 = vcmask 900096
      %v905 = vsel %vm904, %v899, %v901
      %v906 = vsel %vm904, %v901, %v903
      %910 = vst [vmem:[#allocation8 + $0x48] sm:$0xff] %v905
      %911 = vst [vmem:[#allocation8 + $0x50] sm:$0xff] %v906
      %912 = vst.msk [vmem:[#allocation8 + $0x58] sm:$0xff] %vm863, %v903
      %913 = vrot.lane.b32.xlu0 %v858, 109
      %v914 = vpop.permute.xlu0 %913
      %915 = vrot.lane.b32.xlu0 %v859, 109
      %v916 = vpop.permute.xlu0 %915
      %917 = vrot.lane.b32.xlu0 %v860, 109
      %v918 = vpop.permute.xlu0 %917
      %vm919 = vcmask 891904
      %v920 = vsel %vm919, %v914, %v916
      %v921 = vsel %vm919, %v916, %v918
      %925 = vst [vmem:[#allocation8 + $0x60] sm:$0xff] %v920
      %926 = vst [vmem:[#allocation8 + $0x68] sm:$0xff] %v921
      %927 = vst.msk [vmem:[#allocation8 + $0x70] sm:$0xff] %vm863, %v918
      %928 = vrot.lane.b32.xlu0 %v858, 108
      %v929 = vpop.permute.xlu0 %928
      %930 = vrot.lane.b32.xlu0 %v859, 108
      %v931 = vpop.permute.xlu0 %930
      %932 = vrot.lane.b32.xlu0 %v860, 108
      %v933 = vpop.permute.xlu0 %932
      %vm934 = vcmask 883712
      %v935 = vsel %vm934, %v929, %v931
      %v936 = vsel %vm934, %v931, %v933
      %940 = vst [vmem:[#allocation8 + $0x78] sm:$0xff] %v935
      %941 = vst [vmem:[#allocation8 + $0x80] sm:$0xff] %v936
      %942 = vst.msk [vmem:[#allocation8 + $0x88] sm:$0xff] %vm863, %v933
      %943 = vrot.lane.b32.xlu0 %v858, 92
      %v944 = vpop.permute.xlu0 %943
      %945 = vrot.lane.b32.xlu0 %v859, 92
      %v946 = vpop.permute.xlu0 %945
      %947 = vrot.lane.b32.xlu0 %v860, 92
      %v948 = vpop.permute.xlu0 %947
      %vm949 = vcmask 752640
      %v950 = vsel %vm949, %v944, %v946
      %v951 = vsel %vm949, %v946, %v948
      %955 = vst [vmem:[#allocation8 + $0x90] sm:$0xff] %v950
      %956 = vst [vmem:[#allocation8 + $0x98] sm:$0xff] %v951
      %957 = vst.msk [vmem:[#allocation8 + $0xa0] sm:$0xff] %vm863, %v948
      %958 = vrot.lane.b32.xlu0 %v858, 91
      %v959 = vpop.permute.xlu0 %958
      %960 = vrot.lane.b32.xlu0 %v859, 91
      %v961 = vpop.permute.xlu0 %960
      %962 = vrot.lane.b32.xlu0 %v860, 91
      %v963 = vpop.permute.xlu0 %962
      %vm964 = vcmask 744448
      %v965 = vsel %vm964, %v959, %v961
      %v966 = vsel %vm964, %v961, %v963
      %970 = vst [vmem:[#allocation8 + $0xa8] sm:$0xff] %v965
      %971 = vst [vmem:[#allocation8 + $0xb0] sm:$0xff] %v966
      %972 = vst.msk [vmem:[#allocation8 + $0xb8] sm:$0xff] %vm863, %v963
      %973 = vrot.lane.b32.xlu0 %v858, 90
      %v974 = vpop.permute.xlu0 %973
      %975 = vrot.lane.b32.xlu0 %v859, 90
      %v976 = vpop.permute.xlu0 %975
      %977 = vrot.lane.b32.xlu0 %v860, 90
      %v978 = vpop.permute.xlu0 %977
      %vm979 = vcmask 736256
      %v980 = vsel %vm979, %v974, %v976
      %v981 = vsel %vm979, %v976, %v978
      %985 = vst [vmem:[#allocation8 + $0xc0] sm:$0xff] %v980
      %986 = vst [vmem:[#allocation8 + $0xc8] sm:$0xff] %v981
      %987 = vst.msk [vmem:[#allocation8 + $0xd0] sm:$0xff] %vm863, %v978
      %v988 = vld [vmem:[#allocation8] sm:$0xff]
      %v989 = vld [vmem:[#allocation8 + $0x8] sm:$0xff]
      %v990 = vld [vmem:[#allocation8 + $0x10] sm:$0xff]
      %v991 = vld [vmem:[#allocation8 + $0x18] sm:$0xff]
      %v992 = vld [vmem:[#allocation8 + $0x20] sm:$0xff]
      %v993 = vld [vmem:[#allocation8 + $0x28] sm:$0xff]
      %v994 = vld [vmem:[#allocation8 + $0x30] sm:$0xff]
      %v995 = vld [vmem:[#allocation8 + $0x38] sm:$0xff]
      %v996 = vld [vmem:[#allocation8 + $0x40] sm:$0xff]
      %v997 = vld [vmem:[#allocation8 + $0x48] sm:$0xff]
      %v998 = vld [vmem:[#allocation8 + $0x50] sm:$0xff]
      %v999 = vld [vmem:[#allocation8 + $0x58] sm:$0xff]
      %v1000 = vld [vmem:[#allocation8 + $0x60] sm:$0xff]
      %v1001 = vld [vmem:[#allocation8 + $0x68] sm:$0xff]
      %v1002 = vld [vmem:[#allocation8 + $0x70] sm:$0xff]
      %v1003 = vld [vmem:[#allocation8 + $0x78] sm:$0xff]
      %v1004 = vld [vmem:[#allocation8 + $0x80] sm:$0xff]
      %v1005 = vld [vmem:[#allocation8 + $0x88] sm:$0xff]
      %v1006 = vld [vmem:[#allocation8 + $0x90] sm:$0xff]
      %v1007 = vld [vmem:[#allocation8 + $0x98] sm:$0xff]
      %v1008 = vld [vmem:[#allocation8 + $0xa0] sm:$0xff]
      %v1009 = vld [vmem:[#allocation8 + $0xa8] sm:$0xff]
      %v1010 = vld [vmem:[#allocation8 + $0xb0] sm:$0xff]
      %v1011 = vld [vmem:[#allocation8 + $0xb8] sm:$0xff]
      %v1012 = vld [vmem:[#allocation8 + $0xc0] sm:$0xff]
      %v1013 = vld [vmem:[#allocation8 + $0xc8] sm:$0xff]
      %v1014 = vld [vmem:[#allocation8 + $0xd0] sm:$0xff]
      %v1015 = vpack.c.bf16 %v991, %v988
      %v1016 = vpack.c.bf16 %v992, %v989
      %v1017 = vpack.c.bf16 %v993, %v990
      %v1018 = vpack.c.bf16 %v997, %v994
      %v1019 = vpack.c.bf16 %v998, %v995
      %v1020 = vpack.c.bf16 %v999, %v996
      %v1021 = vpack.c.bf16 %v1003, %v1000
      %v1022 = vpack.c.bf16 %v1004, %v1001
      %v1023 = vpack.c.bf16 %v1005, %v1002
      %v1024 = vpack.c.bf16 %v1009, %v1006
      %v1025 = vpack.c.bf16 %v1010, %v1007
      %v1026 = vpack.c.bf16 %v1011, %v1008
      %v1027 = vpack.c.bf16 %v1012, %v1012
      %v1028 = vpack.c.bf16 %v1013, %v1013
      %v1029 = vpack.c.bf16 %v1014, %v1014
      %v1030 = vld [vmem:[%s1] sm:$0xf]
      %v1031 = vld [vmem:[%s2] sm:$0xff]
      %1033 = vset.pattern.permute.xlu0 0
      %1034 = vperm.xlu0 %1033, %v1031
      %v1035 = vpop.permute.xlu0 %1034
      %vm1037 = vcmask 588800
      %v1039 = vsel %vm1037, %v1030, 0
      %vm1041 = vcmask 1043456
      %v1043 = vsel %vm1041, %v1027, 0
      %v1046 = vsel %vm1041, %v1028, 0
      %v1049 = vsel %vm1041, %v1029, 0
      %1051 = vmatprep.subr.bf16.mxu0 %v1016
      %1052 = vmatpush1.bf16.msra.mxu0 %v1015
      %1053 = vmatprep.subr.bf16.mxu0 %v1019
      %1054 = vmatpush1.bf16.msra.mxu0 %v1018
      %1055 = vmatprep.subr.bf16.mxu0 %v1022
      %1056 = vmatpush1.bf16.msra.mxu0 %v1021
      %1057 = vmatprep.subr.bf16.mxu0 %v1025
      %1058 = vmatpush1.bf16.msra.mxu0 %v1024
      %1059 = vmatprep.subr.bf16.mxu0 %v1046
      %1060 = vmatpush1.bf16.msra.mxu0 %v1043
      %1061 = vmatprep.subr.bf16.mxu0 0
      %1062 = vmatpush1.bf16.msra.mxu0 0
      %1063 = vmatprep.subr.bf16.mxu0 0
      %1064 = vmatpush1.bf16.msra.mxu0 0
      %1065 = vmatprep.subr.bf16.mxu0 0
      %1066 = vmatpush1.bf16.msra.mxu0 0
      %1067 = vmatprep.subr.bf16.mxu0 0
      %1068 = vmatpush1.bf16.msra.mxu0 0
      %1069 = vmatprep.subr.bf16.mxu0 0
      %1070 = vmatpush1.bf16.msra.mxu0 0
      %1071 = vmatprep.subr.bf16.mxu0 0
      %1072 = vmatpush1.bf16.msra.mxu0 0
      %1073 = vmatprep.subr.bf16.mxu0 0
      %1074 = vmatpush1.bf16.msra.mxu0 0
      %1075 = vmatprep.subr.bf16.mxu0 0
      %1076 = vmatpush1.bf16.msra.mxu0 0
      %1077 = vmatprep.subr.bf16.mxu0 0
      %1078 = vmatpush1.bf16.msra.mxu0 0
      %1079 = vmatprep.subr.bf16.mxu0 0
      %1080 = vmatpush1.bf16.msra.mxu0 0
      %1081 = vmatprep.subr.bf16.mxu0 0
      %1082 = vmatpush1.bf16.msra.mxu0 0
      %1083 = vmatprep.mubr.bf16.mxu0 0
      %1084 = vmatmul.mubr.bf16.gmra.mrb[0].mxu0 %v1039
      %v1085 = vpop.f32.mrb[0].mxu0
      %v1086 = vadd.f32 %v1035, %v1085
      %v1087 = vpop.f32.mrb[0].mxu0
      %v1088 = vadd.f32 %v1035, %v1087
      %v1089 = vpop.f32.mrb[0].mxu0
      %v1090 = vpop.f32.mrb[0].mxu0
      %1091 = vdwg.mxu0
      %1092 = vmatprep.subr.bf16.mxu0 0
      %1093 = vmatpush1.bf16.msra.mxu0 %v1017
      %1094 = vmatprep.subr.bf16.mxu0 0
      %1095 = vmatpush1.bf16.msra.mxu0 %v1020
      %1096 = vmatprep.subr.bf16.mxu0 0
      %1097 = vmatpush1.bf16.msra.mxu0 %v1023
      %1098 = vmatprep.subr.bf16.mxu0 0
      %1099 = vmatpush1.bf16.msra.mxu0 %v1026
      %1100 = vmatprep.subr.bf16.mxu0 0
      %1101 = vmatpush1.bf16.msra.mxu0 %v1049
      %1102 = vmatprep.subr.bf16.mxu0 0
      %1103 = vmatpush1.bf16.msra.mxu0 0
      %1104 = vmatprep.subr.bf16.mxu0 0
      %1105 = vmatpush1.bf16.msra.mxu0 0
      %1106 = vmatprep.subr.bf16.mxu0 0
      %1107 = vmatpush1.bf16.msra.mxu0 0
      %1108 = vmatprep.subr.bf16.mxu0 0
      %1109 = vmatpush1.bf16.msra.mxu0 0
      %1110 = vmatprep.subr.bf16.mxu0 0
      %1111 = vmatpush1.bf16.msra.mxu0 0
      %1112 = vmatprep.subr.bf16.mxu0 0
      %1113 = vmatpush1.bf16.msra.mxu0 0
      %1114 = vmatprep.subr.bf16.mxu0 0
      %1115 = vmatpush1.bf16.msra.mxu0 0
      %1116 = vmatprep.subr.bf16.mxu0 0
      %1117 = vmatpush1.bf16.msra.mxu0 0
      %1118 = vmatprep.subr.bf16.mxu0 0
      %1119 = vmatpush1.bf16.msra.mxu0 0
      %1120 = vmatprep.subr.bf16.mxu0 0
      %1121 = vmatpush1.bf16.msra.mxu0 0
      %1122 = vmatprep.subr.bf16.mxu0 0
      %1123 = vmatpush1.bf16.msra.mxu0 0
      %1124 = vmatprep.mubr.bf16.mxu0 0
      %1125 = vmatmul.mubr.bf16.gmra.mrb[0].mxu0 %v1039
      %v1126 = vpop.f32.mrb[0].mxu0
      %v1127 = vadd.f32 %v1035, %v1126
      %v1128 = vpop.f32.mrb[0].mxu0
      %v1129 = vpop.f32.mrb[0].mxu0
      %v1130 = vpop.f32.mrb[0].mxu0
      %1131 = vdwg.mxu0
      %vm1132 = vcmp.ge.f32.partialorder %v1086, 0.0
      %vm1133 = vcmp.ge.f32.partialorder %v1088, 0.0
      %vm1134 = vcmp.ge.f32.partialorder %v1127, 0.0
      %v1135 = vld [vmem:[%s3] sm:$0xff]
      %1137 = vset.pattern.permute.xlu0 0
      %1138 = vperm.xlu0 %1137, %v1135
      %v1139 = vpop.permute.xlu0 %1138
      %v1141 = vmul.f32 %v1139, %v1086
      %v1142 = vmul.f32 %v1139, %v1088
      %v1143 = vmul.f32 %v1139, %v1127
      %v1144 = vsel %vm1132, %v1086, %v1141
      %v1145 = vsel %vm1133, %v1088, %v1142
      %v1146 = vsel %vm1134, %v1127, %v1143
      %v1147 = vld [vmem:[%s4] sm:$0x7]
      %v1149 = vlaneseq
      %v1150 = vshrl.u32 %v1149, 7
      %v1151 = vsub.s32 0, %v1150
      %v1152 = vrot.slane %v1147, %v1151
      %v1153 = vlaneseq
      %v1154 = vshrl.u32 %v1153, 7
      %v1155 = vsub.s32 1, %v1154
      %v1156 = vrot.slane %v1147, %v1155
      %v1157 = vlaneseq
      %v1158 = vshrl.u32 %v1157, 7
      %v1159 = vsub.s32 2, %v1158
      %v1160 = vrot.slane %v1147, %v1159
      %v1164 = vmul.f32 %v1144, %v1152
      %v1165 = vmul.f32 %v1145, %v1156
      %v1166 = vmul.f32 %v1146, %v1160
      %vm1167 = vcmask 154624
      %1168 = vst.msk [vmem:[#allocation3] sm:$0xff] %vm1167, 0.0
      %vm1169 = vcmask 572824
      %1170 = vst.msk [vmem:[#allocation3 + $0x10] sm:$0xff] %vm1169, 0.0
      %1174 = vrot.lane.b32.xlu0 %v1164, 19
      %v1175 = vpop.permute.xlu0 %1174
      %1176 = vrot.lane.b32.xlu0 %v1165, 19
      %v1177 = vpop.permute.xlu0 %1176
      %1178 = vrot.lane.b32.xlu0 %v1166, 19
      %v1179 = vpop.permute.xlu0 %1178
      %v1180 = vsel %vm1167, %v1175, %v1177
      %v1181 = vsel %vm1167, %v1177, %v1179
      %vm1185 = vcmask 1047704
      %1186 = vst.msk [vmem:[#allocation3] sm:$0xff] %vm1185, %v1175
      %1187 = vst [vmem:[#allocation3 + $0x8] sm:$0xff] %v1180
      %vm1188 = vcmask 416768
      %1189 = vst.msk [vmem:[#allocation3 + $0x10] sm:$0xff] %vm1188, %v1181
      %v1190 = vld [vmem:[#allocation3] sm:$0xff]
      %v1191 = vld [vmem:[#allocation3 + $0x8] sm:$0xff]
      %v1192 = vld [vmem:[#allocation3 + $0x10] sm:$0xff]
      %1193 = vst [vmem:[#allocation9] sm:$0xff] %v1190
      %1194 = vst [vmem:[#allocation9 + $0x8] sm:$0xff] %v1191
      %1195 = vst.msk [vmem:[#allocation9 + $0x10] sm:$0xff] %vm863, %v1192
      %1199 = vrot.lane.b32.xlu0 %v1190, 127
      %v1200 = vpop.permute.xlu0 %1199
      %1201 = vrot.lane.b32.xlu0 %v1191, 127
      %v1202 = vpop.permute.xlu0 %1201
      %1203 = vrot.lane.b32.xlu0 %v1192, 127
      %v1204 = vpop.permute.xlu0 %1203
      %v1205 = vsel %vm874, %v1200, %v1202
      %v1206 = vsel %vm874, %v1202, %v1204
      %1210 = vst [vmem:[#allocation9 + $0x18] sm:$0xff] %v1205
      %1211 = vst [vmem:[#allocation9 + $0x20] sm:$0xff] %v1206
      %1212 = vst.msk [vmem:[#allocation9 + $0x28] sm:$0xff] %vm863, %v1204
      %1213 = vrot.lane.b32.xlu0 %v1190, 126
      %v1214 = vpop.permute.xlu0 %1213
      %1215 = vrot.lane.b32.xlu0 %v1191, 126
      %v1216 = vpop.permute.xlu0 %1215
      %1217 = vrot.lane.b32.xlu0 %v1192, 126
      %v1218 = vpop.permute.xlu0 %1217
      %v1219 = vsel %vm889, %v1214, %v1216
      %v1220 = vsel %vm889, %v1216, %v1218
      %1224 = vst [vmem:[#allocation9 + $0x30] sm:$0xff] %v1219
      %1225 = vst [vmem:[#allocation9 + $0x38] sm:$0xff] %v1220
      %1226 = vst.msk [vmem:[#allocation9 + $0x40] sm:$0xff] %vm863, %v1218
      %1227 = vrot.lane.b32.xlu0 %v1190, 110
      %v1228 = vpop.permute.xlu0 %1227
      %1229 = vrot.lane.b32.xlu0 %v1191, 110
      %v1230 = vpop.permute.xlu0 %1229
      %1231 = vrot.lane.b32.xlu0 %v1192, 110
      %v1232 = vpop.permute.xlu0 %1231
      %v1233 = vsel %vm904, %v1228, %v1230
      %v1234 = vsel %vm904, %v1230, %v1232
      %1238 = vst [vmem:[#allocation9 + $0x48] sm:$0xff] %v1233
      %1239 = vst [vmem:[#allocation9 + $0x50] sm:$0xff] %v1234
      %1240 = vst.msk [vmem:[#allocation9 + $0x58] sm:$0xff] %vm863, %v1232
      %1241 = vrot.lane.b32.xlu0 %v1190, 109
      %v1242 = vpop.permute.xlu0 %1241
      %1243 = vrot.lane.b32.xlu0 %v1191, 109
      %v1244 = vpop.permute.xlu0 %1243
      %1245 = vrot.lane.b32.xlu0 %v1192, 109
      %v1246 = vpop.permute.xlu0 %1245
      %v1247 = vsel %vm919, %v1242, %v1244
      %v1248 = vsel %vm919, %v1244, %v1246
      %1252 = vst [vmem:[#allocation9 + $0x60] sm:$0xff] %v1247
      %1253 = vst [vmem:[#allocation9 + $0x68] sm:$0xff] %v1248
      %1254 = vst.msk [vmem:[#allocation9 + $0x70] sm:$0xff] %vm863, %v1246
      %1255 = vrot.lane.b32.xlu0 %v1190, 108
      %v1256 = vpop.permute.xlu0 %1255
      %1257 = vrot.lane.b32.xlu0 %v1191, 108
      %v1258 = vpop.permute.xlu0 %1257
      %1259 = vrot.lane.b32.xlu0 %v1192, 108
      %v1260 = vpop.permute.xlu0 %1259
      %v1261 = vsel %vm934, %v1256, %v1258
      %v1262 = vsel %vm934, %v1258, %v1260
      %1266 = vst [vmem:[#allocation9 + $0x78] sm:$0xff] %v1261
      %1267 = vst [vmem:[#allocation9 + $0x80] sm:$0xff] %v1262
      %1268 = vst.msk [vmem:[#allocation9 + $0x88] sm:$0xff] %vm863, %v1260
      %1269 = vrot.lane.b32.xlu0 %v1190, 92
      %v1270 = vpop.permute.xlu0 %1269
      %1271 = vrot.lane.b32.xlu0 %v1191, 92
      %v1272 = vpop.permute.xlu0 %1271
      %1273 = vrot.lane.b32.xlu0 %v1192, 92
      %v1274 = vpop.permute.xlu0 %1273
      %v1275 = vsel %vm949, %v1270, %v1272
      %v1276 = vsel %vm949, %v1272, %v1274
      %1280 = vst [vmem:[#allocation9 + $0x90] sm:$0xff] %v1275
      %1281 = vst [vmem:[#allocation9 + $0x98] sm:$0xff] %v1276
      %1282 = vst.msk [vmem:[#allocation9 + $0xa0] sm:$0xff] %vm863, %v1274
      %1283 = vrot.lane.b32.xlu0 %v1190, 91
      %v1284 = vpop.permute.xlu0 %1283
      %1285 = vrot.lane.b32.xlu0 %v1191, 91
      %v1286 = vpop.permute.xlu0 %1285
      %1287 = vrot.lane.b32.xlu0 %v1192, 91
      %v1288 = vpop.permute.xlu0 %1287
      %v1289 = vsel %vm964, %v1284, %v1286
      %v1290 = vsel %vm964, %v1286, %v1288
      %1294 = vst [vmem:[#allocation9 + $0xa8] sm:$0xff] %v1289
      %1295 = vst [vmem:[#allocation9 + $0xb0] sm:$0xff] %v1290
      %1296 = vst.msk [vmem:[#allocation9 + $0xb8] sm:$0xff] %vm863, %v1288
      %1297 = vrot.lane.b32.xlu0 %v1190, 90
      %v1298 = vpop.permute.xlu0 %1297
      %1299 = vrot.lane.b32.xlu0 %v1191, 90
      %v1300 = vpop.permute.xlu0 %1299
      %1301 = vrot.lane.b32.xlu0 %v1192, 90
      %v1302 = vpop.permute.xlu0 %1301
      %v1303 = vsel %vm979, %v1298, %v1300
      %v1304 = vsel %vm979, %v1300, %v1302
      %1308 = vst [vmem:[#allocation9 + $0xc0] sm:$0xff] %v1303
      %1309 = vst [vmem:[#allocation9 + $0xc8] sm:$0xff] %v1304
      %1310 = vst.msk [vmem:[#allocation9 + $0xd0] sm:$0xff] %vm863, %v1302
      %v1311 = vld [vmem:[#allocation9] sm:$0xff]
      %v1312 = vld [vmem:[#allocation9 + $0x8] sm:$0xff]
      %v1313 = vld [vmem:[#allocation9 + $0x10] sm:$0xff]
      %v1314 = vld [vmem:[#allocation9 + $0x18] sm:$0xff]
      %v1315 = vld [vmem:[#allocation9 + $0x20] sm:$0xff]
      %v1316 = vld [vmem:[#allocation9 + $0x28] sm:$0xff]
      %v1317 = vld [vmem:[#allocation9 + $0x30] sm:$0xff]
      %v1318 = vld [vmem:[#allocation9 + $0x38] sm:$0xff]
      %v1319 = vld [vmem:[#allocation9 + $0x40] sm:$0xff]
      %v1320 = vld [vmem:[#allocation9 + $0x48] sm:$0xff]
      %v1321 = vld [vmem:[#allocation9 + $0x50] sm:$0xff]
      %v1322 = vld [vmem:[#allocation9 + $0x58] sm:$0xff]
      %v1323 = vld [vmem:[#allocation9 + $0x60] sm:$0xff]
      %v1324 = vld [vmem:[#allocation9 + $0x68] sm:$0xff]
      %v1325 = vld [vmem:[#allocation9 + $0x70] sm:$0xff]
      %v1326 = vld [vmem:[#allocation9 + $0x78] sm:$0xff]
      %v1327 = vld [vmem:[#allocation9 + $0x80] sm:$0xff]
      %v1328 = vld [vmem:[#allocation9 + $0x88] sm:$0xff]
      %v1329 = vld [vmem:[#allocation9 + $0x90] sm:$0xff]
      %v1330 = vld [vmem:[#allocation9 + $0x98] sm:$0xff]
      %v1331 = vld [vmem:[#allocation9 + $0xa0] sm:$0xff]
      %v1332 = vld [vmem:[#allocation9 + $0xa8] sm:$0xff]
      %v1333 = vld [vmem:[#allocation9 + $0xb0] sm:$0xff]
      %v1334 = vld [vmem:[#allocation9 + $0xb8] sm:$0xff]
      %v1335 = vld [vmem:[#allocation9 + $0xc0] sm:$0xff]
      %v1336 = vld [vmem:[#allocation9 + $0xc8] sm:$0xff]
      %v1337 = vld [vmem:[#allocation9 + $0xd0] sm:$0xff]
      %v1338 = vpack.c.bf16 %v1314, %v1311
      %v1339 = vpack.c.bf16 %v1315, %v1312
      %v1340 = vpack.c.bf16 %v1316, %v1313
      %v1341 = vpack.c.bf16 %v1320, %v1317
      %v1342 = vpack.c.bf16 %v1321, %v1318
      %v1343 = vpack.c.bf16 %v1322, %v1319
      %v1344 = vpack.c.bf16 %v1326, %v1323
      %v1345 = vpack.c.bf16 %v1327, %v1324
      %v1346 = vpack.c.bf16 %v1328, %v1325
      %v1347 = vpack.c.bf16 %v1332, %v1329
      %v1348 = vpack.c.bf16 %v1333, %v1330
      %v1349 = vpack.c.bf16 %v1334, %v1331
      %v1350 = vpack.c.bf16 %v1335, %v1335
      %v1351 = vpack.c.bf16 %v1336, %v1336
      %v1352 = vpack.c.bf16 %v1337, %v1337
      %v1353 = vld [vmem:[%s5] sm:$0xf]
      %v1354 = vld [vmem:[%s6] sm:$0xff]
      %1356 = vset.pattern.permute.xlu0 0
      %1357 = vperm.xlu0 %1356, %v1354
      %v1358 = vpop.permute.xlu0 %1357
      %v1361 = vsel %vm1037, %v1353, 0
      %v1364 = vsel %vm1041, %v1350, 0
      %v1367 = vsel %vm1041, %v1351, 0
      %v1370 = vsel %vm1041, %v1352, 0
      %1372 = vmatprep.subr.bf16.mxu0 %v1339
      %1373 = vmatpush1.bf16.msra.mxu0 %v1338
      %1374 = vmatprep.subr.bf16.mxu0 %v1342
      %1375 = vmatpush1.bf16.msra.mxu0 %v1341
      %1376 = vmatprep.subr.bf16.mxu0 %v1345
      %1377 = vmatpush1.bf16.msra.mxu0 %v1344
      %1378 = vmatprep.subr.bf16.mxu0 %v1348
      %1379 = vmatpush1.bf16.msra.mxu0 %v1347
      %1380 = vmatprep.subr.bf16.mxu0 %v1367
      %1381 = vmatpush1.bf16.msra.mxu0 %v1364
      %1382 = vmatprep.subr.bf16.mxu0 0
      %1383 = vmatpush1.bf16.msra.mxu0 0
      %1384 = vmatprep.subr.bf16.mxu0 0
      %1385 = vmatpush1.bf16.msra.mxu0 0
      %1386 = vmatprep.subr.bf16.mxu0 0
      %1387 = vmatpush1.bf16.msra.mxu0 0
      %1388 = vmatprep.subr.bf16.mxu0 0
      %1389 = vmatpush1.bf16.msra.mxu0 0
      %1390 = vmatprep.subr.bf16.mxu0 0
      %1391 = vmatpush1.bf16.msra.mxu0 0
      %1392 = vmatprep.subr.bf16.mxu0 0
      %1393 = vmatpush1.bf16.msra.mxu0 0
      %1394 = vmatprep.subr.bf16.mxu0 0
      %1395 = vmatpush1.bf16.msra.mxu0 0
      %1396 = vmatprep.subr.bf16.mxu0 0
      %1397 = vmatpush1.bf16.msra.mxu0 0
      %1398 = vmatprep.subr.bf16.mxu0 0
      %1399 = vmatpush1.bf16.msra.mxu0 0
      %1400 = vmatprep.subr.bf16.mxu0 0
      %1401 = vmatpush1.bf16.msra.mxu0 0
      %1402 = vmatprep.subr.bf16.mxu0 0
      %1403 = vmatpush1.bf16.msra.mxu0 0
      %1404 = vmatprep.mubr.bf16.mxu0 0
      %1405 = vmatmul.mubr.bf16.gmra.mrb[0].mxu0 %v1361
      %v1406 = vpop.f32.mrb[0].mxu0
      %v1407 = vadd.f32 %v1358, %v1406
      %v1408 = vpop.f32.mrb[0].mxu0
      %v1409 = vadd.f32 %v1358, %v1408
      %v1410 = vpop.f32.mrb[0].mxu0
      %v1411 = vpop.f32.mrb[0].mxu0
      %1412 = vdwg.mxu0
      %1413 = vmatprep.subr.bf16.mxu0 0
      %1414 = vmatpush1.bf16.msra.mxu0 %v1340
      %1415 = vmatprep.subr.bf16.mxu0 0
      %1416 = vmatpush1.bf16.msra.mxu0 %v1343
      %1417 = vmatprep.subr.bf16.mxu0 0
      %1418 = vmatpush1.bf16.msra.mxu0 %v1346
      %1419 = vmatprep.subr.bf16.mxu0 0
      %1420 = vmatpush1.bf16.msra.mxu0 %v1349
      %1421 = vmatprep.subr.bf16.mxu0 0
      %1422 = vmatpush1.bf16.msra.mxu0 %v1370
      %1423 = vmatprep.subr.bf16.mxu0 0
      %1424 = vmatpush1.bf16.msra.mxu0 0
      %1425 = vmatprep.subr.bf16.mxu0 0
      %1426 = vmatpush1.bf16.msra.mxu0 0
      %1427 = vmatprep.subr.bf16.mxu0 0
      %1428 = vmatpush1.bf16.msra.mxu0 0
      %1429 = vmatprep.subr.bf16.mxu0 0
      %1430 = vmatpush1.bf16.msra.mxu0 0
      %1431 = vmatprep.subr.bf16.mxu0 0
      %1432 = vmatpush1.bf16.msra.mxu0 0
      %1433 = vmatprep.subr.bf16.mxu0 0
      %1434 = vmatpush1.bf16.msra.mxu0 0
      %1435 = vmatprep.subr.bf16.mxu0 0
      %1436 = vmatpush1.bf16.msra.mxu0 0
      %1437 = vmatprep.subr.bf16.mxu0 0
      %1438 = vmatpush1.bf16.msra.mxu0 0
      %1439 = vmatprep.subr.bf16.mxu0 0
      %1440 = vmatpush1.bf16.msra.mxu0 0
      %1441 = vmatprep.subr.bf16.mxu0 0
      %1442 = vmatpush1.bf16.msra.mxu0 0
      %1443 = vmatprep.subr.bf16.mxu0 0
      %1444 = vmatpush1.bf16.msra.mxu0 0
      %1445 = vmatprep.mubr.bf16.mxu0 0
      %1446 = vmatmul.mubr.bf16.gmra.mrb[0].mxu0 %v1361
      %v1447 = vpop.f32.mrb[0].mxu0
      %v1448 = vadd.f32 %v1358, %v1447
      %v1449 = vpop.f32.mrb[0].mxu0
      %v1450 = vpop.f32.mrb[0].mxu0
      %v1451 = vpop.f32.mrb[0].mxu0
      %1452 = vdwg.mxu0
      %vm1453 = vcmp.ge.f32.partialorder %v1407, 0.0
      %vm1454 = vcmp.ge.f32.partialorder %v1409, 0.0
      %vm1455 = vcmp.ge.f32.partialorder %v1448, 0.0
      %v1456 = vld [vmem:[%s7] sm:$0xff]
      %1458 = vset.pattern.permute.xlu0 0
      %1459 = vperm.xlu0 %1458, %v1456
      %v1460 = vpop.permute.xlu0 %1459
      %v1462 = vmul.f32 %v1460, %v1407
      %v1463 = vmul.f32 %v1460, %v1409
      %v1464 = vmul.f32 %v1460, %v1448
      %v1465 = vsel %vm1453, %v1407, %v1462
      %v1466 = vsel %vm1454, %v1409, %v1463
      %v1467 = vsel %vm1455, %v1448, %v1464
      %1471 = vrot.lane.b32.xlu0 %v1465, 127
      %v1472 = vpop.permute.xlu0 %1471
      %1473 = vrot.lane.b32.xlu0 %v1466, 127
      %v1474 = vpop.permute.xlu0 %1473
      %1475 = vrot.lane.b32.xlu0 %v1467, 127
      %v1476 = vpop.permute.xlu0 %1475
      %v1477 = vsel %vm874, %v1472, %v1474
      %v1478 = vsel %vm874, %v1474, %v1476
      %v1482 = vmax.f32 %v1465, %v1477
      %v1483 = vmax.f32 %v1466, %v1478
      %v1484 = vmax.f32 %v1467, %v1476
      %1488 = vrot.lane.b32.xlu0 %v1482, 110
      %v1489 = vpop.permute.xlu0 %1488
      %1490 = vrot.lane.b32.xlu0 %v1483, 110
      %v1491 = vpop.permute.xlu0 %1490
      %1492 = vrot.lane.b32.xlu0 %v1484, 110
      %v1493 = vpop.permute.xlu0 %1492
      %v1494 = vsel %vm904, %v1489, %v1491
      %v1495 = vsel %vm904, %v1491, %v1493
      %v1499 = vmax.f32 %v1482, %v1494
      %v1500 = vmax.f32 %v1483, %v1495
      %v1501 = vmax.f32 %v1484, %v1493
      %v1502 = vld [vmem:[%s8] sm:$0xff]
      %v1503 = vld [vmem:[%s8 + $0x8] sm:$0xff]
      %v1504 = vld [vmem:[%s8 + $0x10] sm:$0xff]
      %v1505 = vld [vmem:[%s8 + $0x18] sm:$0xff]
      %v1506 = vld [vmem:[%s8 + $0x20] sm:$0xff]
      %v1507 = vld [vmem:[%s8 + $0x28] sm:$0xff]
      %v1508 = vld [vmem:[%s8 + $0x30] sm:$0xff]
      %v1509 = vld [vmem:[%s8 + $0x38] sm:$0xff]
      %v1510 = vld [vmem:[%s8 + $0x40] sm:$0xff]
      %v1511 = vld [vmem:[%s8 + $0x48] sm:$0xff]
      %v1512 = vld [vmem:[%s8 + $0x50] sm:$0xff]
      %v1513 = vld [vmem:[%s8 + $0x58] sm:$0xff]
      %v1514 = vld [vmem:[%s8 + $0x60] sm:$0xff]
      %v1515 = vld [vmem:[%s8 + $0x68] sm:$0xff]
      %v1516 = vld [vmem:[%s8 + $0x70] sm:$0xff]
      %v1517 = vld [vmem:[%s8 + $0x78] sm:$0xff]
      %v1518 = vld [vmem:[%s8 + $0x80] sm:$0xff]
      %v1519 = vld [vmem:[%s8 + $0x88] sm:$0xff]
      %v1520 = vld [vmem:[%s8 + $0x90] sm:$0xff]
      %v1521 = vld [vmem:[%s8 + $0x98] sm:$0xff]
      %v1522 = vld [vmem:[%s8 + $0xa0] sm:$0xff]
      %v1523 = vld [vmem:[%s8 + $0xa8] sm:$0xff]
      %v1524 = vld [vmem:[%s8 + $0xb0] sm:$0xff]
      %v1525 = vld [vmem:[%s8 + $0xb8] sm:$0xff]
      %v1526 = vld [vmem:[%s8 + $0xc0] sm:$0xff]
      %v1527 = vld [vmem:[%s8 + $0xc8] sm:$0xff]
      %v1528 = vld [vmem:[%s8 + $0xd0] sm:$0xff]
      %v1529 = vld [vmem:[%s8 + $0xd8] sm:$0xff]
      %v1530 = vld [vmem:[%s8 + $0xe0] sm:$0xff]
      %v1531 = vld [vmem:[%s8 + $0xe8] sm:$0xff]
      %v1532 = vld [vmem:[%s8 + $0xf0] sm:$0xff]
      %v1533 = vld [vmem:[%s8 + $0xf8] sm:$0xff]
      %v1534 = vld [vmem:[%s8 + $0x100] sm:$0xff]
      %v1535 = vld [vmem:[%s8 + $0x108] sm:$0x1f]
      %v1537 = vsel %vm846, %v1501, 0
      %vm1539 = vcmask 1044480
      %v1541 = vsel %vm1539, %v1535, 0
      %1543 = vmatprep.subr.mxu0 0.0
      %1544 = vmatpush1.msra.mxu0 %v1502
      %1545 = vmatprep.subr.mxu0 0.0
      %1546 = vmatpush1.msra.mxu0 %v1503
      %1547 = vmatprep.subr.mxu0 0.0
      %1548 = vmatpush1.msra.mxu0 %v1504
      %1549 = vmatprep.subr.mxu0 0.0
      %1550 = vmatpush1.msra.mxu0 %v1505
      %1551 = vmatprep.subr.mxu0 0.0
      %1552 = vmatpush1.msra.mxu0 %v1506
      %1553 = vmatprep.subr.mxu0 0.0
      %1554 = vmatpush1.msra.mxu0 %v1507
      %1555 = vmatprep.subr.mxu0 0.0
      %1556 = vmatpush1.msra.mxu0 %v1508
      %1557 = vmatprep.subr.mxu0 0.0
      %1558 = vmatpush1.msra.mxu0 %v1509
      %1559 = vmatprep.subr.mxu0 0.0
      %1560 = vmatpush1.msra.mxu0 %v1510
      %1561 = vmatprep.subr.mxu0 0.0
      %1562 = vmatpush1.msra.mxu0 %v1511
      %1563 = vmatprep.subr.mxu0 0.0
      %1564 = vmatpush1.msra.mxu0 %v1512
      %1565 = vmatprep.subr.mxu0 0.0
      %1566 = vmatpush1.msra.mxu0 %v1513
      %1567 = vmatprep.subr.mxu0 0.0
      %1568 = vmatpush1.msra.mxu0 %v1514
      %1569 = vmatprep.subr.mxu0 0.0
      %1570 = vmatpush1.msra.mxu0 %v1515
      %1571 = vmatprep.subr.mxu0 0.0
      %1572 = vmatpush1.msra.mxu0 %v1516
      %1573 = vmatprep.subr.mxu0 0.0
      %1574 = vmatpush1.msra.mxu0 %v1517
      %1575 = vmatprep.subr.mxu0 0.0
      %1576 = vmatpush1.msra.mxu0 %v1518
      %1577 = vmatprep.subr.mxu0 0.0
      %1578 = vmatpush1.msra.mxu0 %v1519
      %1579 = vmatprep.subr.mxu0 0.0
      %1580 = vmatpush1.msra.mxu0 %v1520
      %1581 = vmatprep.subr.mxu0 0.0
      %1582 = vmatpush1.msra.mxu0 %v1521
      %1583 = vmatprep.subr.mxu0 0.0
      %1584 = vmatpush1.msra.mxu0 %v1522
      %1585 = vmatprep.subr.mxu0 0.0
      %1586 = vmatpush1.msra.mxu0 %v1523
      %1587 = vmatprep.subr.mxu0 0.0
      %1588 = vmatpush1.msra.mxu0 %v1524
      %1589 = vmatprep.subr.mxu0 0.0
      %1590 = vmatpush1.msra.mxu0 %v1525
      %1591 = vmatprep.subr.mxu0 0.0
      %1592 = vmatpush1.msra.mxu0 %v1526
      %1593 = vmatprep.subr.mxu0 0.0
      %1594 = vmatpush1.msra.mxu0 %v1527
      %1595 = vmatprep.subr.mxu0 0.0
      %1596 = vmatpush1.msra.mxu0 %v1528
      %1597 = vmatprep.subr.mxu0 0.0
      %1598 = vmatpush1.msra.mxu0 %v1529
      %1599 = vmatprep.subr.mxu0 0.0
      %1600 = vmatpush1.msra.mxu0 %v1530
      %1601 = vmatprep.subr.mxu0 0.0
      %1602 = vmatpush1.msra.mxu0 %v1531
      %1603 = vmatprep.subr.mxu0 0.0
      %1604 = vmatpush1.msra.mxu0 %v1532
      %1605 = vmatprep.subr.mxu0 0.0
      %1606 = vmatpush1.msra.mxu0 %v1533
      %1607 = vmatprep.mubr.f32.mxu0 %v1500
      %1608 = vmatmul.mubr.f32.gmra.mrb[0].mxu0 %v1499
      %v1609 = vpop.f32.mrb[0].mxu0
      %v1610 = vadd.f32 0.0, %v1609
      %v1611 = vpop.f32.mrb[0].mxu0
      %1612 = vdwg.mxu0
      %1613 = vmatprep.subr.mxu0 0.0
      %1614 = vmatpush1.msra.mxu0 %v1534
      %1615 = vmatprep.subr.mxu0 0.0
      %1616 = vmatpush1.msra.mxu0 %v1541
      %1617 = vmatprep.subr.mxu0 0.0
      %1618 = vmatpush1.msra.mxu0 0.0
      %1619 = vmatprep.subr.mxu0 0.0
      %1620 = vmatpush1.msra.mxu0 0.0
      %1621 = vmatprep.subr.mxu0 0.0
      %1622 = vmatpush1.msra.mxu0 0.0
      %1623 = vmatprep.subr.mxu0 0.0
      %1624 = vmatpush1.msra.mxu0 0.0
      %1625 = vmatprep.subr.mxu0 0.0
      %1626 = vmatpush1.msra.mxu0 0.0
      %1627 = vmatprep.subr.mxu0 0.0
      %1628 = vmatpush1.msra.mxu0 0.0
      %1629 = vmatprep.subr.mxu0 0.0
      %1630 = vmatpush1.msra.mxu0 0.0
      %1631 = vmatprep.subr.mxu0 0.0
      %1632 = vmatpush1.msra.mxu0 0.0
      %1633 = vmatprep.subr.mxu0 0.0
      %1634 = vmatpush1.msra.mxu0 0.0
      %1635 = vmatprep.subr.mxu0 0.0
      %1636 = vmatpush1.msra.mxu0 0.0
      %1637 = vmatprep.subr.mxu0 0.0
      %1638 = vmatpush1.msra.mxu0 0.0
      %1639 = vmatprep.subr.mxu0 0.0
      %1640 = vmatpush1.msra.mxu0 0.0
      %1641 = vmatprep.subr.mxu0 0.0
      %1642 = vmatpush1.msra.mxu0 0.0
      %1643 = vmatprep.subr.mxu0 0.0
      %1644 = vmatpush1.msra.mxu0 0.0
      %1645 = vmatprep.subr.mxu0 0.0
      %1646 = vmatpush1.msra.mxu0 0.0
      %1647 = vmatprep.subr.mxu0 0.0
      %1648 = vmatpush1.msra.mxu0 0.0
      %1649 = vmatprep.subr.mxu0 0.0
      %1650 = vmatpush1.msra.mxu0 0.0
      %1651 = vmatprep.subr.mxu0 0.0
      %1652 = vmatpush1.msra.mxu0 0.0
      %1653 = vmatprep.subr.mxu0 0.0
      %1654 = vmatpush1.msra.mxu0 0.0
      %1655 = vmatprep.subr.mxu0 0.0
      %1656 = vmatpush1.msra.mxu0 0.0
      %1657 = vmatprep.subr.mxu0 0.0
      %1658 = vmatpush1.msra.mxu0 0.0
      %1659 = vmatprep.subr.mxu0 0.0
      %1660 = vmatpush1.msra.mxu0 0.0
      %1661 = vmatprep.subr.mxu0 0.0
      %1662 = vmatpush1.msra.mxu0 0.0
      %1663 = vmatprep.subr.mxu0 0.0
      %1664 = vmatpush1.msra.mxu0 0.0
      %1665 = vmatprep.subr.mxu0 0.0
      %1666 = vmatpush1.msra.mxu0 0.0
      %1667 = vmatprep.subr.mxu0 0.0
      %1668 = vmatpush1.msra.mxu0 0.0
      %1669 = vmatprep.subr.mxu0 0.0
      %1670 = vmatpush1.msra.mxu0 0.0
      %1671 = vmatprep.subr.mxu0 0.0
      %1672 = vmatpush1.msra.mxu0 0.0
      %1673 = vmatprep.subr.mxu0 0.0
      %1674 = vmatpush1.msra.mxu0 0.0
      %1675 = vmatprep.subr.mxu0 0.0
      %1676 = vmatpush1.msra.mxu0 0.0
      %1677 = vmatprep.mubr.f32.mxu0 0.0
      %1678 = vmatmul.mubr.f32.gmra.mrb[0].mxu0 %v1537
      %v1679 = vpop.f32.mrb[0].mxu0
      %v1680 = vadd.f32 %v1610, %v1679
      %v1681 = vpop.f32.mrb[0].mxu0
      %1682 = vdwg.mxu0
      %vm1683 = vcmask 834560
      %1684 = vst.msk [vmem:[#allocation4] sm:$0xff] %vm1683, %v1680
      %v1685 = vld [vmem:[#allocation4] sm:$0xff]
      %vm1686 = vcmask 654336
      %1687 = vst.msk [vmem:[#allocation10] sm:$0xff] %vm1686, %v1685
      %1689 = vrot.lane.b32.xlu0 %v1685, 127
      %v1690 = vpop.permute.xlu0 %1689
      %1692 = vst.msk [vmem:[#allocation10 + $0x8] sm:$0xff] %vm1686, %v1690
      %1693 = vrot.lane.b32.xlu0 %v1685, 126
      %v1694 = vpop.permute.xlu0 %1693
      %1696 = vst.msk [vmem:[#allocation10 + $0x10] sm:$0xff] %vm1686, %v1694
      %1697 = vrot.lane.b32.xlu0 %v1685, 118
      %v1698 = vpop.permute.xlu0 %1697
      %1700 = vst.msk [vmem:[#allocation10 + $0x18] sm:$0xff] %vm1686, %v1698
      %1701 = vrot.lane.b32.xlu0 %v1685, 117
      %v1702 = vpop.permute.xlu0 %1701
      %1704 = vst.msk [vmem:[#allocation10 + $0x20] sm:$0xff] %vm1686, %v1702
      %1705 = vrot.lane.b32.xlu0 %v1685, 116
      %v1706 = vpop.permute.xlu0 %1705
      %1708 = vst.msk [vmem:[#allocation10 + $0x28] sm:$0xff] %vm1686, %v1706
      %1709 = vrot.lane.b32.xlu0 %v1685, 108
      %v1710 = vpop.permute.xlu0 %1709
      %1712 = vst.msk [vmem:[#allocation10 + $0x30] sm:$0xff] %vm1686, %v1710
      %1713 = vrot.lane.b32.xlu0 %v1685, 107
      %v1714 = vpop.permute.xlu0 %1713
      %1716 = vst.msk [vmem:[#allocation10 + $0x38] sm:$0xff] %vm1686, %v1714
      %1717 = vrot.lane.b32.xlu0 %v1685, 106
      %v1718 = vpop.permute.xlu0 %1717
      %1720 = vst.msk [vmem:[#allocation10 + $0x40] sm:$0xff] %vm1686, %v1718
      %v1721 = vld [vmem:[#allocation10] sm:$0xff]
      %v1722 = vld [vmem:[#allocation10 + $0x8] sm:$0xff]
      %v1723 = vld [vmem:[#allocation10 + $0x10] sm:$0xff]
      %v1724 = vld [vmem:[#allocation10 + $0x18] sm:$0xff]
      %v1725 = vld [vmem:[#allocation10 + $0x20] sm:$0xff]
      %v1726 = vld [vmem:[#allocation10 + $0x28] sm:$0xff]
      %v1727 = vld [vmem:[#allocation10 + $0x30] sm:$0xff]
      %v1728 = vld [vmem:[#allocation10 + $0x38] sm:$0xff]
      %v1729 = vld [vmem:[#allocation10 + $0x40] sm:$0xff]
      %v1730 = vpack.c.bf16 %v1722, %v1721
      %v1731 = vpack.c.bf16 %v1724, %v1723
      %v1732 = vpack.c.bf16 %v1726, %v1725
      %v1733 = vpack.c.bf16 %v1728, %v1727
      %v1734 = vpack.c.bf16 %v1729, %v1729
      %v1735 = vld [vmem:[%s9] sm:$0xf]
      %v1736 = vld [vmem:[%s9 + $0x4] sm:$0xf]
      %v1737 = vld [vmem:[%s10] sm:$0xff]
      %v1738 = vld [vmem:[%s10 + $0x8] sm:$0xff]
      %1740 = vset.pattern.permute.xlu0 0
      %1741 = vperm.xlu0 %1740, %v1737
      %v1742 = vpop.permute.xlu0 %1741
      %1745 = vset.pattern.permute.xlu0 0
      %1746 = vperm.xlu0 %1745, %v1738
      %v1747 = vpop.permute.xlu0 %1746
      %v1751 = vunpack.c.l.b16 %v1735
      %v1752 = vunpack.c.l.b16 %v1736
      %v1753 = vpack.c.b16 %v1752, %v1751
      %v1755 = vsel %vm1037, %v1753, 0
      %v1758 = vsel %vm1041, %v1734, 0
      %1760 = vmatprep.subr.bf16.mxu0 0
      %1761 = vmatpush1.bf16.msra.mxu0 %v1730
      %1762 = vmatprep.subr.bf16.mxu0 0
      %1763 = vmatpush1.bf16.msra.mxu0 %v1731
      %1764 = vmatprep.subr.bf16.mxu0 0
      %1765 = vmatpush1.bf16.msra.mxu0 %v1732
      %1766 = vmatprep.subr.bf16.mxu0 0
      %1767 = vmatpush1.bf16.msra.mxu0 %v1733
      %1768 = vmatprep.subr.bf16.mxu0 0
      %1769 = vmatpush1.bf16.msra.mxu0 %v1758
      %1770 = vmatprep.subr.bf16.mxu0 0
      %1771 = vmatpush1.bf16.msra.mxu0 0
      %1772 = vmatprep.subr.bf16.mxu0 0
      %1773 = vmatpush1.bf16.msra.mxu0 0
      %1774 = vmatprep.subr.bf16.mxu0 0
      %1775 = vmatpush1.bf16.msra.mxu0 0
      %1776 = vmatprep.subr.bf16.mxu0 0
      %1777 = vmatpush1.bf16.msra.mxu0 0
      %1778 = vmatprep.subr.bf16.mxu0 0
      %1779 = vmatpush1.bf16.msra.mxu0 0
      %1780 = vmatprep.subr.bf16.mxu0 0
      %1781 = vmatpush1.bf16.msra.mxu0 0
      %1782 = vmatprep.subr.bf16.mxu0 0
      %1783 = vmatpush1.bf16.msra.mxu0 0
      %1784 = vmatprep.subr.bf16.mxu0 0
      %1785 = vmatpush1.bf16.msra.mxu0 0
      %1786 = vmatprep.subr.bf16.mxu0 0
      %1787 = vmatpush1.bf16.msra.mxu0 0
      %1788 = vmatprep.subr.bf16.mxu0 0
      %1789 = vmatpush1.bf16.msra.mxu0 0
      %1790 = vmatprep.subr.bf16.mxu0 0
      %1791 = vmatpush1.bf16.msra.mxu0 0
      %1792 = vmatprep.mubr.bf16.mxu0 0
      %1793 = vmatmul.mubr.bf16.gmra.mrb[0].mxu0 %v1755
      %v1794 = vpop.f32.mrb[0].mxu0
      %v1795 = vadd.f32 %v1742, %v1794
      %v1796 = vpop.f32.mrb[0].mxu0
      %v1797 = vpop.f32.mrb[0].mxu0
      %v1798 = vadd.f32 %v1747, %v1797
      %v1799 = vpop.f32.mrb[0].mxu0
      %1800 = vdwg.mxu0
      %vm1801 = vcmp.ge.f32.partialorder %v1795, 0.0
      %vm1802 = vcmp.ge.f32.partialorder %v1798, 0.0
      %v1803 = vld [vmem:[%s11] sm:$0xff]
      %v1804 = vld [vmem:[%s11 + $0x8] sm:$0xff]
      %1806 = vset.pattern.permute.xlu0 0
      %1807 = vperm.xlu0 %1806, %v1803
      %v1808 = vpop.permute.xlu0 %1807
      %1811 = vset.pattern.permute.xlu0 0
      %1812 = vperm.xlu0 %1811, %v1804
      %v1813 = vpop.permute.xlu0 %1812
      %v1815 = vmul.f32 %v1808, %v1795
      %v1816 = vmul.f32 %v1813, %v1798
      %v1817 = vsel %vm1801, %v1795, %v1815
      %v1818 = vsel %vm1802, %v1798, %v1816
      %v1819 = vld [vmem:[%s12] sm:$0x1]
      %v1821 = vlaneseq
      %v1822 = vshrl.u32 %v1821, 7
      %v1823 = vsub.s32 0, %v1822
      %v1824 = vrot.slane %v1819, %v1823
      %v1826 = vmul.f32 %v1817, %v1824
      %v1827 = vmul.f32 %v1818, %v1824
      %vm1828 = vcmask 89088
      %1829 = vst.msk [vmem:[#allocation5] sm:$0xff] %vm1828, 0.0
      %1830 = vst.msk [vmem:[#allocation5 + $0x8] sm:$0xff] %vm1828, 0.0
      %vm1831 = vcmask 835288
      %1832 = vst.msk [vmem:[#allocation5] sm:$0xff] %vm1831, 0.0
      %1833 = vst.msk [vmem:[#allocation5 + $0x8] sm:$0xff] %vm1831, 0.0
      %1836 = vrot.lane.b32.xlu0 %v1826, 11
      %v1837 = vpop.permute.xlu0 %1836
      %1838 = vrot.lane.b32.xlu0 %v1827, 11
      %v1839 = vpop.permute.xlu0 %1838
      %vm1842 = vcmask 744536
      %1843 = vst.msk [vmem:[#allocation5] sm:$0xff] %vm1842, %v1837
      %1844 = vst.msk [vmem:[#allocation5 + $0x8] sm:$0xff] %vm1842, %v1839
      %v1845 = vld [vmem:[#allocation5] sm:$0xff]
      %v1846 = vld [vmem:[#allocation5 + $0x8] sm:$0xff]
      %v1847 = vpack.c.bf16 %v1846, %v1845
      %1848 = vst.msk [vmem:[#allocation11] sm:$0xff] %vm1686, %v1847
      %1850 = vrot.lane.b32.xlu0 %v1847, 127
      %v1851 = vpop.permute.xlu0 %1850
      %1853 = vst.msk [vmem:[#allocation11 + $0x8] sm:$0xff] %vm1686, %v1851
      %1854 = vrot.lane.b32.xlu0 %v1847, 126
      %v1855 = vpop.permute.xlu0 %1854
      %1857 = vst.msk [vmem:[#allocation11 + $0x10] sm:$0xff] %vm1686, %v1855
      %1858 = vrot.lane.b32.xlu0 %v1847, 118
      %v1859 = vpop.permute.xlu0 %1858
      %1861 = vst.msk [vmem:[#allocation11 + $0x18] sm:$0xff] %vm1686, %v1859
      %1862 = vrot.lane.b32.xlu0 %v1847, 117
      %v1863 = vpop.permute.xlu0 %1862
      %1865 = vst.msk [vmem:[#allocation11 + $0x20] sm:$0xff] %vm1686, %v1863
      %1866 = vrot.lane.b32.xlu0 %v1847, 116
      %v1867 = vpop.permute.xlu0 %1866
      %1869 = vst.msk [vmem:[#allocation11 + $0x28] sm:$0xff] %vm1686, %v1867
      %1870 = vrot.lane.b32.xlu0 %v1847, 108
      %v1871 = vpop.permute.xlu0 %1870
      %1873 = vst.msk [vmem:[#allocation11 + $0x30] sm:$0xff] %vm1686, %v1871
      %1874 = vrot.lane.b32.xlu0 %v1847, 107
      %v1875 = vpop.permute.xlu0 %1874
      %1877 = vst.msk [vmem:[#allocation11 + $0x38] sm:$0xff] %vm1686, %v1875
      %1878 = vrot.lane.b32.xlu0 %v1847, 106
      %v1879 = vpop.permute.xlu0 %1878
      %1881 = vst.msk [vmem:[#allocation11 + $0x40] sm:$0xff] %vm1686, %v1879
      %v1882 = vld [vmem:[#allocation11] sm:$0xff]
      %v1883 = vld [vmem:[#allocation11 + $0x8] sm:$0xff]
      %v1884 = vld [vmem:[#allocation11 + $0x10] sm:$0xff]
      %v1885 = vld [vmem:[#allocation11 + $0x18] sm:$0xff]
      %v1886 = vld [vmem:[#allocation11 + $0x20] sm:$0xff]
      %v1887 = vld [vmem:[#allocation11 + $0x28] sm:$0xff]
      %v1888 = vld [vmem:[#allocation11 + $0x30] sm:$0xff]
      %v1889 = vld [vmem:[#allocation11 + $0x38] sm:$0xff]
      %v1890 = vld [vmem:[#allocation11 + $0x40] sm:$0xff]
      %v1891 = vld [vmem:[%s13] sm:$0xff]
      %v1892 = vld [vmem:[%s13 + $0x8] sm:$0xff]
      %v1893 = vld [vmem:[%s14] sm:$0xff]
      %v1894 = vld [vmem:[%s14 + $0x8] sm:$0xff]
      %1896 = vset.pattern.permute.xlu0 0
      %1897 = vperm.xlu0 %1896, %v1893
      %v1898 = vpop.permute.xlu0 %1897
      %1901 = vset.pattern.permute.xlu0 0
      %1902 = vperm.xlu0 %1901, %v1894
      %v1903 = vpop.permute.xlu0 %1902
      %v1907 = vunpack.c.l.b16 %v1891
      %v1908 = vunpack.c.h.b16 %v1891
      %v1909 = vunpack.c.l.b16 %v1892
      %v1910 = vunpack.c.h.b16 %v1892
      %v1911 = vpack.c.b16 %v1909, %v1907
      %v1912 = vpack.c.b16 %v1910, %v1908
      %vm1914 = vcmask 130048
      %v1916 = vsel %vm1914, %v1912, 0
      %1918 = vmatprep.subr.bf16.mxu0 0
      %1919 = vmatpush1.bf16.msra.mxu0 %v1882
      %1920 = vmatprep.subr.bf16.mxu0 0
      %1921 = vmatpush1.bf16.msra.mxu0 %v1883
      %1922 = vmatprep.subr.bf16.mxu0 0
      %1923 = vmatpush1.bf16.msra.mxu0 %v1884
      %1924 = vmatprep.subr.bf16.mxu0 0
      %1925 = vmatpush1.bf16.msra.mxu0 %v1885
      %1926 = vmatprep.subr.bf16.mxu0 0
      %1927 = vmatpush1.bf16.msra.mxu0 %v1886
      %1928 = vmatprep.subr.bf16.mxu0 0
      %1929 = vmatpush1.bf16.msra.mxu0 %v1887
      %1930 = vmatprep.subr.bf16.mxu0 0
      %1931 = vmatpush1.bf16.msra.mxu0 %v1888
      %1932 = vmatprep.subr.bf16.mxu0 0
      %1933 = vmatpush1.bf16.msra.mxu0 %v1889
      %1934 = vmatprep.subr.bf16.mxu0 0
      %1935 = vmatpush1.bf16.msra.mxu0 %v1890
      %1936 = vmatprep.subr.bf16.mxu0 0
      %1937 = vmatpush1.bf16.msra.mxu0 0
      %1938 = vmatprep.subr.bf16.mxu0 0
      %1939 = vmatpush1.bf16.msra.mxu0 0
      %1940 = vmatprep.subr.bf16.mxu0 0
      %1941 = vmatpush1.bf16.msra.mxu0 0
      %1942 = vmatprep.subr.bf16.mxu0 0
      %1943 = vmatpush1.bf16.msra.mxu0 0
      %1944 = vmatprep.subr.bf16.mxu0 0
      %1945 = vmatpush1.bf16.msra.mxu0 0
      %1946 = vmatprep.subr.bf16.mxu0 0
      %1947 = vmatpush1.bf16.msra.mxu0 0
      %1948 = vmatprep.subr.bf16.mxu0 0
      %1949 = vmatpush1.bf16.msra.mxu0 0
      %1950 = vmatprep.mubr.bf16.mxu0 %v1916
      %1951 = vmatmul.mubr.bf16.gmra.mrb[0].mxu0 %v1911
      %v1952 = vpop.f32.mrb[0].mxu0
      %v1953 = vadd.f32 %v1898, %v1952
      %v1954 = vpop.f32.mrb[0].mxu0
      %v1955 = vpop.f32.mrb[0].mxu0
      %v1956 = vadd.f32 %v1903, %v1955
      %v1957 = vpop.f32.mrb[0].mxu0
      %1958 = vdwg.mxu0
      %vm1959 = vcmp.ge.f32.partialorder %v1953, 0.0
      %vm1960 = vcmp.ge.f32.partialorder %v1956, 0.0
      %v1961 = vld [vmem:[%s15] sm:$0xff]
      %v1962 = vld [vmem:[%s15 + $0x8] sm:$0xff]
      %1964 = vset.pattern.permute.xlu0 0
      %1965 = vperm.xlu0 %1964, %v1961
      %v1966 = vpop.permute.xlu0 %1965
      %1969 = vset.pattern.permute.xlu0 0
      %1970 = vperm.xlu0 %1969, %v1962
      %v1971 = vpop.permute.xlu0 %1970
      %v1973 = vmul.f32 %v1966, %v1953
      %v1974 = vmul.f32 %v1971, %v1956
      %v1975 = vsel %vm1959, %v1953, %v1973
      %v1976 = vsel %vm1960, %v1956, %v1974
      %1979 = vrot.lane.b32.xlu0 %v1975, 127
      %v1980 = vpop.permute.xlu0 %1979
      %1981 = vrot.lane.b32.xlu0 %v1976, 127
      %v1982 = vpop.permute.xlu0 %1981
      %v1985 = vmax.f32 %v1975, %v1980
      %v1986 = vmax.f32 %v1976, %v1982
      %1989 = vrot.lane.b32.xlu0 %v1985, 118
      %v1990 = vpop.permute.xlu0 %1989
      %1991 = vrot.lane.b32.xlu0 %v1986, 118
      %v1992 = vpop.permute.xlu0 %1991
      %v1995 = vmax.f32 %v1985, %v1990
      %v1996 = vmax.f32 %v1986, %v1992
      %v1997 = vld [vmem:[%s16] sm:$0xff]
      %v1998 = vld [vmem:[%s16 + $0x8] sm:$0xff]
      %v1999 = vld [vmem:[%s16 + $0x10] sm:$0xff]
      %v2000 = vld [vmem:[%s16 + $0x18] sm:$0xff]
      %v2001 = vld [vmem:[%s16 + $0x20] sm:$0xff]
      %v2002 = vld [vmem:[%s16 + $0x28] sm:$0xff]
      %v2003 = vld [vmem:[%s16 + $0x30] sm:$0xff]
      %v2004 = vld [vmem:[%s16 + $0x38] sm:$0xff]
      %v2005 = vld [vmem:[%s16 + $0x40] sm:$0x1f]
      %vm2006 = vcmask 564224
      %v2008 = vsel %vm2006, %v1995, 0
      %v2011 = vsel %vm2006, %v1996, 0
      %v2014 = vsel %vm1539, %v2005, 0
      %2016 = vmatprep.subr.mxu0 0.0
      %2017 = vmatpush1.msra.mxu0 %v1997
      %2018 = vmatprep.subr.mxu0 0.0
      %2019 = vmatpush1.msra.mxu0 %v1998
      %2020 = vmatprep.subr.mxu0 0.0
      %2021 = vmatpush1.msra.mxu0 %v1999
      %2022 = vmatprep.subr.mxu0 0.0
      %2023 = vmatpush1.msra.mxu0 %v2000
      %2024 = vmatprep.subr.mxu0 0.0
      %2025 = vmatpush1.msra.mxu0 %v2001
      %2026 = vmatprep.subr.mxu0 0.0
      %2027 = vmatpush1.msra.mxu0 %v2002
      %2028 = vmatprep.subr.mxu0 0.0
      %2029 = vmatpush1.msra.mxu0 %v2003
      %2030 = vmatprep.subr.mxu0 0.0
      %2031 = vmatpush1.msra.mxu0 %v2004
      %2032 = vmatprep.subr.mxu0 0.0
      %2033 = vmatpush1.msra.mxu0 %v2014
      %2034 = vmatprep.subr.mxu0 0.0
      %2035 = vmatpush1.msra.mxu0 0.0
      %2036 = vmatprep.subr.mxu0 0.0
      %2037 = vmatpush1.msra.mxu0 0.0
      %2038 = vmatprep.subr.mxu0 0.0
      %2039 = vmatpush1.msra.mxu0 0.0
      %2040 = vmatprep.subr.mxu0 0.0
      %2041 = vmatpush1.msra.mxu0 0.0
      %2042 = vmatprep.subr.mxu0 0.0
      %2043 = vmatpush1.msra.mxu0 0.0
      %2044 = vmatprep.subr.mxu0 0.0
      %2045 = vmatpush1.msra.mxu0 0.0
      %2046 = vmatprep.subr.mxu0 0.0
      %2047 = vmatpush1.msra.mxu0 0.0
      %2048 = vmatprep.subr.mxu0 0.0
      %2049 = vmatpush1.msra.mxu0 0.0
      %2050 = vmatprep.subr.mxu0 0.0
      %2051 = vmatpush1.msra.mxu0 0.0
      %2052 = vmatprep.subr.mxu0 0.0
      %2053 = vmatpush1.msra.mxu0 0.0
      %2054 = vmatprep.subr.mxu0 0.0
      %2055 = vmatpush1.msra.mxu0 0.0
      %2056 = vmatprep.subr.mxu0 0.0
      %2057 = vmatpush1.msra.mxu0 0.0
      %2058 = vmatprep.subr.mxu0 0.0
      %2059 = vmatpush1.msra.mxu0 0.0
      %2060 = vmatprep.subr.mxu0 0.0
      %2061 = vmatpush1.msra.mxu0 0.0
      %2062 = vmatprep.subr.mxu0 0.0
      %2063 = vmatpush1.msra.mxu0 0.0
      %2064 = vmatprep.subr.mxu0 0.0
      %2065 = vmatpush1.msra.mxu0 0.0
      %2066 = vmatprep.subr.mxu0 0.0
      %2067 = vmatpush1.msra.mxu0 0.0
      %2068 = vmatprep.subr.mxu0 0.0
      %2069 = vmatpush1.msra.mxu0 0.0
      %2070 = vmatprep.subr.mxu0 0.0
      %2071 = vmatpush1.msra.mxu0 0.0
      %2072 = vmatprep.subr.mxu0 0.0
      %2073 = vmatpush1.msra.mxu0 0.0
      %2074 = vmatprep.subr.mxu0 0.0
      %2075 = vmatpush1.msra.mxu0 0.0
      %2076 = vmatprep.subr.mxu0 0.0
      %2077 = vmatpush1.msra.mxu0 0.0
      %2078 = vmatprep.subr.mxu0 0.0
      %2079 = vmatpush1.msra.mxu0 0.0
      %2080 = vmatprep.mubr.f32.mxu0 0.0
      %2081 = vmatmul.mubr.f32.gmra.mrb[0].mxu0 %v2008
      %v2082 = vpop.f32.mrb[0].mxu0
      %v2083 = vadd.f32 0.0, %v2082
      %v2084 = vpop.f32.mrb[0].mxu0
      %2085 = vmatprep.mubr.f32.mxu0 0.0
      %2086 = vmatmul.mubr.f32.gmra.mrb[0].mxu0 %v2011
      %v2087 = vpop.f32.mrb[0].mxu0
      %v2088 = vadd.f32 0.0, %v2087
      %v2089 = vpop.f32.mrb[0].mxu0
      %2090 = vdwg.mxu0
      %vm2091 = vcmask 310272
      %2092 = vst.msk [vmem:[#allocation6] sm:$0xff] %vm2091, %v2083
      %2093 = vst.msk [vmem:[#allocation6 + $0x8] sm:$0xff] %vm2091, %v2088
      %v2094 = vld [vmem:[#allocation6] sm:$0xff]
      %v2095 = vld [vmem:[#allocation6 + $0x8] sm:$0xff]
      %v2096 = vpack.c.bf16 %v2095, %v2094
      %vm2097 = vcmask 195584
      %2098 = vst.msk [vmem:[#allocation12] sm:$0xff] %vm2097, %v2096
      %2100 = vrot.lane.b32.xlu0 %v2096, 127
      %v2101 = vpop.permute.xlu0 %2100
      %2103 = vst.msk [vmem:[#allocation12 + $0x8] sm:$0xff] %vm2097, %v2101
      %2104 = vrot.lane.b32.xlu0 %v2096, 126
      %v2105 = vpop.permute.xlu0 %2104
      %2107 = vst.msk [vmem:[#allocation12 + $0x10] sm:$0xff] %vm2097, %v2105
      %2108 = vrot.lane.b32.xlu0 %v2096, 122
      %v2109 = vpop.permute.xlu0 %2108
      %2111 = vst.msk [vmem:[#allocation12 + $0x18] sm:$0xff] %vm2097, %v2109
      %2112 = vrot.lane.b32.xlu0 %v2096, 121
      %v2113 = vpop.permute.xlu0 %2112
      %2115 = vst.msk [vmem:[#allocation12 + $0x20] sm:$0xff] %vm2097, %v2113
      %2116 = vrot.lane.b32.xlu0 %v2096, 120
      %v2117 = vpop.permute.xlu0 %2116
      %2119 = vst.msk [vmem:[#allocation12 + $0x28] sm:$0xff] %vm2097, %v2117
      %2120 = vrot.lane.b32.xlu0 %v2096, 116
      %v2121 = vpop.permute.xlu0 %2120
      %2123 = vst.msk [vmem:[#allocation12 + $0x30] sm:$0xff] %vm2097, %v2121
      %2124 = vrot.lane.b32.xlu0 %v2096, 115
      %v2125 = vpop.permute.xlu0 %2124
      %2127 = vst.msk [vmem:[#allocation12 + $0x38] sm:$0xff] %vm2097, %v2125
      %2128 = vrot.lane.b32.xlu0 %v2096, 114
      %v2129 = vpop.permute.xlu0 %2128
      %2131 = vst.msk [vmem:[#allocation12 + $0x40] sm:$0xff] %vm2097, %v2129
      %v2132 = vld [vmem:[#allocation12] sm:$0xff]
      %v2133 = vld [vmem:[#allocation12 + $0x8] sm:$0xff]
      %v2134 = vld [vmem:[#allocation12 + $0x10] sm:$0xff]
      %v2135 = vld [vmem:[#allocation12 + $0x18] sm:$0xff]
      %v2136 = vld [vmem:[#allocation12 + $0x20] sm:$0xff]
      %v2137 = vld [vmem:[#allocation12 + $0x28] sm:$0xff]
      %v2138 = vld [vmem:[#allocation12 + $0x30] sm:$0xff]
      %v2139 = vld [vmem:[#allocation12 + $0x38] sm:$0xff]
      %v2140 = vld [vmem:[#allocation12 + $0x40] sm:$0xff]
      %v2141 = vld [vmem:[%s17] sm:$0xff]
      %v2142 = vld [vmem:[%s17 + $0x8] sm:$0xff]
      %v2143 = vld [vmem:[%s17 + $0x10] sm:$0xff]
      %v2144 = vld [vmem:[%s17 + $0x18] sm:$0xff]
      %v2145 = vld [vmem:[%s18] sm:$0xff]
      %v2146 = vld [vmem:[%s18 + $0x8] sm:$0xff]
      %v2147 = vld [vmem:[%s18 + $0x10] sm:$0xff]
      %v2148 = vld [vmem:[%s18 + $0x18] sm:$0xff]
      %2150 = vset.pattern.permute.xlu0 0
      %2151 = vperm.xlu0 %2150, %v2145
      %v2152 = vpop.permute.xlu0 %2151
      %2155 = vset.pattern.permute.xlu0 0
      %2156 = vperm.xlu0 %2155, %v2146
      %v2157 = vpop.permute.xlu0 %2156
      %2160 = vset.pattern.permute.xlu0 0
      %2161 = vperm.xlu0 %2160, %v2147
      %v2162 = vpop.permute.xlu0 %2161
      %2165 = vset.pattern.permute.xlu0 0
      %2166 = vperm.xlu0 %2165, %v2148
      %v2167 = vpop.permute.xlu0 %2166
      %v2173 = vunpack.c.l.b16 %v2141
      %v2174 = vunpack.c.h.b16 %v2141
      %v2175 = vunpack.c.l.b16 %v2142
      %v2176 = vunpack.c.h.b16 %v2142
      %v2177 = vunpack.c.l.b16 %v2143
      %v2178 = vunpack.c.h.b16 %v2143
      %v2179 = vunpack.c.l.b16 %v2144
      %v2180 = vunpack.c.h.b16 %v2144
      %v2181 = vpack.c.b16 %v2175, %v2173
      %v2182 = vpack.c.b16 %v2176, %v2174
      %v2183 = vpack.c.b16 %v2179, %v2177
      %v2184 = vpack.c.b16 %v2180, %v2178
      %v2188 = vsel %vm1914, %v2182, 0
      %v2191 = vsel %vm1914, %v2184, 0
      %2193 = vmatprep.subr.bf16.mxu0 0
      %2194 = vmatpush1.bf16.msra.mxu0 %v2132
      %2195 = vmatprep.subr.bf16.mxu0 0
      %2196 = vmatpush1.bf16.msra.mxu0 %v2133
      %2197 = vmatprep.subr.bf16.mxu0 0
      %2198 = vmatpush1.bf16.msra.mxu0 %v2134
      %2199 = vmatprep.subr.bf16.mxu0 0
      %2200 = vmatpush1.bf16.msra.mxu0 %v2135
      %2201 = vmatprep.subr.bf16.mxu0 0
      %2202 = vmatpush1.bf16.msra.mxu0 %v2136
      %2203 = vmatprep.subr.bf16.mxu0 0
      %2204 = vmatpush1.bf16.msra.mxu0 %v2137
      %2205 = vmatprep.subr.bf16.mxu0 0
      %2206 = vmatpush1.bf16.msra.mxu0 %v2138
      %2207 = vmatprep.subr.bf16.mxu0 0
      %2208 = vmatpush1.bf16.msra.mxu0 %v2139
      %2209 = vmatprep.subr.bf16.mxu0 0
      %2210 = vmatpush1.bf16.msra.mxu0 %v2140
      %2211 = vmatprep.subr.bf16.mxu0 0
      %2212 = vmatpush1.bf16.msra.mxu0 0
      %2213 = vmatprep.subr.bf16.mxu0 0
      %2214 = vmatpush1.bf16.msra.mxu0 0
      %2215 = vmatprep.subr.bf16.mxu0 0
      %2216 = vmatpush1.bf16.msra.mxu0 0
      %2217 = vmatprep.subr.bf16.mxu0 0
      %2218 = vmatpush1.bf16.msra.mxu0 0
      %2219 = vmatprep.subr.bf16.mxu0 0
      %2220 = vmatpush1.bf16.msra.mxu0 0
      %2221 = vmatprep.subr.bf16.mxu0 0
      %2222 = vmatpush1.bf16.msra.mxu0 0
      %2223 = vmatprep.subr.bf16.mxu0 0
      %2224 = vmatpush1.bf16.msra.mxu0 0
      %2225 = vmatprep.mubr.bf16.mxu0 %v2188
      %2226 = vmatmul.mubr.bf16.gmra.mrb[0].mxu0 %v2181
      %v2227 = vpop.f32.mrb[0].mxu0
      %v2228 = vadd.f32 %v2152, %v2227
      %v2229 = vpop.f32.mrb[0].mxu0
      %v2230 = vpop.f32.mrb[0].mxu0
      %v2231 = vadd.f32 %v2157, %v2230
      %v2232 = vpop.f32.mrb[0].mxu0
      %2233 = vmatprep.mubr.bf16.mxu0 %v2191
      %2234 = vmatmul.mubr.bf16.gmra.mrb[0].mxu0 %v2183
      %v2235 = vpop.f32.mrb[0].mxu0
      %v2236 = vadd.f32 %v2162, %v2235
      %v2237 = vpop.f32.mrb[0].mxu0
      %v2238 = vpop.f32.mrb[0].mxu0
      %v2239 = vadd.f32 %v2167, %v2238
      %v2240 = vpop.f32.mrb[0].mxu0
      %2241 = vdwg.mxu0
      %vm2242 = vcmp.ge.f32.partialorder %v2228, 0.0
      %vm2243 = vcmp.ge.f32.partialorder %v2231, 0.0
      %vm2244 = vcmp.ge.f32.partialorder %v2236, 0.0
      %vm2245 = vcmp.ge.f32.partialorder %v2239, 0.0
      %v2246 = vld [vmem:[%s19] sm:$0xff]
      %v2247 = vld [vmem:[%s19 + $0x8] sm:$0xff]
      %v2248 = vld [vmem:[%s19 + $0x10] sm:$0xff]
      %v2249 = vld [vmem:[%s19 + $0x18] sm:$0xff]
      %2251 = vset.pattern.permute.xlu0 0
      %2252 = vperm.xlu0 %2251, %v2246
      %v2253 = vpop.permute.xlu0 %2252
      %2256 = vset.pattern.permute.xlu0 0
      %2257 = vperm.xlu0 %2256, %v2247
      %v2258 = vpop.permute.xlu0 %2257
      %2261 = vset.pattern.permute.xlu0 0
      %2262 = vperm.xlu0 %2261, %v2248
      %v2263 = vpop.permute.xlu0 %2262
      %2266 = vset.pattern.permute.xlu0 0
      %2267 = vperm.xlu0 %2266, %v2249
      %v2268 = vpop.permute.xlu0 %2267
      %v2270 = vmul.f32 %v2253, %v2228
      %v2271 = vmul.f32 %v2258, %v2231
      %v2272 = vmul.f32 %v2263, %v2236
      %v2273 = vmul.f32 %v2268, %v2239
      %v2274 = vsel %vm2242, %v2228, %v2270
      %v2275 = vsel %vm2243, %v2231, %v2271
      %v2276 = vsel %vm2244, %v2236, %v2272
      %v2277 = vsel %vm2245, %v2239, %v2273
      %v2278 = vld [vmem:[%s20] sm:$0x1]
      %v2280 = vlaneseq
      %v2281 = vshrl.u32 %v2280, 7
      %v2282 = vsub.s32 0, %v2281
      %v2283 = vrot.slane %v2278, %v2282
      %v2285 = vmul.f32 %v2274, %v2283
      %v2286 = vmul.f32 %v2275, %v2283
      %v2287 = vmul.f32 %v2276, %v2283
      %v2288 = vmul.f32 %v2277, %v2283
      %vm2289 = vcmask 56320
      %2290 = vst.msk [vmem:[#allocation7] sm:$0xff] %vm2289, 0.0
      %2291 = vst.msk [vmem:[#allocation7 + $0x8] sm:$0xff] %vm2289, 0.0
      %2292 = vst.msk [vmem:[#allocation7 + $0x10] sm:$0xff] %vm2289, 0.0
      %2293 = vst.msk [vmem:[#allocation7 + $0x18] sm:$0xff] %vm2289, 0.0
      %vm2294 = vcmask 310520
      %2295 = vst.msk [vmem:[#allocation7] sm:$0xff] %vm2294, 0.0
      %2296 = vst.msk [vmem:[#allocation7 + $0x8] sm:$0xff] %vm2294, 0.0
      %2297 = vst.msk [vmem:[#allocation7 + $0x10] sm:$0xff] %vm2294, 0.0
      %2298 = vst.msk [vmem:[#allocation7 + $0x18] sm:$0xff] %vm2294, 0.0
      %2303 = vrot.lane.b32.xlu0 %v2285, 7
      %v2304 = vpop.permute.xlu0 %2303
      %2305 = vrot.lane.b32.xlu0 %v2286, 7
      %v2306 = vpop.permute.xlu0 %2305
      %2307 = vrot.lane.b32.xlu0 %v2287, 7
      %v2308 = vpop.permute.xlu0 %2307
      %2309 = vrot.lane.b32.xlu0 %v2288, 7
      %v2310 = vpop.permute.xlu0 %2309
      %vm2315 = vcmask 252984
      %2316 = vst.msk [vmem:[#allocation7] sm:$0xff] %vm2315, %v2304
      %2317 = vst.msk [vmem:[#allocation7 + $0x8] sm:$0xff] %vm2315, %v2306
      %2318 = vst.msk [vmem:[#allocation7 + $0x10] sm:$0xff] %vm2315, %v2308
      %2319 = vst.msk [vmem:[#allocation7 + $0x18] sm:$0xff] %vm2315, %v2310
      %v2320 = vld [vmem:[#allocation7] sm:$0xff]
      %v2321 = vld [vmem:[#allocation7 + $0x8] sm:$0xff]
      %v2322 = vld [vmem:[#allocation7 + $0x10] sm:$0xff]
      %v2323 = vld [vmem:[#allocation7 + $0x18] sm:$0xff]
      %v2324 = vpack.c.bf16 %v2321, %v2320
      %v2325 = vpack.c.bf16 %v2323, %v2322
      %2326 = vst.msk [vmem:[#allocation13] sm:$0xff] %vm2097, %v2324
      %2327 = vst.msk [vmem:[#allocation13 + $0x8] sm:$0xff] %vm2097, %v2325
      %2330 = vrot.lane.b32.xlu0 %v2324, 127
      %v2331 = vpop.permute.xlu0 %2330
      %2332 = vrot.lane.b32.xlu0 %v2325, 127
      %v2333 = vpop.permute.xlu0 %2332
      %2336 = vst.msk [vmem:[#allocation13 + $0x10] sm:$0xff] %vm2097, %v2331
      %2337 = vst.msk [vmem:[#allocation13 + $0x18] sm:$0xff] %vm2097, %v2333
      %2338 = vrot.lane.b32.xlu0 %v2324, 126
      %v2339 = vpop.permute.xlu0 %2338
      %2340 = vrot.lane.b32.xlu0 %v2325, 126
      %v2341 = vpop.permute.xlu0 %2340
      %2344 = vst.msk [vmem:[#allocation13 + $0x20] sm:$0xff] %vm2097, %v2339
      %2345 = vst.msk [vmem:[#allocation13 + $0x28] sm:$0xff] %vm2097, %v2341
      %2346 = vrot.lane.b32.xlu0 %v2324, 122
      %v2347 = vpop.permute.xlu0 %2346
      %2348 = vrot.lane.b32.xlu0 %v2325, 122
      %v2349 = vpop.permute.xlu0 %2348
      %2352 = vst.msk [vmem:[#allocation13 + $0x30] sm:$0xff] %vm2097, %v2347
      %2353 = vst.msk [vmem:[#allocation13 + $0x38] sm:$0xff] %vm2097, %v2349
      %2354 = vrot.lane.b32.xlu0 %v2324, 121
      %v2355 = vpop.permute.xlu0 %2354
      %2356 = vrot.lane.b32.xlu0 %v2325, 121
      %v2357 = vpop.permute.xlu0 %2356
      %2360 = vst.msk [vmem:[#allocation13 + $0x40] sm:$0xff] %vm2097, %v2355
      %2361 = vst.msk [vmem:[#allocation13 + $0x48] sm:$0xff] %vm2097, %v2357
      %2362 = vrot.lane.b32.xlu0 %v2324, 120
      %v2363 = vpop.permute.xlu0 %2362
      %2364 = vrot.lane.b32.xlu0 %v2325, 120
      %v2365 = vpop.permute.xlu0 %2364
      %2368 = vst.msk [vmem:[#allocation13 + $0x50] sm:$0xff] %vm2097, %v2363
      %2369 = vst.msk [vmem:[#allocation13 + $0x58] sm:$0xff] %vm2097, %v2365
      %2370 = vrot.lane.b32.xlu0 %v2324, 116
      %v2371 = vpop.permute.xlu0 %2370
      %2372 = vrot.lane.b32.xlu0 %v2325, 116
      %v2373 = vpop.permute.xlu0 %2372
      %2376 = vst.msk [vmem:[#allocation13 + $0x60] sm:$0xff] %vm2097, %v2371
      %2377 = vst.msk [vmem:[#allocation13 + $0x68] sm:$0xff] %vm2097, %v2373
      %2378 = vrot.lane.b32.xlu0 %v2324, 115
      %v2379 = vpop.permute.xlu0 %2378
      %2380 = vrot.lane.b32.xlu0 %v2325, 115
      %v2381 = vpop.permute.xlu0 %2380
      %2384 = vst.msk [vmem:[#allocation13 + $0x70] sm:$0xff] %vm2097, %v2379
      %2385 = vst.msk [vmem:[#allocation13 + $0x78] sm:$0xff] %vm2097, %v2381
      %2386 = vrot.lane.b32.xlu0 %v2324, 114
      %v2387 = vpop.permute.xlu0 %2386
      %2388 = vrot.lane.b32.xlu0 %v2325, 114
      %v2389 = vpop.permute.xlu0 %2388
      %2392 = vst.msk [vmem:[#allocation13 + $0x80] sm:$0xff] %vm2097, %v2387
      %2393 = vst.msk [vmem:[#allocation13 + $0x88] sm:$0xff] %vm2097, %v2389
      %v2394 = vld [vmem:[#allocation13] sm:$0xff]
      %v2395 = vld [vmem:[#allocation13 + $0x8] sm:$0xff]
      %v2396 = vld [vmem:[#allocation13 + $0x10] sm:$0xff]
      %v2397 = vld [vmem:[#allocation13 + $0x18] sm:$0xff]
      %v2398 = vld [vmem:[#allocation13 + $0x20] sm:$0xff]
      %v2399 = vld [vmem:[#allocation13 + $0x28] sm:$0xff]
      %v2400 = vld [vmem:[#allocation13 + $0x30] sm:$0xff]
      %v2401 = vld [vmem:[#allocation13 + $0x38] sm:$0xff]
      %v2402 = vld [vmem:[#allocation13 + $0x40] sm:$0xff]
      %v2403 = vld [vmem:[#allocation13 + $0x48] sm:$0xff]
      %v2404 = vld [vmem:[#allocation13 + $0x50] sm:$0xff]
      %v2405 = vld [vmem:[#allocation13 + $0x58] sm:$0xff]
      %v2406 = vld [vmem:[#allocation13 + $0x60] sm:$0xff]
      %v2407 = vld [vmem:[#allocation13 + $0x68] sm:$0xff]
      %v2408 = vld [vmem:[#allocation13 + $0x70] sm:$0xff]
      %v2409 = vld [vmem:[#allocation13 + $0x78] sm:$0xff]
      %v2410 = vld [vmem:[#allocation13 + $0x80] sm:$0xff]
      %v2411 = vld [vmem:[#allocation13 + $0x88] sm:$0xff]
      %v2412 = vld [vmem:[%s21] sm:$0xff]
      %v2413 = vld [vmem:[%s21 + $0x8] sm:$0xf]
      %v2414 = vld [vmem:[%s21 + $0xc] sm:$0xff]
      %v2415 = vld [vmem:[%s21 + $0x14] sm:$0xf]
      %v2416 = vld [vmem:[%s21 + $0x18] sm:$0xff]
      %v2417 = vld [vmem:[%s21 + $0x20] sm:$0xf]
      %v2418 = vld [vmem:[%s21 + $0x24] sm:$0xff]
      %v2419 = vld [vmem:[%s21 + $0x2c] sm:$0xf]
      %v2420 = vld [vmem:[%s22] sm:$0xff]
      %v2421 = vld [vmem:[%s22 + $0x8] sm:$0xff]
      %v2422 = vld [vmem:[%s22 + $0x10] sm:$0xff]
      %v2423 = vld [vmem:[%s22 + $0x18] sm:$0xff]
      %2425 = vset.pattern.permute.xlu0 0
      %2426 = vperm.xlu0 %2425, %v2420
      %v2427 = vpop.permute.xlu0 %2426
      %2430 = vset.pattern.permute.xlu0 0
      %2431 = vperm.xlu0 %2430, %v2421
      %v2432 = vpop.permute.xlu0 %2431
      %2435 = vset.pattern.permute.xlu0 0
      %2436 = vperm.xlu0 %2435, %v2422
      %v2437 = vpop.permute.xlu0 %2436
      %2440 = vset.pattern.permute.xlu0 0
      %2441 = vperm.xlu0 %2440, %v2423
      %v2442 = vpop.permute.xlu0 %2441
      %v2452 = vunpack.c.l.b16 %v2412
      %v2453 = vunpack.c.h.b16 %v2412
      %v2454 = vunpack.c.l.b16 %v2413
      %v2455 = vunpack.c.l.b16 %v2414
      %v2456 = vunpack.c.h.b16 %v2414
      %v2457 = vunpack.c.l.b16 %v2415
      %v2458 = vunpack.c.l.b16 %v2416
      %v2459 = vunpack.c.h.b16 %v2416
      %v2460 = vunpack.c.l.b16 %v2417
      %v2461 = vunpack.c.l.b16 %v2418
      %v2462 = vunpack.c.h.b16 %v2418
      %v2463 = vunpack.c.l.b16 %v2419
      %v2464 = vpack.c.b16 %v2455, %v2452
      %v2465 = vpack.c.b16 %v2456, %v2453
      %v2466 = vpack.c.b16 %v2457, %v2454
      %v2467 = vpack.c.b16 %v2461, %v2458
      %v2468 = vpack.c.b16 %v2462, %v2459
      %v2469 = vpack.c.b16 %v2463, %v2460
      %v2475 = vsel %vm863, %v2466, 0
      %v2478 = vsel %vm863, %v2469, 0
      %2480 = vmatprep.subr.bf16.mxu0 0
      %2481 = vmatpush1.bf16.msra.mxu0 %v2394
      %2482 = vmatprep.subr.bf16.mxu0 0
      %2483 = vmatpush1.bf16.msra.mxu0 %v2395
      %2484 = vmatprep.subr.bf16.mxu0 0
      %2485 = vmatpush1.bf16.msra.mxu0 %v2396
      %2486 = vmatprep.subr.bf16.mxu0 0
      %2487 = vmatpush1.bf16.msra.mxu0 %v2397
      %2488 = vmatprep.subr.bf16.mxu0 0
      %2489 = vmatpush1.bf16.msra.mxu0 %v2398
      %2490 = vmatprep.subr.bf16.mxu0 0
      %2491 = vmatpush1.bf16.msra.mxu0 %v2399
      %2492 = vmatprep.subr.bf16.mxu0 0
      %2493 = vmatpush1.bf16.msra.mxu0 %v2400
      %2494 = vmatprep.subr.bf16.mxu0 0
      %2495 = vmatpush1.bf16.msra.mxu0 %v2401
      %2496 = vmatprep.subr.bf16.mxu0 0
      %2497 = vmatpush1.bf16.msra.mxu0 %v2402
      %2498 = vmatprep.subr.bf16.mxu0 0
      %2499 = vmatpush1.bf16.msra.mxu0 %v2403
      %2500 = vmatprep.subr.bf16.mxu0 0
      %2501 = vmatpush1.bf16.msra.mxu0 %v2404
      %2502 = vmatprep.subr.bf16.mxu0 0
      %2503 = vmatpush1.bf16.msra.mxu0 %v2405
      %2504 = vmatprep.subr.bf16.mxu0 0
      %2505 = vmatpush1.bf16.msra.mxu0 %v2406
      %2506 = vmatprep.subr.bf16.mxu0 0
      %2507 = vmatpush1.bf16.msra.mxu0 %v2407
      %2508 = vmatprep.subr.bf16.mxu0 0
      %2509 = vmatpush1.bf16.msra.mxu0 %v2408
      %2510 = vmatprep.subr.bf16.mxu0 0
      %2511 = vmatpush1.bf16.msra.mxu0 %v2409
      %2512 = vmatprep.mubr.bf16.mxu0 %v2465
      %2513 = vmatmul.mubr.bf16.gmra.mrb[0].mxu0 %v2464
      %v2514 = vpop.f32.mrb[0].mxu0
      %v2515 = vadd.f32 %v2427, %v2514
      %v2516 = vpop.f32.mrb[0].mxu0
      %v2517 = vpop.f32.mrb[0].mxu0
      %v2518 = vadd.f32 %v2432, %v2517
      %v2519 = vpop.f32.mrb[0].mxu0
      %2520 = vmatprep.mubr.bf16.mxu0 %v2468
      %2521 = vmatmul.mubr.bf16.gmra.mrb[0].mxu0 %v2467
      %v2522 = vpop.f32.mrb[0].mxu0
      %v2523 = vadd.f32 %v2437, %v2522
      %v2524 = vpop.f32.mrb[0].mxu0
      %v2525 = vpop.f32.mrb[0].mxu0
      %v2526 = vadd.f32 %v2442, %v2525
      %v2527 = vpop.f32.mrb[0].mxu0
      %2528 = vdwg.mxu0
      %2529 = vmatprep.subr.bf16.mxu0 0
      %2530 = vmatpush1.bf16.msra.mxu0 %v2410
      %2531 = vmatprep.subr.bf16.mxu0 0
      %2532 = vmatpush1.bf16.msra.mxu0 %v2411
      %2533 = vmatprep.subr.bf16.mxu0 0
      %2534 = vmatpush1.bf16.msra.mxu0 0
      %2535 = vmatprep.subr.bf16.mxu0 0
      %2536 = vmatpush1.bf16.msra.mxu0 0
      %2537 = vmatprep.subr.bf16.mxu0 0
      %2538 = vmatpush1.bf16.msra.mxu0 0
      %2539 = vmatprep.subr.bf16.mxu0 0
      %2540 = vmatpush1.bf16.msra.mxu0 0
      %2541 = vmatprep.subr.bf16.mxu0 0
      %2542 = vmatpush1.bf16.msra.mxu0 0
      %2543 = vmatprep.subr.bf16.mxu0 0
      %2544 = vmatpush1.bf16.msra.mxu0 0
      %2545 = vmatprep.subr.bf16.mxu0 0
      %2546 = vmatpush1.bf16.msra.mxu0 0
      %2547 = vmatprep.subr.bf16.mxu0 0
      %2548 = vmatpush1.bf16.msra.mxu0 0
      %2549 = vmatprep.subr.bf16.mxu0 0
      %2550 = vmatpush1.bf16.msra.mxu0 0
      %2551 = vmatprep.subr.bf16.mxu0 0
      %2552 = vmatpush1.bf16.msra.mxu0 0
      %2553 = vmatprep.subr.bf16.mxu0 0
      %2554 = vmatpush1.bf16.msra.mxu0 0
      %2555 = vmatprep.subr.bf16.mxu0 0
      %2556 = vmatpush1.bf16.msra.mxu0 0
      %2557 = vmatprep.subr.bf16.mxu0 0
      %2558 = vmatpush1.bf16.msra.mxu0 0
      %2559 = vmatprep.subr.bf16.mxu0 0
      %2560 = vmatpush1.bf16.msra.mxu0 0
      %2561 = vmatprep.mubr.bf16.mxu0 0
      %2562 = vmatmul.mubr.bf16.gmra.mrb[0].mxu0 %v2475
      %v2563 = vpop.f32.mrb[0].mxu0
      %v2564 = vadd.f32 %v2515, %v2563
      %v2565 = vpop.f32.mrb[0].mxu0
      %v2566 = vpop.f32.mrb[0].mxu0
      %v2567 = vadd.f32 %v2518, %v2566
      %v2568 = vpop.f32.mrb[0].mxu0
      %2569 = vmatprep.mubr.bf16.mxu0 0
      %2570 = vmatmul.mubr.bf16.gmra.mrb[0].mxu0 %v2478
      %v2571 = vpop.f32.mrb[0].mxu0
      %v2572 = vadd.f32 %v2523, %v2571
      %v2573 = vpop.f32.mrb[0].mxu0
      %v2574 = vpop.f32.mrb[0].mxu0
      %v2575 = vadd.f32 %v2526, %v2574
      %v2576 = vpop.f32.mrb[0].mxu0
      %2577 = vdwg.mxu0
      %vm2578 = vcmp.ge.f32.partialorder %v2564, 0.0
      %vm2579 = vcmp.ge.f32.partialorder %v2567, 0.0
      %vm2580 = vcmp.ge.f32.partialorder %v2572, 0.0
      %vm2581 = vcmp.ge.f32.partialorder %v2575, 0.0
      %v2582 = vld [vmem:[%s23] sm:$0xff]
      %v2583 = vld [vmem:[%s23 + $0x8] sm:$0xff]
      %v2584 = vld [vmem:[%s23 + $0x10] sm:$0xff]
      %v2585 = vld [vmem:[%s23 + $0x18] sm:$0xff]
      %2587 = vset.pattern.permute.xlu0 0
      %2588 = vperm.xlu0 %2587, %v2582
      %v2589 = vpop.permute.xlu0 %2588
      %2592 = vset.pattern.permute.xlu0 0
      %2593 = vperm.xlu0 %2592, %v2583
      %v2594 = vpop.permute.xlu0 %2593
      %2597 = vset.pattern.permute.xlu0 0
      %2598 = vperm.xlu0 %2597, %v2584
      %v2599 = vpop.permute.xlu0 %2598
      %2602 = vset.pattern.permute.xlu0 0
      %2603 = vperm.xlu0 %2602, %v2585
      %v2604 = vpop.permute.xlu0 %2603
      %v2606 = vmul.f32 %v2589, %v2564
      %v2607 = vmul.f32 %v2594, %v2567
      %v2608 = vmul.f32 %v2599, %v2572
      %v2609 = vmul.f32 %v2604, %v2575
      %v2610 = vsel %vm2578, %v2564, %v2606
      %v2611 = vsel %vm2579, %v2567, %v2607
      %v2612 = vsel %vm2580, %v2572, %v2608
      %v2613 = vsel %vm2581, %v2575, %v2609
      %2618 = vrot.lane.b32.xlu0 %v2610, 127
      %v2619 = vpop.permute.xlu0 %2618
      %2620 = vrot.lane.b32.xlu0 %v2611, 127
      %v2621 = vpop.permute.xlu0 %2620
      %2622 = vrot.lane.b32.xlu0 %v2612, 127
      %v2623 = vpop.permute.xlu0 %2622
      %2624 = vrot.lane.b32.xlu0 %v2613, 127
      %v2625 = vpop.permute.xlu0 %2624
      %v2630 = vmax.f32 %v2610, %v2619
      %v2631 = vmax.f32 %v2611, %v2621
      %v2632 = vmax.f32 %v2612, %v2623
      %v2633 = vmax.f32 %v2613, %v2625
      %2638 = vrot.lane.b32.xlu0 %v2630, 122
      %v2639 = vpop.permute.xlu0 %2638
      %2640 = vrot.lane.b32.xlu0 %v2631, 122
      %v2641 = vpop.permute.xlu0 %2640
      %2642 = vrot.lane.b32.xlu0 %v2632, 122
      %v2643 = vpop.permute.xlu0 %2642
      %2644 = vrot.lane.b32.xlu0 %v2633, 122
      %v2645 = vpop.permute.xlu0 %2644
      %v2650 = vmax.f32 %v2630, %v2639
      %v2651 = vmax.f32 %v2631, %v2641
      %v2652 = vmax.f32 %v2632, %v2643
      %v2653 = vmax.f32 %v2633, %v2645
      %v2654 = vld [vmem:[%s24] sm:$0xff]
      %v2655 = vld [vmem:[%s24 + $0x8] sm:$0xff]
      %v2656 = vld [vmem:[%s24 + $0x10] sm:$0x1]
      %vm2657 = vcmask 138240
      %v2659 = vsel %vm2657, %v2650, 0
      %v2662 = vsel %vm2657, %v2651, 0
      %v2665 = vsel %vm2657, %v2652, 0
      %v2668 = vsel %vm2657, %v2653, 0
      %vm2670 = vcmask 1040384
      %v2672 = vsel %vm2670, %v2656, 0
      %2674 = vmatprep.subr.mxu0 0.0
      %2675 = vmatpush1.msra.mxu0 %v2654
      %2676 = vmatprep.subr.mxu0 0.0
      %2677 = vmatpush1.msra.mxu0 %v2655
      %2678 = vmatprep.subr.mxu0 0.0
      %2679 = vmatpush1.msra.mxu0 %v2672
      %2680 = vmatprep.subr.mxu0 0.0
      %2681 = vmatpush1.msra.mxu0 0.0
      %2682 = vmatprep.subr.mxu0 0.0
      %2683 = vmatpush1.msra.mxu0 0.0
      %2684 = vmatprep.subr.mxu0 0.0
      %2685 = vmatpush1.msra.mxu0 0.0
      %2686 = vmatprep.subr.mxu0 0.0
      %2687 = vmatpush1.msra.mxu0 0.0
      %2688 = vmatprep.subr.mxu0 0.0
      %2689 = vmatpush1.msra.mxu0 0.0
      %2690 = vmatprep.subr.mxu0 0.0
      %2691 = vmatpush1.msra.mxu0 0.0
      %2692 = vmatprep.subr.mxu0 0.0
      %2693 = vmatpush1.msra.mxu0 0.0
      %2694 = vmatprep.subr.mxu0 0.0
      %2695 = vmatpush1.msra.mxu0 0.0
      %2696 = vmatprep.subr.mxu0 0.0
      %2697 = vmatpush1.msra.mxu0 0.0
      %2698 = vmatprep.subr.mxu0 0.0
      %2699 = vmatpush1.msra.mxu0 0.0
      %2700 = vmatprep.subr.mxu0 0.0
      %2701 = vmatpush1.msra.mxu0 0.0
      %2702 = vmatprep.subr.mxu0 0.0
      %2703 = vmatpush1.msra.mxu0 0.0
      %2704 = vmatprep.subr.mxu0 0.0
      %2705 = vmatpush1.msra.mxu0 0.0
      %2706 = vmatprep.subr.mxu0 0.0
      %2707 = vmatpush1.msra.mxu0 0.0
      %2708 = vmatprep.subr.mxu0 0.0
      %2709 = vmatpush1.msra.mxu0 0.0
      %2710 = vmatprep.subr.mxu0 0.0
      %2711 = vmatpush1.msra.mxu0 0.0
      %2712 = vmatprep.subr.mxu0 0.0
      %2713 = vmatpush1.msra.mxu0 0.0
      %2714 = vmatprep.subr.mxu0 0.0
      %2715 = vmatpush1.msra.mxu0 0.0
      %2716 = vmatprep.subr.mxu0 0.0
      %2717 = vmatpush1.msra.mxu0 0.0
      %2718 = vmatprep.subr.mxu0 0.0
      %2719 = vmatpush1.msra.mxu0 0.0
      %2720 = vmatprep.subr.mxu0 0.0
      %2721 = vmatpush1.msra.mxu0 0.0
      %2722 = vmatprep.subr.mxu0 0.0
      %2723 = vmatpush1.msra.mxu0 0.0
      %2724 = vmatprep.subr.mxu0 0.0
      %2725 = vmatpush1.msra.mxu0 0.0
      %2726 = vmatprep.subr.mxu0 0.0
      %2727 = vmatpush1.msra.mxu0 0.0
      %2728 = vmatprep.subr.mxu0 0.0
      %2729 = vmatpush1.msra.mxu0 0.0
      %2730 = vmatprep.subr.mxu0 0.0
      %2731 = vmatpush1.msra.mxu0 0.0
      %2732 = vmatprep.subr.mxu0 0.0
      %2733 = vmatpush1.msra.mxu0 0.0
      %2734 = vmatprep.subr.mxu0 0.0
      %2735 = vmatpush1.msra.mxu0 0.0
      %2736 = vmatprep.subr.mxu0 0.0
      %2737 = vmatpush1.msra.mxu0 0.0
      %2738 = vmatprep.mubr.f32.mxu0 0.0
      %2739 = vmatmul.mubr.f32.gmra.mrb[0].mxu0 %v2659
      %v2740 = vpop.f32.mrb[0].mxu0
      %v2741 = vadd.f32 0.0, %v2740
      %v2742 = vpop.f32.mrb[0].mxu0
      %2743 = vmatprep.mubr.f32.mxu0 0.0
      %2744 = vmatmul.mubr.f32.gmra.mrb[0].mxu0 %v2662
      %v2745 = vpop.f32.mrb[0].mxu0
      %v2746 = vadd.f32 0.0, %v2745
      %v2747 = vpop.f32.mrb[0].mxu0
      %2748 = vmatprep.mubr.f32.mxu0 0.0
      %2749 = vmatmul.mubr.f32.gmra.mrb[0].mxu0 %v2665
      %v2750 = vpop.f32.mrb[0].mxu0
      %v2751 = vadd.f32 0.0, %v2750
      %v2752 = vpop.f32.mrb[0].mxu0
      %2753 = vmatprep.mubr.f32.mxu0 0.0
      %2754 = vmatmul.mubr.f32.gmra.mrb[0].mxu0 %v2668
      %v2755 = vpop.f32.mrb[0].mxu0
      %v2756 = vadd.f32 0.0, %v2755
      %v2757 = vpop.f32.mrb[0].mxu0
      %2758 = vdwg.mxu0
      %vm2759 = vcmask 31744
      %2760 = vst.msk [vmem:[%s764] sm:$0xff] %vm2759, %v2741
      %2761 = vst.msk [vmem:[%s764 + $0x8] sm:$0xff] %vm2759, %v2746
      %2762 = vst.msk [vmem:[%s764 + $0x10] sm:$0xff] %vm2759, %v2751
      %2763 = vst.msk [vmem:[%s764 + $0x18] sm:$0xff] %vm2759, %v2756
      %p2764 = scmp.lt.s32.totalorder %s36, 1
      %s2765 = scalar_select %p2764, %s36, 1
      %s2766 = smul.addr %s2765, 4
      %s2767 = smul.addr %s2766, 8
      %s2768 = scalar_lea.vmem %s25, %s2767
      // Predicated region
      $region121: #{base_feature_forward.1} parent=119 // pred_check
        %p2769 = pneg %p584
      $region122: #{base_feature_forward.1} parent=119 // pred_check_branch
        %2771 = sbr.rel (%p2769) target = $region124
      $region123: #{base_feature_forward.1} parent=119 // pred_region
        _
      $region124: #{base_feature_forward.1} parent=119 // pred_fallthru
        _
    $region120: #{base_feature_forward.1} parent=5 // pred_fallthru
      _
    %p2772 = scmp.le.s32.totalorder 2, %s31
    // Predicated region
    $region125: #{base_feature_forward.1} parent=5 // pred_check
      %p2773 = pneg %p2772
    $region126: #{base_feature_forward.1} parent=5 // pred_check_branch
      %2775 = sbr.rel (%p2773) target = $region128
    $region127: #{base_feature_forward.1} parent=5 // pred_region
      %s2776 = ssub.s32 %s31, 2
      // Predicated region
      $region129: #{base_feature_forward.1} parent=127 // pred_check
        %p2777 = pneg %p590
      $region130: #{base_feature_forward.1} parent=127 // pred_check_branch
        %2779 = sbr.rel (%p2777) target = $region132
      $region131: #{base_feature_forward.1} parent=127 // pred_region
        %p2780 = scmp.lt.s32.totalorder %s37, 1
        %s2781 = scalar_select %p2780, %s37, 1
        %s2782 = smul.addr %s2781, 4
        %s2783 = smul.addr %s2782, 8
        %s2784 = scalar_lea.vmem %s25, %s2783
      $region132: #{base_feature_forward.1} parent=127 // pred_fallthru
        _
    $region128: #{base_feature_forward.1} parent=5 // pred_fallthru
      _
  $region6: #{base_feature_forward.1} parent=0 // loop_footer
    %s35 = sadd.s32 1, %s31
  $region7: #{base_feature_forward.1} parent=0 // loop_footer_branch
    %30 = sbr.rel target = $region3
  $region8: #{base_feature_forward.1} parent=0 // loop_exit
    _

</llo_original>
